<compile_context>
chip_gen: v5e
topology: v5e:2x2
jax: 0.10.0
libtpu: 0.0.40
codegen_flags: <defaults>
</compile_context>

<pallas_src>
import jax
import jax.numpy as jnp
from jax import lax
from jax.experimental import pallas as pl
from jax.experimental.pallas import tpu as pltpu


def _make_kernel(x_is_z: bool, low_rank: bool):
    """Build the kernel body.

    x_is_z:   the x input is identical to z -> z_ref is read once and reused.
    low_rank: N << 128 -> algebraic form out = z2n (z2n^T xd) + mean_N(xd);
              otherwise materialize A_hat explicitly (better when N >= 128).
    """

    def kernel(*refs):
        if x_is_z:
            (z_ref,
             w1_ref, b1_ref, w2_ref, b2_ref,
             v1_ref, c1_ref, v2_ref, c2_ref, v3_ref, c3_ref,
             out_ref) = refs
            x_ref = None
        else:
            (z_ref, x_ref,
             w1_ref, b1_ref, w2_ref, b2_ref,
             v1_ref, c1_ref, v2_ref, c2_ref, v3_ref, c3_ref,
             out_ref) = refs

        Bb, N, F_lat = z_ref.shape
        H = w2_ref.shape[-1]

        # Flatten (Bb, N, F) -> (Bb*N, F): the MLP chains are per-token, so
        # they batch trivially and give the MXU Bb*N rows per matmul.
        z = z_ref[...].reshape(Bb * N, F_lat)
        if x_ref is None:
            x = z                      # x=None: reuse z, no second DMA/copy
            F_in = F_lat
        else:
            F_in = x_ref.shape[-1]
            x = x_ref[...].reshape(Bb * N, F_in)

        # ---- z_dec: Linear -> ReLU -> Linear ----
        h = jnp.maximum(
            jnp.dot(z, w1_ref[...], preferred_element_type=jnp.float32)
            + b1_ref[...], 0.0)
        z2 = jnp.dot(h, w2_ref[...], preferred_element_type=jnp.float32) + b2_ref[...]

        # ---- L2 normalize over last dim (torch .norm(2, dim=-1, keepdim)) ----
        # rsqrt runs on the EUP slot; multiply instead of a full-width divide.
        # NOTE: no epsilon (matches the PyTorch module exactly; an all-zero z2
        # row would produce inf/NaN there too).
        z2n = z2 * lax.rsqrt(jnp.sum(z2 * z2, axis=-1, keepdims=True))

        # ---- x_dec: Linear -> ReLU -> Linear -> ReLU -> Linear ----
        x1 = jnp.maximum(
            jnp.dot(x, v1_ref[...], preferred_element_type=jnp.float32)
            + c1_ref[...], 0.0)
        x2 = jnp.maximum(
            jnp.dot(x1, v2_ref[...], preferred_element_type=jnp.float32)
            + c2_ref[...], 0.0)
        xd = jnp.dot(x2, v3_ref[...], preferred_element_type=jnp.float32) + c3_ref[...]

        z2n_b = z2n.reshape(Bb, N, H)
        xd_b = xd.reshape(Bb, N, F_lat)

        if low_rank:
            # A_hat @ xd without forming the (N, N) A_hat:
            #   (z2n z2n^T + (1/N) o o^T) xd = z2n (z2n^T xd) + mean_N(xd)
            g = lax.dot_general(                         # (Bb, H, F_lat), K = N
                z2n_b, xd_b,
                dimension_numbers=(((1,), (1,)), ((0,), (0,))),
                preferred_element_type=jnp.float32)
            mean_xd = jnp.mean(xd_b, axis=1, keepdims=True)   # (Bb, 1, F_lat)
            out_ref[...] = lax.dot_general(              # (Bb, N, F_lat), K = H
                z2n_b, g,
                dimension_numbers=(((2,), (1,)), ((0,), (0,))),
                preferred_element_type=jnp.float32) + mean_xd
        else:
            a_hat = lax.dot_general(                     # (Bb, N, N)
                z2n_b, z2n_b,
                dimension_numbers=(((2,), (2,)), ((0,), (0,))),
                preferred_element_type=jnp.float32) + (1.0 / N)
            out_ref[...] = lax.dot_general(              # (Bb, N, F_lat)
                a_hat, xd_b,
                dimension_numbers=(((2,), (1,)), ((0,), (0,))),
                preferred_element_type=jnp.float32)

    return kernel


def _tpu_vmem_capacity_bytes():
    try:
        cap = getattr(pltpu.get_tpu_info(), "vmem_capacity_bytes", None)
        if cap:
            return int(cap)
    except Exception:
        pass
    return 64 << 20                      # conservative: v7x per-TensorCore VMEM


def _min_grid_steps():
    # v7x has 2 TensorCores/chip; keep >=2 "parallel" grid steps so both run.
    try:
        kind = jax.devices()[0].device_kind.lower()
        if "v7" in kind or "7x" in kind:
            return 2
    except Exception:
        pass
    return 1


def _choose_block_batch(B, N, F_lat, F_in, H, *, x_is_z, low_rank, vmem_budget,
                        min_grid=1, row_align=256, target_rows=1024):
    """Pick Bb (a divisor of B) such that:
      * grid = B // Bb >= min_grid (v7x: keep both TensorCores busy),
      * a conservative f32 VMEM estimate (double-buffered IO blocks and
        weights, live intermediates, A_hat or G) stays under budget,
      * Bb * N stops growing around ~target_rows (~1024 MXU rows; beyond that
        flattening returns little while intermediates grow linearly).
    Prefer Bb with Bb*N a multiple of row_align (MXU row tile)."""
    weight_bytes = 2 * 4 * (F_lat * F_lat + F_lat + F_lat * H + H
                            + 2 * F_in * F_in + 2 * F_in + F_in * F_lat + F_lat)
    io_feats = 2 * F_lat + (0 if x_is_z else F_in)       # z block, out block, (x)
    per_token_io = 2 * 4 * io_feats                      # double-buffered
    # live intermediates: z/x copies, h, z2, z2n, x1, x2, xd, out tile
    per_token_act = 4 * (3 * F_lat + 2 * H + 3 * F_in + F_lat)

    def est(d):
        e = weight_bytes + d * N * (per_token_io + per_token_act)
        if low_rank:
            e += d * 4 * (H * F_lat + F_lat)             # G + row-mean per batch
        else:
            e += d * 4 * N * N                           # A_hat per batch
        return e

    feasible = []
    for d in range(1, B + 1):
        if B % d:
            continue
        if B // d < min_grid:
            break
        if est(d) > vmem_budget:
            break
        feasible.append(d)
        if d * N >= target_rows:
            break
    if not feasible:
        return 1
    best = max(feasible)
    aligned = [d for d in feasible if (d * N) % row_align == 0]
    if aligned and 2 * max(aligned) >= best:
        return max(aligned)
    return best


def iterative_ref(z, x, W1, b1, W2, b2, V1, c1, V2, c2, V3, c3):
    """z: (B, N, n_latent); x: (B, N, n_input) or None (uses z, DMA'd once)."""
    x_is_z = x is None
    B, N, F_lat = z.shape
    F_in = F_lat if x_is_z else x.shape[-1]
    H = W2.shape[-1]

    # Layout guards: f32 sublane (8) on the token axis, lanes (128) on features.
    if N % 8 or F_lat % 128 or F_in % 128 or H % 128:
        # TODO(synk): pad N to a multiple of 8 and feature dims to multiples of
        # 128 in the wrapper (avoids sublane repacks / masked partial stores)
        # instead of raising.
        raise ValueError(
            "iterative_ref expects N % 8 == 0 and feature dims % 128 == 0; "
            f"got N={N}, F_lat={F_lat}, F_in={F_in}, H={H}")

    prefer_low_rank = N < 128

    vmem_cap = _tpu_vmem_capacity_bytes()
    vmem_budget = vmem_cap // 3                       # generation-aware tile budget
    # Scoped-VMEM limit matched to the budget (v5e's default is only 16 MiB).
    vmem_limit = int(min(vmem_cap, max(2 * vmem_budget, 48 << 20)))

    Bb = _choose_block_batch(B, N, F_lat, F_in, H, x_is_z=x_is_z,
                             low_rank=prefer_low_rank, vmem_budget=vmem_budget,
                             min_grid=_min_grid_steps())
    grid = (B // Bb,)

    # Advisory cost estimate.  Constant-index weight blocks are DMA'd only on
    # the first grid step, so they are counted once (not per step).
    mlp_flops = 2 * B * N * (F_lat * F_lat + F_lat * H + 2 * F_in * F_in + F_in * F_lat)
    if prefer_low_rank:
        mix_flops = 4 * B * N * H * F_lat
    else:
        mix_flops = 2 * B * N * N * (H + F_lat)
    weight_bytes_once = 4 * (F_lat * F_lat + F_lat + F_lat * H + H
                             + 2 * F_in * F_in + 2 * F_in + F_in * F_lat + F_lat)
    io_bytes = 4 * B * N * (2 * F_lat + (0 if x_is_z else F_in))
    cost = pl.CostEstimate(
        flops=int(mlp_flops + mix_flops),
        transcendentals=int(B * N),                   # one rsqrt per token
        bytes_accessed=int(io_bytes + weight_bytes_once))

    def batch_spec(f):
        return pl.BlockSpec((Bb, N, f), lambda b: (b, 0, 0))

    def run(low_rank, single_buffer_weights):
        def weight_spec(r, c):
            if single_buffer_weights:
                # Constant index map -> fetched exactly once; single buffering
                # halves the resident-weight VMEM footprint (matters on v7x).
                return pl.BlockSpec((r, c), lambda b: (0, 0),
                                    pipeline_mode=pl.Buffered(1))
            return pl.BlockSpec((r, c), lambda b: (0, 0))

        in_specs = [batch_spec(F_lat)]
        operands = [z]
        if not x_is_z:
            in_specs.append(batch_spec(F_in))
            operands.append(x)
        in_specs += [
            weight_spec(F_lat, F_lat), weight_spec(1, F_lat),   # W1, b1
            weight_spec(F_lat, H),     weight_spec(1, H),       # W2, b2
            weight_spec(F_in, F_in),   weight_spec(1, F_in),    # V1, c1
            weight_spec(F_in, F_in),   weight_spec(1, F_in),    # V2, c2
            weight_spec(F_in, F_lat),  weight_spec(1, F_lat),   # V3, c3
        ]
        operands += [W1, b1, W2, b2, V1, c1, V2, c2, V3, c3]

        return pl.pallas_call(
            _make_kernel(x_is_z, low_rank),
            out_shape=jax.ShapeDtypeStruct((B, N, F_lat), jnp.float32),
            grid=grid,
            in_specs=in_specs,
            out_specs=pl.BlockSpec((Bb, N, F_lat), lambda b: (b, 0, 0)),
            compiler_params=pltpu.CompilerParams(
                dimension_semantics=("parallel",),
                vmem_limit_bytes=vmem_limit),
            cost_estimate=cost,
        )(*operands)

    # Preferred config first; later entries are robustness fallbacks (identical
    # math) in case this jax/Mosaic version rejects Buffered(1) or the
    # transposed-lhs batched dot_general of the low-rank path.
    attempts = []
    for lr in ((True, False) if prefer_low_rank else (False,)):
        for sb in (True, False):
            attempts.append((lr, sb))
    last_err = None
    for lr, sb in attempts:
        try:
            return run(low_rank=lr, single_buffer_weights=sb)
        except Exception as e:          # optimization-only fallbacks
            last_err = e
    raise last_err


def iterative_ref_reference(z, x, W1, b1, W2, b2, V1, c1, V2, c2, V3, c3):
    """Pure-JAX reference matching the PyTorch forward."""
    if x is None:
        x = z
    h = jnp.maximum(z @ W1 + b1, 0.0)
    z2 = h @ W2 + b2
    z2 = z2 / jnp.sqrt(jnp.sum(z2 * z2, axis=-1, keepdims=True))
    N = z.shape[1]
    a_hat = jnp.einsum("bnh,bmh->bnm", z2, z2) + 1.0 / N
    x1 = jnp.maximum(x @ V1 + c1, 0.0)
    x2 = jnp.maximum(x1 @ V2 + c2, 0.0)
    xd = x2 @ V3 + c3
    return jnp.einsum("bnm,bmf->bnf", a_hat, xd)


if __name__ == "__main__":
    B, N = 2, 8
    n_latent = n_input = n_hidden = 128   # module defaults

    key = jax.random.PRNGKey(0)
    ks = jax.random.split(key, 12)

    def linear_params(kw, kb, fin, fout):
        # Deterministic synthetic init (PyTorch-style uniform bound).
        bound = 1.0 / jnp.sqrt(jnp.float32(fin))
        W = jax.random.uniform(kw, (fin, fout), jnp.float32, -bound, bound)
        b = jax.random.uniform(kb, (1, fout), jnp.float32, -bound, bound)
        return W, b

    W1, b1 = linear_params(ks[0], ks[1], n_latent, n_latent)   # z_dec[0]
    W2, b2 = linear_params(ks[2], ks[3], n_latent, n_hidden)   # z_dec[2]
    V1, c1 = linear_params(ks[4], ks[5], n_input, n_input)     # x_dec[0]
    V2, c2 = linear_params(ks[6], ks[7], n_input, n_input)     # x_dec[2]
    V3, c3 = linear_params(ks[8], ks[9], n_input, n_latent)    # x_dec[4]

    z = jax.random.normal(ks[10], (B, N, n_latent), jnp.float32)
    x = jax.random.normal(ks[11], (B, N, n_input), jnp.float32)

    params = (W1, b1, W2, b2, V1, c1, V2, c2, V3, c3)

    # x=None path (x_dec consumes z; z is DMA'd once).
    out0 = jax.block_until_ready(iterative_ref(z, None, *params))
    ref0 = iterative_ref_reference(z, None, *params)
    assert out0.shape == (B, N, n_latent)
    assert jnp.allclose(out0, ref0, atol=2e-4, rtol=2e-4), "mismatch (x=None)"

    # Explicit-x path.
    out1 = jax.block_until_ready(iterative_ref(z, x, *params))
    ref1 = iterative_ref_reference(z, x, *params)
    assert jnp.allclose(out1, ref1, atol=2e-4, rtol=2e-4), "mismatch (explicit x)"

    print("KERNEL_OK")
</pallas_src>

<mosaic_0001>
module attributes {stable_mosaic.version = 11 : i64} {
  func.func @kernel(%arg0: i32, %arg1: memref<2x8x128xf32, #tpu.memory_space<vmem>>, %arg2: memref<128x128xf32, #tpu.memory_space<vmem>>, %arg3: memref<1x128xf32, #tpu.memory_space<vmem>>, %arg4: memref<128x128xf32, #tpu.memory_space<vmem>>, %arg5: memref<1x128xf32, #tpu.memory_space<vmem>>, %arg6: memref<128x128xf32, #tpu.memory_space<vmem>>, %arg7: memref<1x128xf32, #tpu.memory_space<vmem>>, %arg8: memref<128x128xf32, #tpu.memory_space<vmem>>, %arg9: memref<1x128xf32, #tpu.memory_space<vmem>>, %arg10: memref<128x128xf32, #tpu.memory_space<vmem>>, %arg11: memref<1x128xf32, #tpu.memory_space<vmem>>, %arg12: memref<2x8x128xf32, #tpu.memory_space<vmem>>) attributes {dimension_semantics = [#tpu.dimension_semantics<parallel>], iteration_bounds = array<i64: 1>, scalar_prefetch = 0 : i64, scratch_operands = 0 : i64, tpu.core_type = #tpu.core_type<tc>, window_params = [{transform_indices = @transform_0, window_bounds = array<i64: 2, 8, 128>}, {pipeline_mode = #tpu.pipeline_mode<synchronous>, transform_indices = @transform_1, window_bounds = array<i64: 128, 128>}, {pipeline_mode = #tpu.pipeline_mode<synchronous>, transform_indices = @transform_2, window_bounds = array<i64: 1, 128>}, {pipeline_mode = #tpu.pipeline_mode<synchronous>, transform_indices = @transform_3, window_bounds = array<i64: 128, 128>}, {pipeline_mode = #tpu.pipeline_mode<synchronous>, transform_indices = @transform_4, window_bounds = array<i64: 1, 128>}, {pipeline_mode = #tpu.pipeline_mode<synchronous>, transform_indices = @transform_5, window_bounds = array<i64: 128, 128>}, {pipeline_mode = #tpu.pipeline_mode<synchronous>, transform_indices = @transform_6, window_bounds = array<i64: 1, 128>}, {pipeline_mode = #tpu.pipeline_mode<synchronous>, transform_indices = @transform_7, window_bounds = array<i64: 128, 128>}, {pipeline_mode = #tpu.pipeline_mode<synchronous>, transform_indices = @transform_8, window_bounds = array<i64: 1, 128>}, {pipeline_mode = #tpu.pipeline_mode<synchronous>, transform_indices = @transform_9, window_bounds = array<i64: 128, 128>}, {pipeline_mode = #tpu.pipeline_mode<synchronous>, transform_indices = @transform_10, window_bounds = array<i64: 1, 128>}, {transform_indices = @transform_11, window_bounds = array<i64: 2, 8, 128>}]} {
    %c0 = arith.constant 0 : index
    %c0_0 = arith.constant 0 : index
    %c0_1 = arith.constant 0 : index
    %0 = vector.load %arg1[%c0, %c0_0, %c0_1] : memref<2x8x128xf32, #tpu.memory_space<vmem>>, vector<2x8x128xf32>
    %1 = vector.shape_cast %0 : vector<2x8x128xf32> to vector<16x128xf32>
    %c0_2 = arith.constant 0 : index
    %c0_3 = arith.constant 0 : index
    %2 = vector.load %arg2[%c0_2, %c0_3] : memref<128x128xf32, #tpu.memory_space<vmem>>, vector<128x128xf32>
    %cst = arith.constant dense<0.000000e+00> : vector<16x128xf32>
    %3 = tpu.matmul %1, %2, %cst {dimension_numbers = #tpu.dot_dimension_numbers<[1], [0], [0], [1], [0, 0, 1, 1], [], []>} : vector<16x128xf32>, vector<128x128xf32>, vector<16x128xf32> -> vector<16x128xf32>
    %c0_4 = arith.constant 0 : index
    %c0_5 = arith.constant 0 : index
    %4 = vector.load %arg3[%c0_4, %c0_5] : memref<1x128xf32, #tpu.memory_space<vmem>>, vector<1x128xf32>
    %5 = vector.broadcast %4 : vector<1x128xf32> to vector<16x128xf32>
    %6 = arith.addf %3, %5 : vector<16x128xf32>
    %cst_6 = arith.constant 0.000000e+00 : f32
    %7 = vector.broadcast %cst_6 : f32 to vector<16x128xf32>
    %8 = arith.maximumf %6, %7 : vector<16x128xf32>
    %c0_7 = arith.constant 0 : index
    %c0_8 = arith.constant 0 : index
    %9 = vector.load %arg4[%c0_7, %c0_8] : memref<128x128xf32, #tpu.memory_space<vmem>>, vector<128x128xf32>
    %cst_9 = arith.constant dense<0.000000e+00> : vector<16x128xf32>
    %10 = tpu.matmul %8, %9, %cst_9 {dimension_numbers = #tpu.dot_dimension_numbers<[1], [0], [0], [1], [0, 0, 1, 1], [], []>} : vector<16x128xf32>, vector<128x128xf32>, vector<16x128xf32> -> vector<16x128xf32>
    %c0_10 = arith.constant 0 : index
    %c0_11 = arith.constant 0 : index
    %11 = vector.load %arg5[%c0_10, %c0_11] : memref<1x128xf32, #tpu.memory_space<vmem>>, vector<1x128xf32>
    %12 = vector.broadcast %11 : vector<1x128xf32> to vector<16x128xf32>
    %13 = arith.addf %10, %12 : vector<16x128xf32>
    %14 = arith.mulf %13, %13 : vector<16x128xf32>
    %cst_12 = arith.constant dense<0.000000e+00> : vector<16xf32>
    %15 = vector.multi_reduction <add>, %14, %cst_12 [1] : vector<16x128xf32> to vector<16xf32>
    %16 = vector.shape_cast %15 : vector<16xf32> to vector<16x1xf32>
    %17 = math.rsqrt %16 : vector<16x1xf32>
    %18 = vector.broadcast %17 : vector<16x1xf32> to vector<16x128xf32>
    %19 = arith.mulf %13, %18 : vector<16x128xf32>
    %c0_13 = arith.constant 0 : index
    %c0_14 = arith.constant 0 : index
    %20 = vector.load %arg6[%c0_13, %c0_14] : memref<128x128xf32, #tpu.memory_space<vmem>>, vector<128x128xf32>
    %cst_15 = arith.constant dense<0.000000e+00> : vector<16x128xf32>
    %21 = tpu.matmul %1, %20, %cst_15 {dimension_numbers = #tpu.dot_dimension_numbers<[1], [0], [0], [1], [0, 0, 1, 1], [], []>} : vector<16x128xf32>, vector<128x128xf32>, vector<16x128xf32> -> vector<16x128xf32>
    %c0_16 = arith.constant 0 : index
    %c0_17 = arith.constant 0 : index
    %22 = vector.load %arg7[%c0_16, %c0_17] : memref<1x128xf32, #tpu.memory_space<vmem>>, vector<1x128xf32>
    %23 = vector.broadcast %22 : vector<1x128xf32> to vector<16x128xf32>
    %24 = arith.addf %21, %23 : vector<16x128xf32>
    %cst_18 = arith.constant 0.000000e+00 : f32
    %25 = vector.broadcast %cst_18 : f32 to vector<16x128xf32>
    %26 = arith.maximumf %24, %25 : vector<16x128xf32>
    %c0_19 = arith.constant 0 : index
    %c0_20 = arith.constant 0 : index
    %27 = vector.load %arg8[%c0_19, %c0_20] : memref<128x128xf32, #tpu.memory_space<vmem>>, vector<128x128xf32>
    %cst_21 = arith.constant dense<0.000000e+00> : vector<16x128xf32>
    %28 = tpu.matmul %26, %27, %cst_21 {dimension_numbers = #tpu.dot_dimension_numbers<[1], [0], [0], [1], [0, 0, 1, 1], [], []>} : vector<16x128xf32>, vector<128x128xf32>, vector<16x128xf32> -> vector<16x128xf32>
    %c0_22 = arith.constant 0 : index
    %c0_23 = arith.constant 0 : index
    %29 = vector.load %arg9[%c0_22, %c0_23] : memref<1x128xf32, #tpu.memory_space<vmem>>, vector<1x128xf32>
    %30 = vector.broadcast %29 : vector<1x128xf32> to vector<16x128xf32>
    %31 = arith.addf %28, %30 : vector<16x128xf32>
    %cst_24 = arith.constant 0.000000e+00 : f32
    %32 = vector.broadcast %cst_24 : f32 to vector<16x128xf32>
    %33 = arith.maximumf %31, %32 : vector<16x128xf32>
    %c0_25 = arith.constant 0 : index
    %c0_26 = arith.constant 0 : index
    %34 = vector.load %arg10[%c0_25, %c0_26] : memref<128x128xf32, #tpu.memory_space<vmem>>, vector<128x128xf32>
    %cst_27 = arith.constant dense<0.000000e+00> : vector<16x128xf32>
    %35 = tpu.matmul %33, %34, %cst_27 {dimension_numbers = #tpu.dot_dimension_numbers<[1], [0], [0], [1], [0, 0, 1, 1], [], []>} : vector<16x128xf32>, vector<128x128xf32>, vector<16x128xf32> -> vector<16x128xf32>
    %c0_28 = arith.constant 0 : index
    %c0_29 = arith.constant 0 : index
    %36 = vector.load %arg11[%c0_28, %c0_29] : memref<1x128xf32, #tpu.memory_space<vmem>>, vector<1x128xf32>
    %37 = vector.broadcast %36 : vector<1x128xf32> to vector<16x128xf32>
    %38 = arith.addf %35, %37 : vector<16x128xf32>
    %39 = vector.shape_cast %19 : vector<16x128xf32> to vector<2x8x128xf32>
    %40 = vector.shape_cast %38 : vector<16x128xf32> to vector<2x8x128xf32>
    %cst_30 = arith.constant dense<0.000000e+00> : vector<2x128x128xf32>
    %41 = tpu.matmul %39, %40, %cst_30 {dimension_numbers = #tpu.dot_dimension_numbers<[1], [1], [2], [2], [0, 0, 0, 2, 1, 2], [0], [0]>} : vector<2x8x128xf32>, vector<2x8x128xf32>, vector<2x128x128xf32> -> vector<2x128x128xf32>
    %cst_31 = arith.constant dense<0.000000e+00> : vector<2x128xf32>
    %42 = vector.multi_reduction <add>, %40, %cst_31 [1] : vector<2x8x128xf32> to vector<2x128xf32>
    %43 = vector.shape_cast %42 : vector<2x128xf32> to vector<2x1x128xf32>
    %cst_32 = arith.constant 8.000000e+00 : f32
    %44 = vector.broadcast %cst_32 : f32 to vector<2x1x128xf32>
    %45 = arith.divf %43, %44 : vector<2x1x128xf32>
    %cst_33 = arith.constant dense<0.000000e+00> : vector<2x8x128xf32>
    %46 = tpu.matmul %39, %41, %cst_33 {dimension_numbers = #tpu.dot_dimension_numbers<[2], [1], [1], [2], [0, 0, 0, 1, 1, 2], [0], [0]>} : vector<2x8x128xf32>, vector<2x128x128xf32>, vector<2x8x128xf32> -> vector<2x8x128xf32>
    %47 = vector.broadcast %45 : vector<2x1x128xf32> to vector<2x8x128xf32>
    %48 = arith.addf %46, %47 : vector<2x8x128xf32>
    %c0_34 = arith.constant 0 : index
    %c0_35 = arith.constant 0 : index
    %c0_36 = arith.constant 0 : index
    %49 = vector.load %arg12[%c0_34, %c0_35, %c0_36] : memref<2x8x128xf32, #tpu.memory_space<vmem>>, vector<2x8x128xf32>
    tpu.vector_store %arg12[%c0_34, %c0_35, %c0_36], %48 {strides = array<i32>} : memref<2x8x128xf32, #tpu.memory_space<vmem>>, vector<2x8x128xf32>,
    return
  }
  func.func @transform_0(%arg0: i32) -> (i32, i32, i32) {
    %c0_i32 = arith.constant 0 : i32
    %c0_i32_0 = arith.constant 0 : i32
    %c0_i32_1 = arith.constant 0 : i32
    return %arg0, %c0_i32, %c0_i32_0 : i32, i32, i32
  }
  func.func @transform_1(%arg0: i32) -> (i32, i32) {
    %c0_i32 = arith.constant 0 : i32
    %c0_i32_0 = arith.constant 0 : i32
    %c0_i32_1 = arith.constant 0 : i32
    return %c0_i32, %c0_i32_0 : i32, i32
  }
  func.func @transform_2(%arg0: i32) -> (i32, i32) {
    %c0_i32 = arith.constant 0 : i32
    %c0_i32_0 = arith.constant 0 : i32
    %c0_i32_1 = arith.constant 0 : i32
    return %c0_i32, %c0_i32_0 : i32, i32
  }
  func.func @transform_3(%arg0: i32) -> (i32, i32) {
    %c0_i32 = arith.constant 0 : i32
    %c0_i32_0 = arith.constant 0 : i32
    %c0_i32_1 = arith.constant 0 : i32
    return %c0_i32, %c0_i32_0 : i32, i32
  }
  func.func @transform_4(%arg0: i32) -> (i32, i32) {
    %c0_i32 = arith.constant 0 : i32
    %c0_i32_0 = arith.constant 0 : i32
    %c0_i32_1 = arith.constant 0 : i32
    return %c0_i32, %c0_i32_0 : i32, i32
  }
  func.func @transform_5(%arg0: i32) -> (i32, i32) {
    %c0_i32 = arith.constant 0 : i32
    %c0_i32_0 = arith.constant 0 : i32
    %c0_i32_1 = arith.constant 0 : i32
    return %c0_i32, %c0_i32_0 : i32, i32
  }
  func.func @transform_6(%arg0: i32) -> (i32, i32) {
    %c0_i32 = arith.constant 0 : i32
    %c0_i32_0 = arith.constant 0 : i32
    %c0_i32_1 = arith.constant 0 : i32
    return %c0_i32, %c0_i32_0 : i32, i32
  }
  func.func @transform_7(%arg0: i32) -> (i32, i32) {
    %c0_i32 = arith.constant 0 : i32
    %c0_i32_0 = arith.constant 0 : i32
    %c0_i32_1 = arith.constant 0 : i32
    return %c0_i32, %c0_i32_0 : i32, i32
  }
  func.func @transform_8(%arg0: i32) -> (i32, i32) {
    %c0_i32 = arith.constant 0 : i32
    %c0_i32_0 = arith.constant 0 : i32
    %c0_i32_1 = arith.constant 0 : i32
    return %c0_i32, %c0_i32_0 : i32, i32
  }
  func.func @transform_9(%arg0: i32) -> (i32, i32) {
    %c0_i32 = arith.constant 0 : i32
    %c0_i32_0 = arith.constant 0 : i32
    %c0_i32_1 = arith.constant 0 : i32
    return %c0_i32, %c0_i32_0 : i32, i32
  }
  func.func @transform_10(%arg0: i32) -> (i32, i32) {
    %c0_i32 = arith.constant 0 : i32
    %c0_i32_0 = arith.constant 0 : i32
    %c0_i32_1 = arith.constant 0 : i32
    return %c0_i32, %c0_i32_0 : i32, i32
  }
  func.func @transform_11(%arg0: i32) -> (i32, i32, i32) {
    %c0_i32 = arith.constant 0 : i32
    %c0_i32_0 = arith.constant 0 : i32
    %c0_i32_1 = arith.constant 0 : i32
    return %arg0, %c0_i32, %c0_i32_0 : i32, i32, i32
  }
}

module attributes {stable_mosaic.version = 11 : i64} {
  func.func @kernel(%arg0: i32, %arg1: memref<2x8x128xf32, #tpu.memory_space<vmem>>, %arg2: memref<128x128xf32, #tpu.memory_space<vmem>>, %arg3: memref<1x128xf32, #tpu.memory_space<vmem>>, %arg4: memref<128x128xf32, #tpu.memory_space<vmem>>, %arg5: memref<1x128xf32, #tpu.memory_space<vmem>>, %arg6: memref<128x128xf32, #tpu.memory_space<vmem>>, %arg7: memref<1x128xf32, #tpu.memory_space<vmem>>, %arg8: memref<128x128xf32, #tpu.memory_space<vmem>>, %arg9: memref<1x128xf32, #tpu.memory_space<vmem>>, %arg10: memref<128x128xf32, #tpu.memory_space<vmem>>, %arg11: memref<1x128xf32, #tpu.memory_space<vmem>>, %arg12: memref<2x8x128xf32, #tpu.memory_space<vmem>>) attributes {dimension_semantics = [#tpu.dimension_semantics<parallel>], iteration_bounds = array<i64: 1>, scalar_prefetch = 0 : i64, scratch_operands = 0 : i64, tpu.core_type = #tpu.core_type<tc>, window_params = [{transform_indices = @transform_0, window_bounds = array<i64: 2, 8, 128>}, {pipeline_mode = #tpu.pipeline_mode<synchronous>, transform_indices = @transform_1, window_bounds = array<i64: 128, 128>}, {pipeline_mode = #tpu.pipeline_mode<synchronous>, transform_indices = @transform_2, window_bounds = array<i64: 1, 128>}, {pipeline_mode = #tpu.pipeline_mode<synchronous>, transform_indices = @transform_3, window_bounds = array<i64: 128, 128>}, {pipeline_mode = #tpu.pipeline_mode<synchronous>, transform_indices = @transform_4, window_bounds = array<i64: 1, 128>}, {pipeline_mode = #tpu.pipeline_mode<synchronous>, transform_indices = @transform_5, window_bounds = array<i64: 128, 128>}, {pipeline_mode = #tpu.pipeline_mode<synchronous>, transform_indices = @transform_6, window_bounds = array<i64: 1, 128>}, {pipeline_mode = #tpu.pipeline_mode<synchronous>, transform_indices = @transform_7, window_bounds = array<i64: 128, 128>}, {pipeline_mode = #tpu.pipeline_mode<synchronous>, transform_indices = @transform_8, window_bounds = array<i64: 1, 128>}, {pipeline_mode = #tpu.pipeline_mode<synchronous>, transform_indices = @transform_9, window_bounds = array<i64: 128, 128>}, {pipeline_mode = #tpu.pipeline_mode<synchronous>, transform_indices = @transform_10, window_bounds = array<i64: 1, 128>}, {transform_indices = @transform_11, window_bounds = array<i64: 2, 8, 128>}]} {
    %c0 = arith.constant 0 : index
    %c0_0 = arith.constant 0 : index
    %c0_1 = arith.constant 0 : index
    %0 = vector.load %arg1[%c0, %c0_0, %c0_1] : memref<2x8x128xf32, #tpu.memory_space<vmem>>, vector<2x8x128xf32>
    %1 = vector.shape_cast %0 : vector<2x8x128xf32> to vector<16x128xf32>
    %c0_2 = arith.constant 0 : index
    %c0_3 = arith.constant 0 : index
    %2 = vector.load %arg2[%c0_2, %c0_3] : memref<128x128xf32, #tpu.memory_space<vmem>>, vector<128x128xf32>
    %cst = arith.constant dense<0.000000e+00> : vector<16x128xf32>
    %3 = tpu.matmul %1, %2, %cst {dimension_numbers = #tpu.dot_dimension_numbers<[1], [0], [0], [1], [0, 0, 1, 1], [], []>} : vector<16x128xf32>, vector<128x128xf32>, vector<16x128xf32> -> vector<16x128xf32>
    %c0_4 = arith.constant 0 : index
    %c0_5 = arith.constant 0 : index
    %4 = vector.load %arg3[%c0_4, %c0_5] : memref<1x128xf32, #tpu.memory_space<vmem>>, vector<1x128xf32>
    %5 = vector.broadcast %4 : vector<1x128xf32> to vector<16x128xf32>
    %6 = arith.addf %3, %5 : vector<16x128xf32>
    %cst_6 = arith.constant 0.000000e+00 : f32
    %7 = vector.broadcast %cst_6 : f32 to vector<16x128xf32>
    %8 = arith.maximumf %6, %7 : vector<16x128xf32>
    %c0_7 = arith.constant 0 : index
    %c0_8 = arith.constant 0 : index
    %9 = vector.load %arg4[%c0_7, %c0_8] : memref<128x128xf32, #tpu.memory_space<vmem>>, vector<128x128xf32>
    %cst_9 = arith.constant dense<0.000000e+00> : vector<16x128xf32>
    %10 = tpu.matmul %8, %9, %cst_9 {dimension_numbers = #tpu.dot_dimension_numbers<[1], [0], [0], [1], [0, 0, 1, 1], [], []>} : vector<16x128xf32>, vector<128x128xf32>, vector<16x128xf32> -> vector<16x128xf32>
    %c0_10 = arith.constant 0 : index
    %c0_11 = arith.constant 0 : index
    %11 = vector.load %arg5[%c0_10, %c0_11] : memref<1x128xf32, #tpu.memory_space<vmem>>, vector<1x128xf32>
    %12 = vector.broadcast %11 : vector<1x128xf32> to vector<16x128xf32>
    %13 = arith.addf %10, %12 : vector<16x128xf32>
    %14 = arith.mulf %13, %13 : vector<16x128xf32>
    %cst_12 = arith.constant dense<0.000000e+00> : vector<16xf32>
    %15 = vector.multi_reduction <add>, %14, %cst_12 [1] : vector<16x128xf32> to vector<16xf32>
    %16 = vector.shape_cast %15 : vector<16xf32> to vector<16x1xf32>
    %17 = math.rsqrt %16 : vector<16x1xf32>
    %18 = vector.broadcast %17 : vector<16x1xf32> to vector<16x128xf32>
    %19 = arith.mulf %13, %18 : vector<16x128xf32>
    %c0_13 = arith.constant 0 : index
    %c0_14 = arith.constant 0 : index
    %20 = vector.load %arg6[%c0_13, %c0_14] : memref<128x128xf32, #tpu.memory_space<vmem>>, vector<128x128xf32>
    %cst_15 = arith.constant dense<0.000000e+00> : vector<16x128xf32>
    %21 = tpu.matmul %1, %20, %cst_15 {dimension_numbers = #tpu.dot_dimension_numbers<[1], [0], [0], [1], [0, 0, 1, 1], [], []>} : vector<16x128xf32>, vector<128x128xf32>, vector<16x128xf32> -> vector<16x128xf32>
    %c0_16 = arith.constant 0 : index
    %c0_17 = arith.constant 0 : index
    %22 = vector.load %arg7[%c0_16, %c0_17] : memref<1x128xf32, #tpu.memory_space<vmem>>, vector<1x128xf32>
    %23 = vector.broadcast %22 : vector<1x128xf32> to vector<16x128xf32>
    %24 = arith.addf %21, %23 : vector<16x128xf32>
    %cst_18 = arith.constant 0.000000e+00 : f32
    %25 = vector.broadcast %cst_18 : f32 to vector<16x128xf32>
    %26 = arith.maximumf %24, %25 : vector<16x128xf32>
    %c0_19 = arith.constant 0 : index
    %c0_20 = arith.constant 0 : index
    %27 = vector.load %arg8[%c0_19, %c0_20] : memref<128x128xf32, #tpu.memory_space<vmem>>, vector<128x128xf32>
    %cst_21 = arith.constant dense<0.000000e+00> : vector<16x128xf32>
    %28 = tpu.matmul %26, %27, %cst_21 {dimension_numbers = #tpu.dot_dimension_numbers<[1], [0], [0], [1], [0, 0, 1, 1], [], []>} : vector<16x128xf32>, vector<128x128xf32>, vector<16x128xf32> -> vector<16x128xf32>
    %c0_22 = arith.constant 0 : index
    %c0_23 = arith.constant 0 : index
    %29 = vector.load %arg9[%c0_22, %c0_23] : memref<1x128xf32, #tpu.memory_space<vmem>>, vector<1x128xf32>
    %30 = vector.broadcast %29 : vector<1x128xf32> to vector<16x128xf32>
    %31 = arith.addf %28, %30 : vector<16x128xf32>
    %cst_24 = arith.constant 0.000000e+00 : f32
    %32 = vector.broadcast %cst_24 : f32 to vector<16x128xf32>
    %33 = arith.maximumf %31, %32 : vector<16x128xf32>
    %c0_25 = arith.constant 0 : index
    %c0_26 = arith.constant 0 : index
    %34 = vector.load %arg10[%c0_25, %c0_26] : memref<128x128xf32, #tpu.memory_space<vmem>>, vector<128x128xf32>
    %cst_27 = arith.constant dense<0.000000e+00> : vector<16x128xf32>
    %35 = tpu.matmul %33, %34, %cst_27 {dimension_numbers = #tpu.dot_dimension_numbers<[1], [0], [0], [1], [0, 0, 1, 1], [], []>} : vector<16x128xf32>, vector<128x128xf32>, vector<16x128xf32> -> vector<16x128xf32>
    %c0_28 = arith.constant 0 : index
    %c0_29 = arith.constant 0 : index
    %36 = vector.load %arg11[%c0_28, %c0_29] : memref<1x128xf32, #tpu.memory_space<vmem>>, vector<1x128xf32>
    %37 = vector.broadcast %36 : vector<1x128xf32> to vector<16x128xf32>
    %38 = arith.addf %35, %37 : vector<16x128xf32>
    %39 = vector.shape_cast %19 : vector<16x128xf32> to vector<2x8x128xf32>
    %40 = vector.shape_cast %38 : vector<16x128xf32> to vector<2x8x128xf32>
    %cst_30 = arith.constant dense<0.000000e+00> : vector<2x128x128xf32>
    %41 = tpu.matmul %39, %40, %cst_30 {dimension_numbers = #tpu.dot_dimension_numbers<[1], [1], [2], [2], [0, 0, 0, 2, 1, 2], [0], [0]>} : vector<2x8x128xf32>, vector<2x8x128xf32>, vector<2x128x128xf32> -> vector<2x128x128xf32>
    %cst_31 = arith.constant dense<0.000000e+00> : vector<2x128xf32>
    %42 = vector.multi_reduction <add>, %40, %cst_31 [1] : vector<2x8x128xf32> to vector<2x128xf32>
    %43 = vector.shape_cast %42 : vector<2x128xf32> to vector<2x1x128xf32>
    %cst_32 = arith.constant 8.000000e+00 : f32
    %44 = vector.broadcast %cst_32 : f32 to vector<2x1x128xf32>
    %45 = arith.divf %43, %44 : vector<2x1x128xf32>
    %cst_33 = arith.constant dense<0.000000e+00> : vector<2x8x128xf32>
    %46 = tpu.matmul %39, %41, %cst_33 {dimension_numbers = #tpu.dot_dimension_numbers<[2], [1], [1], [2], [0, 0, 0, 1, 1, 2], [0], [0]>} : vector<2x8x128xf32>, vector<2x128x128xf32>, vector<2x8x128xf32> -> vector<2x8x128xf32>
    %47 = vector.broadcast %45 : vector<2x1x128xf32> to vector<2x8x128xf32>
    %48 = arith.addf %46, %47 : vector<2x8x128xf32>
    %c0_34 = arith.constant 0 : index
    %c0_35 = arith.constant 0 : index
    %c0_36 = arith.constant 0 : index
    %49 = vector.load %arg12[%c0_34, %c0_35, %c0_36] : memref<2x8x128xf32, #tpu.memory_space<vmem>>, vector<2x8x128xf32>
    tpu.vector_store %arg12[%c0_34, %c0_35, %c0_36], %48 {strides = array<i32>} : memref<2x8x128xf32, #tpu.memory_space<vmem>>, vector<2x8x128xf32>,
    return
  }
  func.func @transform_0(%arg0: i32) -> (i32, i32, i32) {
    %c0_i32 = arith.constant 0 : i32
    %c0_i32_0 = arith.constant 0 : i32
    %c0_i32_1 = arith.constant 0 : i32
    return %arg0, %c0_i32, %c0_i32_0 : i32, i32, i32
  }
  func.func @transform_1(%arg0: i32) -> (i32, i32) {
    %c0_i32 = arith.constant 0 : i32
    %c0_i32_0 = arith.constant 0 : i32
    %c0_i32_1 = arith.constant 0 : i32
    return %c0_i32, %c0_i32_0 : i32, i32
  }
  func.func @transform_2(%arg0: i32) -> (i32, i32) {
    %c0_i32 = arith.constant 0 : i32
    %c0_i32_0 = arith.constant 0 : i32
    %c0_i32_1 = arith.constant 0 : i32
    return %c0_i32, %c0_i32_0 : i32, i32
  }
  func.func @transform_3(%arg0: i32) -> (i32, i32) {
    %c0_i32 = arith.constant 0 : i32
    %c0_i32_0 = arith.constant 0 : i32
    %c0_i32_1 = arith.constant 0 : i32
    return %c0_i32, %c0_i32_0 : i32, i32
  }
  func.func @transform_4(%arg0: i32) -> (i32, i32) {
    %c0_i32 = arith.constant 0 : i32
    %c0_i32_0 = arith.constant 0 : i32
    %c0_i32_1 = arith.constant 0 : i32
    return %c0_i32, %c0_i32_0 : i32, i32
  }
  func.func @transform_5(%arg0: i32) -> (i32, i32) {
    %c0_i32 = arith.constant 0 : i32
    %c0_i32_0 = arith.constant 0 : i32
    %c0_i32_1 = arith.constant 0 : i32
    return %c0_i32, %c0_i32_0 : i32, i32
  }
  func.func @transform_6(%arg0: i32) -> (i32, i32) {
    %c0_i32 = arith.constant 0 : i32
    %c0_i32_0 = arith.constant 0 : i32
    %c0_i32_1 = arith.constant 0 : i32
    return %c0_i32, %c0_i32_0 : i32, i32
  }
  func.func @transform_7(%arg0: i32) -> (i32, i32) {
    %c0_i32 = arith.constant 0 : i32
    %c0_i32_0 = arith.constant 0 : i32
    %c0_i32_1 = arith.constant 0 : i32
    return %c0_i32, %c0_i32_0 : i32, i32
  }
  func.func @transform_8(%arg0: i32) -> (i32, i32) {
    %c0_i32 = arith.constant 0 : i32
    %c0_i32_0 = arith.constant 0 : i32
    %c0_i32_1 = arith.constant 0 : i32
    return %c0_i32, %c0_i32_0 : i32, i32
  }
  func.func @transform_9(%arg0: i32) -> (i32, i32) {
    %c0_i32 = arith.constant 0 : i32
    %c0_i32_0 = arith.constant 0 : i32
    %c0_i32_1 = arith.constant 0 : i32
    return %c0_i32, %c0_i32_0 : i32, i32
  }
  func.func @transform_10(%arg0: i32) -> (i32, i32) {
    %c0_i32 = arith.constant 0 : i32
    %c0_i32_0 = arith.constant 0 : i32
    %c0_i32_1 = arith.constant 0 : i32
    return %c0_i32, %c0_i32_0 : i32, i32
  }
  func.func @transform_11(%arg0: i32) -> (i32, i32, i32) {
    %c0_i32 = arith.constant 0 : i32
    %c0_i32_0 = arith.constant 0 : i32
    %c0_i32_1 = arith.constant 0 : i32
    return %arg0, %c0_i32, %c0_i32_0 : i32, i32, i32
  }
}

module attributes {stable_mosaic.version = 11 : i64} {
  func.func @kernel(%arg0: i32, %arg1: memref<2x8x128xf32, #tpu.memory_space<vmem>>, %arg2: memref<128x128xf32, #tpu.memory_space<vmem>>, %arg3: memref<1x128xf32, #tpu.memory_space<vmem>>, %arg4: memref<128x128xf32, #tpu.memory_space<vmem>>, %arg5: memref<1x128xf32, #tpu.memory_space<vmem>>, %arg6: memref<128x128xf32, #tpu.memory_space<vmem>>, %arg7: memref<1x128xf32, #tpu.memory_space<vmem>>, %arg8: memref<128x128xf32, #tpu.memory_space<vmem>>, %arg9: memref<1x128xf32, #tpu.memory_space<vmem>>, %arg10: memref<128x128xf32, #tpu.memory_space<vmem>>, %arg11: memref<1x128xf32, #tpu.memory_space<vmem>>, %arg12: memref<2x8x128xf32, #tpu.memory_space<vmem>>) attributes {dimension_semantics = [#tpu.dimension_semantics<parallel>], iteration_bounds = array<i64: 1>, scalar_prefetch = 0 : i64, scratch_operands = 0 : i64, tpu.core_type = #tpu.core_type<tc>, window_params = [{transform_indices = @transform_0, window_bounds = array<i64: 2, 8, 128>}, {pipeline_mode = #tpu.pipeline_mode<synchronous>, transform_indices = @transform_1, window_bounds = array<i64: 128, 128>}, {pipeline_mode = #tpu.pipeline_mode<synchronous>, transform_indices = @transform_2, window_bounds = array<i64: 1, 128>}, {pipeline_mode = #tpu.pipeline_mode<synchronous>, transform_indices = @transform_3, window_bounds = array<i64: 128, 128>}, {pipeline_mode = #tpu.pipeline_mode<synchronous>, transform_indices = @transform_4, window_bounds = array<i64: 1, 128>}, {pipeline_mode = #tpu.pipeline_mode<synchronous>, transform_indices = @transform_5, window_bounds = array<i64: 128, 128>}, {pipeline_mode = #tpu.pipeline_mode<synchronous>, transform_indices = @transform_6, window_bounds = array<i64: 1, 128>}, {pipeline_mode = #tpu.pipeline_mode<synchronous>, transform_indices = @transform_7, window_bounds = array<i64: 128, 128>}, {pipeline_mode = #tpu.pipeline_mode<synchronous>, transform_indices = @transform_8, window_bounds = array<i64: 1, 128>}, {pipeline_mode = #tpu.pipeline_mode<synchronous>, transform_indices = @transform_9, window_bounds = array<i64: 128, 128>}, {pipeline_mode = #tpu.pipeline_mode<synchronous>, transform_indices = @transform_10, window_bounds = array<i64: 1, 128>}, {transform_indices = @transform_11, window_bounds = array<i64: 2, 8, 128>}]} {
    %c0 = arith.constant 0 : index
    %c0_0 = arith.constant 0 : index
    %c0_1 = arith.constant 0 : index
    %0 = vector.load %arg1[%c0, %c0_0, %c0_1] : memref<2x8x128xf32, #tpu.memory_space<vmem>>, vector<2x8x128xf32>
    %1 = vector.shape_cast %0 : vector<2x8x128xf32> to vector<16x128xf32>
    %c0_2 = arith.constant 0 : index
    %c0_3 = arith.constant 0 : index
    %2 = vector.load %arg2[%c0_2, %c0_3] : memref<128x128xf32, #tpu.memory_space<vmem>>, vector<128x128xf32>
    %cst = arith.constant dense<0.000000e+00> : vector<16x128xf32>
    %3 = tpu.matmul %1, %2, %cst {dimension_numbers = #tpu.dot_dimension_numbers<[1], [0], [0], [1], [0, 0, 1, 1], [], []>} : vector<16x128xf32>, vector<128x128xf32>, vector<16x128xf32> -> vector<16x128xf32>
    %c0_4 = arith.constant 0 : index
    %c0_5 = arith.constant 0 : index
    %4 = vector.load %arg3[%c0_4, %c0_5] : memref<1x128xf32, #tpu.memory_space<vmem>>, vector<1x128xf32>
    %5 = vector.broadcast %4 : vector<1x128xf32> to vector<16x128xf32>
    %6 = arith.addf %3, %5 : vector<16x128xf32>
    %cst_6 = arith.constant 0.000000e+00 : f32
    %7 = vector.broadcast %cst_6 : f32 to vector<16x128xf32>
    %8 = arith.maximumf %6, %7 : vector<16x128xf32>
    %c0_7 = arith.constant 0 : index
    %c0_8 = arith.constant 0 : index
    %9 = vector.load %arg4[%c0_7, %c0_8] : memref<128x128xf32, #tpu.memory_space<vmem>>, vector<128x128xf32>
    %cst_9 = arith.constant dense<0.000000e+00> : vector<16x128xf32>
    %10 = tpu.matmul %8, %9, %cst_9 {dimension_numbers = #tpu.dot_dimension_numbers<[1], [0], [0], [1], [0, 0, 1, 1], [], []>} : vector<16x128xf32>, vector<128x128xf32>, vector<16x128xf32> -> vector<16x128xf32>
    %c0_10 = arith.constant 0 : index
    %c0_11 = arith.constant 0 : index
    %11 = vector.load %arg5[%c0_10, %c0_11] : memref<1x128xf32, #tpu.memory_space<vmem>>, vector<1x128xf32>
    %12 = vector.broadcast %11 : vector<1x128xf32> to vector<16x128xf32>
    %13 = arith.addf %10, %12 : vector<16x128xf32>
    %14 = arith.mulf %13, %13 : vector<16x128xf32>
    %cst_12 = arith.constant dense<0.000000e+00> : vector<16xf32>
    %15 = vector.multi_reduction <add>, %14, %cst_12 [1] : vector<16x128xf32> to vector<16xf32>
    %16 = vector.shape_cast %15 : vector<16xf32> to vector<16x1xf32>
    %17 = math.rsqrt %16 : vector<16x1xf32>
    %18 = vector.broadcast %17 : vector<16x1xf32> to vector<16x128xf32>
    %19 = arith.mulf %13, %18 : vector<16x128xf32>
    %c0_13 = arith.constant 0 : index
    %c0_14 = arith.constant 0 : index
    %20 = vector.load %arg6[%c0_13, %c0_14] : memref<128x128xf32, #tpu.memory_space<vmem>>, vector<128x128xf32>
    %cst_15 = arith.constant dense<0.000000e+00> : vector<16x128xf32>
    %21 = tpu.matmul %1, %20, %cst_15 {dimension_numbers = #tpu.dot_dimension_numbers<[1], [0], [0], [1], [0, 0, 1, 1], [], []>} : vector<16x128xf32>, vector<128x128xf32>, vector<16x128xf32> -> vector<16x128xf32>
    %c0_16 = arith.constant 0 : index
    %c0_17 = arith.constant 0 : index
    %22 = vector.load %arg7[%c0_16, %c0_17] : memref<1x128xf32, #tpu.memory_space<vmem>>, vector<1x128xf32>
    %23 = vector.broadcast %22 : vector<1x128xf32> to vector<16x128xf32>
    %24 = arith.addf %21, %23 : vector<16x128xf32>
    %cst_18 = arith.constant 0.000000e+00 : f32
    %25 = vector.broadcast %cst_18 : f32 to vector<16x128xf32>
    %26 = arith.maximumf %24, %25 : vector<16x128xf32>
    %c0_19 = arith.constant 0 : index
    %c0_20 = arith.constant 0 : index
    %27 = vector.load %arg8[%c0_19, %c0_20] : memref<128x128xf32, #tpu.memory_space<vmem>>, vector<128x128xf32>
    %cst_21 = arith.constant dense<0.000000e+00> : vector<16x128xf32>
    %28 = tpu.matmul %26, %27, %cst_21 {dimension_numbers = #tpu.dot_dimension_numbers<[1], [0], [0], [1], [0, 0, 1, 1], [], []>} : vector<16x128xf32>, vector<128x128xf32>, vector<16x128xf32> -> vector<16x128xf32>
    %c0_22 = arith.constant 0 : index
    %c0_23 = arith.constant 0 : index
    %29 = vector.load %arg9[%c0_22, %c0_23] : memref<1x128xf32, #tpu.memory_space<vmem>>, vector<1x128xf32>
    %30 = vector.broadcast %29 : vector<1x128xf32> to vector<16x128xf32>
    %31 = arith.addf %28, %30 : vector<16x128xf32>
    %cst_24 = arith.constant 0.000000e+00 : f32
    %32 = vector.broadcast %cst_24 : f32 to vector<16x128xf32>
    %33 = arith.maximumf %31, %32 : vector<16x128xf32>
    %c0_25 = arith.constant 0 : index
    %c0_26 = arith.constant 0 : index
    %34 = vector.load %arg10[%c0_25, %c0_26] : memref<128x128xf32, #tpu.memory_space<vmem>>, vector<128x128xf32>
    %cst_27 = arith.constant dense<0.000000e+00> : vector<16x128xf32>
    %35 = tpu.matmul %33, %34, %cst_27 {dimension_numbers = #tpu.dot_dimension_numbers<[1], [0], [0], [1], [0, 0, 1, 1], [], []>} : vector<16x128xf32>, vector<128x128xf32>, vector<16x128xf32> -> vector<16x128xf32>
    %c0_28 = arith.constant 0 : index
    %c0_29 = arith.constant 0 : index
    %36 = vector.load %arg11[%c0_28, %c0_29] : memref<1x128xf32, #tpu.memory_space<vmem>>, vector<1x128xf32>
    %37 = vector.broadcast %36 : vector<1x128xf32> to vector<16x128xf32>
    %38 = arith.addf %35, %37 : vector<16x128xf32>
    %39 = vector.shape_cast %19 : vector<16x128xf32> to vector<2x8x128xf32>
    %40 = vector.shape_cast %38 : vector<16x128xf32> to vector<2x8x128xf32>
    %cst_30 = arith.constant dense<0.000000e+00> : vector<2x8x8xf32>
    %41 = tpu.matmul %39, %39, %cst_30 {dimension_numbers = #tpu.dot_dimension_numbers<[2], [2], [1], [1], [0, 0, 0, 1, 1, 1], [0], [0]>} : vector<2x8x128xf32>, vector<2x8x128xf32>, vector<2x8x8xf32> -> vector<2x8x8xf32>
    %cst_31 = arith.constant 1.250000e-01 : f32
    %42 = vector.broadcast %cst_31 : f32 to vector<2x8x8xf32>
    %43 = arith.addf %41, %42 : vector<2x8x8xf32>
    %cst_32 = arith.constant dense<0.000000e+00> : vector<2x8x128xf32>
    %44 = tpu.matmul %43, %40, %cst_32 {dimension_numbers = #tpu.dot_dimension_numbers<[2], [1], [1], [2], [0, 0, 0, 1, 1, 2], [0], [0]>} : vector<2x8x8xf32>, vector<2x8x128xf32>, vector<2x8x128xf32> -> vector<2x8x128xf32>
    %c0_33 = arith.constant 0 : index
    %c0_34 = arith.constant 0 : index
    %c0_35 = arith.constant 0 : index
    %45 = vector.load %arg12[%c0_33, %c0_34, %c0_35] : memref<2x8x128xf32, #tpu.memory_space<vmem>>, vector<2x8x128xf32>
    tpu.vector_store %arg12[%c0_33, %c0_34, %c0_35], %44 {strides = array<i32>} : memref<2x8x128xf32, #tpu.memory_space<vmem>>, vector<2x8x128xf32>,
    return
  }
  func.func @transform_0(%arg0: i32) -> (i32, i32, i32) {
    %c0_i32 = arith.constant 0 : i32
    %c0_i32_0 = arith.constant 0 : i32
    %c0_i32_1 = arith.constant 0 : i32
    return %arg0, %c0_i32, %c0_i32_0 : i32, i32, i32
  }
  func.func @transform_1(%arg0: i32) -> (i32, i32) {
    %c0_i32 = arith.constant 0 : i32
    %c0_i32_0 = arith.constant 0 : i32
    %c0_i32_1 = arith.constant 0 : i32
    return %c0_i32, %c0_i32_0 : i32, i32
  }
  func.func @transform_2(%arg0: i32) -> (i32, i32) {
    %c0_i32 = arith.constant 0 : i32
    %c0_i32_0 = arith.constant 0 : i32
    %c0_i32_1 = arith.constant 0 : i32
    return %c0_i32, %c0_i32_0 : i32, i32
  }
  func.func @transform_3(%arg0: i32) -> (i32, i32) {
    %c0_i32 = arith.constant 0 : i32
    %c0_i32_0 = arith.constant 0 : i32
    %c0_i32_1 = arith.constant 0 : i32
    return %c0_i32, %c0_i32_0 : i32, i32
  }
  func.func @transform_4(%arg0: i32) -> (i32, i32) {
    %c0_i32 = arith.constant 0 : i32
    %c0_i32_0 = arith.constant 0 : i32
    %c0_i32_1 = arith.constant 0 : i32
    return %c0_i32, %c0_i32_0 : i32, i32
  }
  func.func @transform_5(%arg0: i32) -> (i32, i32) {
    %c0_i32 = arith.constant 0 : i32
    %c0_i32_0 = arith.constant 0 : i32
    %c0_i32_1 = arith.constant 0 : i32
    return %c0_i32, %c0_i32_0 : i32, i32
  }
  func.func @transform_6(%arg0: i32) -> (i32, i32) {
    %c0_i32 = arith.constant 0 : i32
    %c0_i32_0 = arith.constant 0 : i32
    %c0_i32_1 = arith.constant 0 : i32
    return %c0_i32, %c0_i32_0 : i32, i32
  }
  func.func @transform_7(%arg0: i32) -> (i32, i32) {
    %c0_i32 = arith.constant 0 : i32
    %c0_i32_0 = arith.constant 0 : i32
    %c0_i32_1 = arith.constant 0 : i32
    return %c0_i32, %c0_i32_0 : i32, i32
  }
  func.func @transform_8(%arg0: i32) -> (i32, i32) {
    %c0_i32 = arith.constant 0 : i32
    %c0_i32_0 = arith.constant 0 : i32
    %c0_i32_1 = arith.constant 0 : i32
    return %c0_i32, %c0_i32_0 : i32, i32
  }
  func.func @transform_9(%arg0: i32) -> (i32, i32) {
    %c0_i32 = arith.constant 0 : i32
    %c0_i32_0 = arith.constant 0 : i32
    %c0_i32_1 = arith.constant 0 : i32
    return %c0_i32, %c0_i32_0 : i32, i32
  }
  func.func @transform_10(%arg0: i32) -> (i32, i32) {
    %c0_i32 = arith.constant 0 : i32
    %c0_i32_0 = arith.constant 0 : i32
    %c0_i32_1 = arith.constant 0 : i32
    return %c0_i32, %c0_i32_0 : i32, i32
  }
  func.func @transform_11(%arg0: i32) -> (i32, i32, i32) {
    %c0_i32 = arith.constant 0 : i32
    %c0_i32_0 = arith.constant 0 : i32
    %c0_i32_1 = arith.constant 0 : i32
    return %arg0, %c0_i32, %c0_i32_0 : i32, i32, i32
  }
}

module attributes {stable_mosaic.version = 11 : i64} {
  func.func @kernel(%arg0: i32, %arg1: memref<2x8x128xf32, #tpu.memory_space<vmem>>, %arg2: memref<128x128xf32, #tpu.memory_space<vmem>>, %arg3: memref<1x128xf32, #tpu.memory_space<vmem>>, %arg4: memref<128x128xf32, #tpu.memory_space<vmem>>, %arg5: memref<1x128xf32, #tpu.memory_space<vmem>>, %arg6: memref<128x128xf32, #tpu.memory_space<vmem>>, %arg7: memref<1x128xf32, #tpu.memory_space<vmem>>, %arg8: memref<128x128xf32, #tpu.memory_space<vmem>>, %arg9: memref<1x128xf32, #tpu.memory_space<vmem>>, %arg10: memref<128x128xf32, #tpu.memory_space<vmem>>, %arg11: memref<1x128xf32, #tpu.memory_space<vmem>>, %arg12: memref<2x8x128xf32, #tpu.memory_space<vmem>>) attributes {dimension_semantics = [#tpu.dimension_semantics<parallel>], iteration_bounds = array<i64: 1>, scalar_prefetch = 0 : i64, scratch_operands = 0 : i64, tpu.core_type = #tpu.core_type<tc>, window_params = [{transform_indices = @transform_0, window_bounds = array<i64: 2, 8, 128>}, {pipeline_mode = #tpu.pipeline_mode<synchronous>, transform_indices = @transform_1, window_bounds = array<i64: 128, 128>}, {pipeline_mode = #tpu.pipeline_mode<synchronous>, transform_indices = @transform_2, window_bounds = array<i64: 1, 128>}, {pipeline_mode = #tpu.pipeline_mode<synchronous>, transform_indices = @transform_3, window_bounds = array<i64: 128, 128>}, {pipeline_mode = #tpu.pipeline_mode<synchronous>, transform_indices = @transform_4, window_bounds = array<i64: 1, 128>}, {pipeline_mode = #tpu.pipeline_mode<synchronous>, transform_indices = @transform_5, window_bounds = array<i64: 128, 128>}, {pipeline_mode = #tpu.pipeline_mode<synchronous>, transform_indices = @transform_6, window_bounds = array<i64: 1, 128>}, {pipeline_mode = #tpu.pipeline_mode<synchronous>, transform_indices = @transform_7, window_bounds = array<i64: 128, 128>}, {pipeline_mode = #tpu.pipeline_mode<synchronous>, transform_indices = @transform_8, window_bounds = array<i64: 1, 128>}, {pipeline_mode = #tpu.pipeline_mode<synchronous>, transform_indices = @transform_9, window_bounds = array<i64: 128, 128>}, {pipeline_mode = #tpu.pipeline_mode<synchronous>, transform_indices = @transform_10, window_bounds = array<i64: 1, 128>}, {transform_indices = @transform_11, window_bounds = array<i64: 2, 8, 128>}]} {
    %c0 = arith.constant 0 : index
    %c0_0 = arith.constant 0 : index
    %c0_1 = arith.constant 0 : index
    %0 = vector.load %arg1[%c0, %c0_0, %c0_1] : memref<2x8x128xf32, #tpu.memory_space<vmem>>, vector<2x8x128xf32>
    %1 = vector.shape_cast %0 : vector<2x8x128xf32> to vector<16x128xf32>
    %c0_2 = arith.constant 0 : index
    %c0_3 = arith.constant 0 : index
    %2 = vector.load %arg2[%c0_2, %c0_3] : memref<128x128xf32, #tpu.memory_space<vmem>>, vector<128x128xf32>
    %cst = arith.constant dense<0.000000e+00> : vector<16x128xf32>
    %3 = tpu.matmul %1, %2, %cst {dimension_numbers = #tpu.dot_dimension_numbers<[1], [0], [0], [1], [0, 0, 1, 1], [], []>} : vector<16x128xf32>, vector<128x128xf32>, vector<16x128xf32> -> vector<16x128xf32>
    %c0_4 = arith.constant 0 : index
    %c0_5 = arith.constant 0 : index
    %4 = vector.load %arg3[%c0_4, %c0_5] : memref<1x128xf32, #tpu.memory_space<vmem>>, vector<1x128xf32>
    %5 = vector.broadcast %4 : vector<1x128xf32> to vector<16x128xf32>
    %6 = arith.addf %3, %5 : vector<16x128xf32>
    %cst_6 = arith.constant 0.000000e+00 : f32
    %7 = vector.broadcast %cst_6 : f32 to vector<16x128xf32>
    %8 = arith.maximumf %6, %7 : vector<16x128xf32>
    %c0_7 = arith.constant 0 : index
    %c0_8 = arith.constant 0 : index
    %9 = vector.load %arg4[%c0_7, %c0_8] : memref<128x128xf32, #tpu.memory_space<vmem>>, vector<128x128xf32>
    %cst_9 = arith.constant dense<0.000000e+00> : vector<16x128xf32>
    %10 = tpu.matmul %8, %9, %cst_9 {dimension_numbers = #tpu.dot_dimension_numbers<[1], [0], [0], [1], [0, 0, 1, 1], [], []>} : vector<16x128xf32>, vector<128x128xf32>, vector<16x128xf32> -> vector<16x128xf32>
    %c0_10 = arith.constant 0 : index
    %c0_11 = arith.constant 0 : index
    %11 = vector.load %arg5[%c0_10, %c0_11] : memref<1x128xf32, #tpu.memory_space<vmem>>, vector<1x128xf32>
    %12 = vector.broadcast %11 : vector<1x128xf32> to vector<16x128xf32>
    %13 = arith.addf %10, %12 : vector<16x128xf32>
    %14 = arith.mulf %13, %13 : vector<16x128xf32>
    %cst_12 = arith.constant dense<0.000000e+00> : vector<16xf32>
    %15 = vector.multi_reduction <add>, %14, %cst_12 [1] : vector<16x128xf32> to vector<16xf32>
    %16 = vector.shape_cast %15 : vector<16xf32> to vector<16x1xf32>
    %17 = math.rsqrt %16 : vector<16x1xf32>
    %18 = vector.broadcast %17 : vector<16x1xf32> to vector<16x128xf32>
    %19 = arith.mulf %13, %18 : vector<16x128xf32>
    %c0_13 = arith.constant 0 : index
    %c0_14 = arith.constant 0 : index
    %20 = vector.load %arg6[%c0_13, %c0_14] : memref<128x128xf32, #tpu.memory_space<vmem>>, vector<128x128xf32>
    %cst_15 = arith.constant dense<0.000000e+00> : vector<16x128xf32>
    %21 = tpu.matmul %1, %20, %cst_15 {dimension_numbers = #tpu.dot_dimension_numbers<[1], [0], [0], [1], [0, 0, 1, 1], [], []>} : vector<16x128xf32>, vector<128x128xf32>, vector<16x128xf32> -> vector<16x128xf32>
    %c0_16 = arith.constant 0 : index
    %c0_17 = arith.constant 0 : index
    %22 = vector.load %arg7[%c0_16, %c0_17] : memref<1x128xf32, #tpu.memory_space<vmem>>, vector<1x128xf32>
    %23 = vector.broadcast %22 : vector<1x128xf32> to vector<16x128xf32>
    %24 = arith.addf %21, %23 : vector<16x128xf32>
    %cst_18 = arith.constant 0.000000e+00 : f32
    %25 = vector.broadcast %cst_18 : f32 to vector<16x128xf32>
    %26 = arith.maximumf %24, %25 : vector<16x128xf32>
    %c0_19 = arith.constant 0 : index
    %c0_20 = arith.constant 0 : index
    %27 = vector.load %arg8[%c0_19, %c0_20] : memref<128x128xf32, #tpu.memory_space<vmem>>, vector<128x128xf32>
    %cst_21 = arith.constant dense<0.000000e+00> : vector<16x128xf32>
    %28 = tpu.matmul %26, %27, %cst_21 {dimension_numbers = #tpu.dot_dimension_numbers<[1], [0], [0], [1], [0, 0, 1, 1], [], []>} : vector<16x128xf32>, vector<128x128xf32>, vector<16x128xf32> -> vector<16x128xf32>
    %c0_22 = arith.constant 0 : index
    %c0_23 = arith.constant 0 : index
    %29 = vector.load %arg9[%c0_22, %c0_23] : memref<1x128xf32, #tpu.memory_space<vmem>>, vector<1x128xf32>
    %30 = vector.broadcast %29 : vector<1x128xf32> to vector<16x128xf32>
    %31 = arith.addf %28, %30 : vector<16x128xf32>
    %cst_24 = arith.constant 0.000000e+00 : f32
    %32 = vector.broadcast %cst_24 : f32 to vector<16x128xf32>
    %33 = arith.maximumf %31, %32 : vector<16x128xf32>
    %c0_25 = arith.constant 0 : index
    %c0_26 = arith.constant 0 : index
    %34 = vector.load %arg10[%c0_25, %c0_26] : memref<128x128xf32, #tpu.memory_space<vmem>>, vector<128x128xf32>
    %cst_27 = arith.constant dense<0.000000e+00> : vector<16x128xf32>
    %35 = tpu.matmul %33, %34, %cst_27 {dimension_numbers = #tpu.dot_dimension_numbers<[1], [0], [0], [1], [0, 0, 1, 1], [], []>} : vector<16x128xf32>, vector<128x128xf32>, vector<16x128xf32> -> vector<16x128xf32>
    %c0_28 = arith.constant 0 : index
    %c0_29 = arith.constant 0 : index
    %36 = vector.load %arg11[%c0_28, %c0_29] : memref<1x128xf32, #tpu.memory_space<vmem>>, vector<1x128xf32>
    %37 = vector.broadcast %36 : vector<1x128xf32> to vector<16x128xf32>
    %38 = arith.addf %35, %37 : vector<16x128xf32>
    %39 = vector.shape_cast %19 : vector<16x128xf32> to vector<2x8x128xf32>
    %40 = vector.shape_cast %38 : vector<16x128xf32> to vector<2x8x128xf32>
    %cst_30 = arith.constant dense<0.000000e+00> : vector<2x8x8xf32>
    %41 = tpu.matmul %39, %39, %cst_30 {dimension_numbers = #tpu.dot_dimension_numbers<[2], [2], [1], [1], [0, 0, 0, 1, 1, 1], [0], [0]>} : vector<2x8x128xf32>, vector<2x8x128xf32>, vector<2x8x8xf32> -> vector<2x8x8xf32>
    %cst_31 = arith.constant 1.250000e-01 : f32
    %42 = vector.broadcast %cst_31 : f32 to vector<2x8x8xf32>
    %43 = arith.addf %41, %42 : vector<2x8x8xf32>
    %cst_32 = arith.constant dense<0.000000e+00> : vector<2x8x128xf32>
    %44 = tpu.matmul %43, %40, %cst_32 {dimension_numbers = #tpu.dot_dimension_numbers<[2], [1], [1], [2], [0, 0, 0, 1, 1, 2], [0], [0]>} : vector<2x8x8xf32>, vector<2x8x128xf32>, vector<2x8x128xf32> -> vector<2x8x128xf32>
    %c0_33 = arith.constant 0 : index
    %c0_34 = arith.constant 0 : index
    %c0_35 = arith.constant 0 : index
    %45 = vector.load %arg12[%c0_33, %c0_34, %c0_35] : memref<2x8x128xf32, #tpu.memory_space<vmem>>, vector<2x8x128xf32>
    tpu.vector_store %arg12[%c0_33, %c0_34, %c0_35], %44 {strides = array<i32>} : memref<2x8x128xf32, #tpu.memory_space<vmem>>, vector<2x8x128xf32>,
    return
  }
  func.func @transform_0(%arg0: i32) -> (i32, i32, i32) {
    %c0_i32 = arith.constant 0 : i32
    %c0_i32_0 = arith.constant 0 : i32
    %c0_i32_1 = arith.constant 0 : i32
    return %arg0, %c0_i32, %c0_i32_0 : i32, i32, i32
  }
  func.func @transform_1(%arg0: i32) -> (i32, i32) {
    %c0_i32 = arith.constant 0 : i32
    %c0_i32_0 = arith.constant 0 : i32
    %c0_i32_1 = arith.constant 0 : i32
    return %c0_i32, %c0_i32_0 : i32, i32
  }
  func.func @transform_2(%arg0: i32) -> (i32, i32) {
    %c0_i32 = arith.constant 0 : i32
    %c0_i32_0 = arith.constant 0 : i32
    %c0_i32_1 = arith.constant 0 : i32
    return %c0_i32, %c0_i32_0 : i32, i32
  }
  func.func @transform_3(%arg0: i32) -> (i32, i32) {
    %c0_i32 = arith.constant 0 : i32
    %c0_i32_0 = arith.constant 0 : i32
    %c0_i32_1 = arith.constant 0 : i32
    return %c0_i32, %c0_i32_0 : i32, i32
  }
  func.func @transform_4(%arg0: i32) -> (i32, i32) {
    %c0_i32 = arith.constant 0 : i32
    %c0_i32_0 = arith.constant 0 : i32
    %c0_i32_1 = arith.constant 0 : i32
    return %c0_i32, %c0_i32_0 : i32, i32
  }
  func.func @transform_5(%arg0: i32) -> (i32, i32) {
    %c0_i32 = arith.constant 0 : i32
    %c0_i32_0 = arith.constant 0 : i32
    %c0_i32_1 = arith.constant 0 : i32
    return %c0_i32, %c0_i32_0 : i32, i32
  }
  func.func @transform_6(%arg0: i32) -> (i32, i32) {
    %c0_i32 = arith.constant 0 : i32
    %c0_i32_0 = arith.constant 0 : i32
    %c0_i32_1 = arith.constant 0 : i32
    return %c0_i32, %c0_i32_0 : i32, i32
  }
  func.func @transform_7(%arg0: i32) -> (i32, i32) {
    %c0_i32 = arith.constant 0 : i32
    %c0_i32_0 = arith.constant 0 : i32
    %c0_i32_1 = arith.constant 0 : i32
    return %c0_i32, %c0_i32_0 : i32, i32
  }
  func.func @transform_8(%arg0: i32) -> (i32, i32) {
    %c0_i32 = arith.constant 0 : i32
    %c0_i32_0 = arith.constant 0 : i32
    %c0_i32_1 = arith.constant 0 : i32
    return %c0_i32, %c0_i32_0 : i32, i32
  }
  func.func @transform_9(%arg0: i32) -> (i32, i32) {
    %c0_i32 = arith.constant 0 : i32
    %c0_i32_0 = arith.constant 0 : i32
    %c0_i32_1 = arith.constant 0 : i32
    return %c0_i32, %c0_i32_0 : i32, i32
  }
  func.func @transform_10(%arg0: i32) -> (i32, i32) {
    %c0_i32 = arith.constant 0 : i32
    %c0_i32_0 = arith.constant 0 : i32
    %c0_i32_1 = arith.constant 0 : i32
    return %c0_i32, %c0_i32_0 : i32, i32
  }
  func.func @transform_11(%arg0: i32) -> (i32, i32, i32) {
    %c0_i32 = arith.constant 0 : i32
    %c0_i32_0 = arith.constant 0 : i32
    %c0_i32_1 = arith.constant 0 : i32
    return %arg0, %c0_i32, %c0_i32_0 : i32, i32, i32
  }
}

</mosaic_0001>

<llo_original>
// kernel: tpu_custom_call.1
$region0: #{tpu_custom_call.1}
  #allocation0 [shape = 'u32[]', space=smem, size = 0x4, offset = 0x4, fixed_abs, tag = 'smem constant byte address 0x4 - core index']
  #allocation1 [shape = 'u32[72,128]{1,0:T(1,128)}', space=vmem, size = 0x9000, scoped, tag = 'internal scratch']
  %s0 = inlined_call_operand.hbm [shape: f32[2,8,128], index: 0, kind: input, shape index: {}]
  %s1 = inlined_call_operand.hbm [shape: f32[128,128], index: 1, kind: input, shape index: {}]
  %s2 = inlined_call_operand.vmem [shape: f32[1,128], index: 2, kind: input, shape index: {}]
  %s3 = inlined_call_operand.hbm [shape: f32[128,128], index: 3, kind: input, shape index: {}]
  %s4 = inlined_call_operand.vmem [shape: f32[1,128], index: 4, kind: input, shape index: {}]
  %s5 = inlined_call_operand.hbm [shape: f32[128,128], index: 5, kind: input, shape index: {}]
  %s6 = inlined_call_operand.vmem [shape: f32[1,128], index: 6, kind: input, shape index: {}]
  %s7 = inlined_call_operand.hbm [shape: f32[128,128], index: 7, kind: input, shape index: {}]
  %s8 = inlined_call_operand.vmem [shape: f32[1,128], index: 8, kind: input, shape index: {}]
  %s9 = inlined_call_operand.hbm [shape: f32[128,128], index: 9, kind: input, shape index: {}]
  %s10 = inlined_call_operand.vmem [shape: f32[1,128], index: 10, kind: input, shape index: {}]
  %s11 = inlined_call_operand.hbm [shape: f32[2,8,128], index: 11, kind: output, shape index: {}]
  %s12 = sld [smem:[#allocation0]]
  $region78: #{tpu_custom_call.1} parent=0
    _
  %s14 = ssub.s32 1, %s12
  %s15 = scalar_select 0, %s14, %s12
  $region1: #{tpu_custom_call.1} parent=0
    #allocation2 [shape = 'u8[8192]{0}', space=vmem, size = 0x2000, scoped, tag = 'input window, operand 0, single buffered']
    #allocation3 [shape = 's32[1]{0}', space=sflag, size = 0x4, scoped, tag = 'scoped memory for tpu_custom_call.1']
    #allocation4 [shape = 's32[1]{0}', space=sflag, size = 0x4, scoped, tag = 'scoped memory for tpu_custom_call.1']
    #allocation5 [shape = 'u8[65536]{0}', space=vmem, size = 0x10000, scoped, tag = 'input window, operand 1, single buffered']
    #allocation6 [shape = 's32[1]{0}', space=sflag, size = 0x4, scoped, tag = 'scoped memory for tpu_custom_call.1']
    #allocation7 [shape = 'u8[65536]{0}', space=vmem, size = 0x10000, scoped, tag = 'input window, operand 3, single buffered']
    #allocation8 [shape = 'u8[65536]{0}', space=vmem, size = 0x10000, scoped, tag = 'input window, operand 5, single buffered']
    #allocation9 [shape = 's32[1]{0}', space=sflag, size = 0x4, scoped, tag = 'scoped memory for tpu_custom_call.1']
    #allocation10 [shape = 'u8[65536]{0}', space=vmem, size = 0x10000, scoped, tag = 'input window, operand 7, single buffered']
    #allocation11 [shape = 'u8[65536]{0}', space=vmem, size = 0x10000, scoped, tag = 'input window, operand 9, single buffered']
    #allocation12 [shape = 's32[1]{0}', space=sflag, size = 0x4, scoped, tag = 'scoped memory for tpu_custom_call.1']
    #allocation13 [shape = 'u8[8192]{0}', space=vmem, size = 0x2000, scoped, tag = 'output window, operand 0, single buffered']
    %16 = vsyncpa [#allocation3], 0
    %17 = vsyncpa [#allocation6], 0
    %18 = vsyncpa [#allocation9], 0
    %19 = vsyncpa [#allocation12], 0
    %20 = vsyncpa [#allocation4], 0
    // Predicated region
    $region2: #{tpu_custom_call.1} parent=1 // pred_check
      _
    $region3: #{tpu_custom_call.1} parent=1 // pred_check_branch
      %22 = sbr.rel (0) target = $region5
    $region4: #{tpu_custom_call.1} parent=1 // pred_region
      %24 = vsyncadd [#allocation3], 0
      %s25 = sshll.u32 %s0, 4
      %s26 = int_to_ptr.hbm [resolvable:$true] %s25
      %s27 = sshll.u32 [#allocation2], 4
      %s28 = int_to_ptr.vmem [resolvable:$true] %s27
      %33 = dma.hbm_to_vmem [thread:$0]  %s26, 256, %s28, [#allocation3], 128, 128, 8
    $region5: #{tpu_custom_call.1} parent=1 // pred_fallthru
      _
    // Predicated region
    $region6: #{tpu_custom_call.1} parent=1 // pred_check
      _
    $region7: #{tpu_custom_call.1} parent=1 // pred_check_branch
      %35 = sbr.rel (0) target = $region9
    $region8: #{tpu_custom_call.1} parent=1 // pred_region
      %37 = vsyncadd [#allocation6], 0
      %s38 = sshll.u32 %s1, 4
      %s39 = int_to_ptr.hbm [resolvable:$true] %s38
      %s40 = sshll.u32 [#allocation5], 4
      %s41 = int_to_ptr.vmem [resolvable:$true] %s40
      %46 = dma.hbm_to_vmem [thread:$0]  %s39, 2048, %s41, [#allocation6], 128, 128, 8
    $region9: #{tpu_custom_call.1} parent=1 // pred_fallthru
      _
    // Predicated region
    $region10: #{tpu_custom_call.1} parent=1 // pred_check
      _
    $region11: #{tpu_custom_call.1} parent=1 // pred_check_branch
      %48 = sbr.rel (0) target = $region13
    $region12: #{tpu_custom_call.1} parent=1 // pred_region
      _
    $region13: #{tpu_custom_call.1} parent=1 // pred_fallthru
      _
    // Predicated region
    $region14: #{tpu_custom_call.1} parent=1 // pred_check
      _
    $region15: #{tpu_custom_call.1} parent=1 // pred_check_branch
      %50 = sbr.rel (0) target = $region17
    $region16: #{tpu_custom_call.1} parent=1 // pred_region
      %52 = vsyncadd [#allocation6], 0
      %s53 = sshll.u32 %s3, 4
      %s54 = int_to_ptr.hbm [resolvable:$true] %s53
      %s55 = sshll.u32 [#allocation7], 4
      %s56 = int_to_ptr.vmem [resolvable:$true] %s55
      %61 = dma.hbm_to_vmem [thread:$0]  %s54, 2048, %s56, [#allocation6], 128, 128, 8
    $region17: #{tpu_custom_call.1} parent=1 // pred_fallthru
      _
    // Predicated region
    $region18: #{tpu_custom_call.1} parent=1 // pred_check
      _
    $region19: #{tpu_custom_call.1} parent=1 // pred_check_branch
      %63 = sbr.rel (0) target = $region21
    $region20: #{tpu_custom_call.1} parent=1 // pred_region
      _
    $region21: #{tpu_custom_call.1} parent=1 // pred_fallthru
      _
    // Predicated region
    $region22: #{tpu_custom_call.1} parent=1 // pred_check
      _
    $region23: #{tpu_custom_call.1} parent=1 // pred_check_branch
      %65 = sbr.rel (0) target = $region25
    $region24: #{tpu_custom_call.1} parent=1 // pred_region
      %67 = vsyncadd [#allocation9], 0
      %s68 = sshll.u32 %s5, 4
      %s69 = int_to_ptr.hbm [resolvable:$true] %s68
      %s70 = sshll.u32 [#allocation8], 4
      %s71 = int_to_ptr.vmem [resolvable:$true] %s70
      %76 = dma.hbm_to_vmem [thread:$0]  %s69, 2048, %s71, [#allocation9], 128, 128, 8
    $region25: #{tpu_custom_call.1} parent=1 // pred_fallthru
      _
    // Predicated region
    $region26: #{tpu_custom_call.1} parent=1 // pred_check
      _
    $region27: #{tpu_custom_call.1} parent=1 // pred_check_branch
      %78 = sbr.rel (0) target = $region29
    $region28: #{tpu_custom_call.1} parent=1 // pred_region
      _
    $region29: #{tpu_custom_call.1} parent=1 // pred_fallthru
      _
    // Predicated region
    $region30: #{tpu_custom_call.1} parent=1 // pred_check
      _
    $region31: #{tpu_custom_call.1} parent=1 // pred_check_branch
      %80 = sbr.rel (0) target = $region33
    $region32: #{tpu_custom_call.1} parent=1 // pred_region
      %82 = vsyncadd [#allocation9], 0
      %s83 = sshll.u32 %s7, 4
      %s84 = int_to_ptr.hbm [resolvable:$true] %s83
      %s85 = sshll.u32 [#allocation10], 4
      %s86 = int_to_ptr.vmem [resolvable:$true] %s85
      %91 = dma.hbm_to_vmem [thread:$0]  %s84, 2048, %s86, [#allocation9], 128, 128, 8
    $region33: #{tpu_custom_call.1} parent=1 // pred_fallthru
      _
    // Predicated region
    $region34: #{tpu_custom_call.1} parent=1 // pred_check
      _
    $region35: #{tpu_custom_call.1} parent=1 // pred_check_branch
      %93 = sbr.rel (0) target = $region37
    $region36: #{tpu_custom_call.1} parent=1 // pred_region
      _
    $region37: #{tpu_custom_call.1} parent=1 // pred_fallthru
      _
    // Predicated region
    $region38: #{tpu_custom_call.1} parent=1 // pred_check
      _
    $region39: #{tpu_custom_call.1} parent=1 // pred_check_branch
      %95 = sbr.rel (0) target = $region41
    $region40: #{tpu_custom_call.1} parent=1 // pred_region
      %97 = vsyncadd [#allocation12], 0
      %s98 = sshll.u32 %s9, 4
      %s99 = int_to_ptr.hbm [resolvable:$true] %s98
      %s100 = sshll.u32 [#allocation11], 4
      %s101 = int_to_ptr.vmem [resolvable:$true] %s100
      %106 = dma.hbm_to_vmem [thread:$0]  %s99, 2048, %s101, [#allocation12], 128, 128, 8
    $region41: #{tpu_custom_call.1} parent=1 // pred_fallthru
      _
    // Predicated region
    $region42: #{tpu_custom_call.1} parent=1 // pred_check
      _
    $region43: #{tpu_custom_call.1} parent=1 // pred_check_branch
      %108 = sbr.rel (0) target = $region45
    $region44: #{tpu_custom_call.1} parent=1 // pred_region
      _
    $region45: #{tpu_custom_call.1} parent=1 // pred_fallthru
      _
    // Predicated region
    $region46: #{tpu_custom_call.1} parent=1 // pred_check
      _
    $region47: #{tpu_custom_call.1} parent=1 // pred_check_branch
      %110 = sbr.rel (0) target = $region49
    $region48: #{tpu_custom_call.1} parent=1 // pred_region
      %112 = dma.done [#allocation3], 256
    $region49: #{tpu_custom_call.1} parent=1 // pred_fallthru
      _
    // Predicated region
    $region50: #{tpu_custom_call.1} parent=1 // pred_check
      _
    $region51: #{tpu_custom_call.1} parent=1 // pred_check_branch
      %114 = sbr.rel (0) target = $region53
    $region52: #{tpu_custom_call.1} parent=1 // pred_region
      %116 = dma.done [#allocation6], 2048
    $region53: #{tpu_custom_call.1} parent=1 // pred_fallthru
      _
    // Predicated region
    $region54: #{tpu_custom_call.1} parent=1 // pred_check
      _
    $region55: #{tpu_custom_call.1} parent=1 // pred_check_branch
      %118 = sbr.rel (0) target = $region57
    $region56: #{tpu_custom_call.1} parent=1 // pred_region
      %120 = dma.done [#allocation6], 2048
    $region57: #{tpu_custom_call.1} parent=1 // pred_fallthru
      _
    // Predicated region
    $region58: #{tpu_custom_call.1} parent=1 // pred_check
      _
    $region59: #{tpu_custom_call.1} parent=1 // pred_check_branch
      %122 = sbr.rel (0) target = $region61
    $region60: #{tpu_custom_call.1} parent=1 // pred_region
      %124 = dma.done [#allocation9], 2048
    $region61: #{tpu_custom_call.1} parent=1 // pred_fallthru
      _
    // Predicated region
    $region62: #{tpu_custom_call.1} parent=1 // pred_check
      _
    $region63: #{tpu_custom_call.1} parent=1 // pred_check_branch
      %126 = sbr.rel (0) target = $region65
    $region64: #{tpu_custom_call.1} parent=1 // pred_region
      %128 = dma.done [#allocation9], 2048
    $region65: #{tpu_custom_call.1} parent=1 // pred_fallthru
      _
    // Predicated region
    $region66: #{tpu_custom_call.1} parent=1 // pred_check
      _
    $region67: #{tpu_custom_call.1} parent=1 // pred_check_branch
      %130 = sbr.rel (0) target = $region69
    $region68: #{tpu_custom_call.1} parent=1 // pred_region
      %132 = dma.done [#allocation12], 2048
    $region69: #{tpu_custom_call.1} parent=1 // pred_fallthru
      _
    %v133 = vld [vmem:[#allocation2] sm:$0xff]
    %v134 = vld [vmem:[#allocation2 + $0x8] sm:$0xff]
    %v135 = vld [vmem:[#allocation5] sm:$0xff]
    %v136 = vld [vmem:[#allocation5 + $0x8] sm:$0xff]
    %v137 = vld [vmem:[#allocation5 + $0x10] sm:$0xff]
    %v138 = vld [vmem:[#allocation5 + $0x18] sm:$0xff]
    %v139 = vld [vmem:[#allocation5 + $0x20] sm:$0xff]
    %v140 = vld [vmem:[#allocation5 + $0x28] sm:$0xff]
    %v141 = vld [vmem:[#allocation5 + $0x30] sm:$0xff]
    %v142 = vld [vmem:[#allocation5 + $0x38] sm:$0xff]
    %v143 = vld [vmem:[#allocation5 + $0x40] sm:$0xff]
    %v144 = vld [vmem:[#allocation5 + $0x48] sm:$0xff]
    %v145 = vld [vmem:[#allocation5 + $0x50] sm:$0xff]
    %v146 = vld [vmem:[#allocation5 + $0x58] sm:$0xff]
    %v147 = vld [vmem:[#allocation5 + $0x60] sm:$0xff]
    %v148 = vld [vmem:[#allocation5 + $0x68] sm:$0xff]
    %v149 = vld [vmem:[#allocation5 + $0x70] sm:$0xff]
    %v150 = vld [vmem:[#allocation5 + $0x78] sm:$0xff]
    %v151 = vld [vmem:[%s2] sm:$0x1]
    %v153 = vperm.slane %v151, 0
    %155 = vmatpush.msra.mxu0 %v150
    %156 = vmatpush.msra.mxu0 %v149
    %157 = vmatpush.msra.mxu0 %v148
    %158 = vmatpush.msra.mxu0 %v147
    %159 = vmatpush.msra.mxu0 %v146
    %160 = vmatpush.msra.mxu0 %v145
    %161 = vmatpush.msra.mxu0 %v144
    %162 = vmatpush.msra.mxu0 %v143
    %163 = vmatpush.msra.mxu0 %v142
    %164 = vmatpush.msra.mxu0 %v141
    %165 = vmatpush.msra.mxu0 %v140
    %166 = vmatpush.msra.mxu0 %v139
    %167 = vmatpush.msra.mxu0 %v138
    %168 = vmatpush.msra.mxu0 %v137
    %169 = vmatpush.msra.mxu0 %v136
    %170 = vmatpush.msra.mxu0 %v135
    %171 = vmatmul.f32.gmra.mxu0 %v133
    %v172 = vpop.f32.mrf.mxu0
    %v173 = vadd.f32 %v153, %v172
    %174 = vmatmul.f32.gmra.mxu0 %v134
    %v175 = vpop.f32.mrf.mxu0
    %v176 = vadd.f32 %v153, %v175
    %177 = vdwg.mxu0
    %v178 = vmax.f32 %v173, 0.0
    %v179 = vmax.f32 %v176, 0.0
    %v180 = vld [vmem:[#allocation7] sm:$0xff]
    %v181 = vld [vmem:[#allocation7 + $0x8] sm:$0xff]
    %v182 = vld [vmem:[#allocation7 + $0x10] sm:$0xff]
    %v183 = vld [vmem:[#allocation7 + $0x18] sm:$0xff]
    %v184 = vld [vmem:[#allocation7 + $0x20] sm:$0xff]
    %v185 = vld [vmem:[#allocation7 + $0x28] sm:$0xff]
    %v186 = vld [vmem:[#allocation7 + $0x30] sm:$0xff]
    %v187 = vld [vmem:[#allocation7 + $0x38] sm:$0xff]
    %v188 = vld [vmem:[#allocation7 + $0x40] sm:$0xff]
    %v189 = vld [vmem:[#allocation7 + $0x48] sm:$0xff]
    %v190 = vld [vmem:[#allocation7 + $0x50] sm:$0xff]
    %v191 = vld [vmem:[#allocation7 + $0x58] sm:$0xff]
    %v192 = vld [vmem:[#allocation7 + $0x60] sm:$0xff]
    %v193 = vld [vmem:[#allocation7 + $0x68] sm:$0xff]
    %v194 = vld [vmem:[#allocation7 + $0x70] sm:$0xff]
    %v195 = vld [vmem:[#allocation7 + $0x78] sm:$0xff]
    %v196 = vld [vmem:[%s4] sm:$0x1]
    %v198 = vperm.slane %v196, 0
    %200 = vmatpush.msra.mxu0 %v195
    %201 = vmatpush.msra.mxu0 %v194
    %202 = vmatpush.msra.mxu0 %v193
    %203 = vmatpush.msra.mxu0 %v192
    %204 = vmatpush.msra.mxu0 %v191
    %205 = vmatpush.msra.mxu0 %v190
    %206 = vmatpush.msra.mxu0 %v189
    %207 = vmatpush.msra.mxu0 %v188
    %208 = vmatpush.msra.mxu0 %v187
    %209 = vmatpush.msra.mxu0 %v186
    %210 = vmatpush.msra.mxu0 %v185
    %211 = vmatpush.msra.mxu0 %v184
    %212 = vmatpush.msra.mxu0 %v183
    %213 = vmatpush.msra.mxu0 %v182
    %214 = vmatpush.msra.mxu0 %v181
    %215 = vmatpush.msra.mxu0 %v180
    %216 = vmatmul.f32.gmra.mxu0 %v178
    %v217 = vpop.f32.mrf.mxu0
    %v218 = vadd.f32 %v198, %v217
    %219 = vmatmul.f32.gmra.mxu0 %v179
    %v220 = vpop.f32.mrf.mxu0
    %v221 = vadd.f32 %v198, %v220
    %222 = vdwg.mxu0
    %v223 = vmul.f32 %v218, %v218
    %v224 = vmul.f32 %v221, %v221
    %225 = vadd.xlane.f32.xlu0 %v223
    %v226 = vpop.xlane.xlu0 %225
    %227 = vadd.xlane.f32.xlu0 %v224
    %v228 = vpop.xlane.xlu0 %227
    %v229 = vrsqrt.pop %v226
    %v230 = vmul.f32 %v229, %v226
    %v231 = vmul.f32 %v230, %v229
    %v232 = vmul.f32 0.5, %v231
    %v233 = vsub.f32 1.5, %v232
    %v234 = vmul.f32 %v229, %v233
    %vm235 = vweird.f32 %v226
    %vm236 = vweird.f32 %v229
    %vm237 = vmor %vm235, %vm236
    %v238 = vsel %vm237, %v229, %v234
    %v239 = vrsqrt.pop %v228
    %v240 = vmul.f32 %v239, %v228
    %v241 = vmul.f32 %v240, %v239
    %v242 = vmul.f32 0.5, %v241
    %v243 = vsub.f32 1.5, %v242
    %v244 = vmul.f32 %v239, %v243
    %vm245 = vweird.f32 %v228
    %vm246 = vweird.f32 %v239
    %vm247 = vmor %vm245, %vm246
    %v248 = vsel %vm247, %v239, %v244
    %v249 = vmul.f32 %v218, %v238
    %v250 = vmul.f32 %v221, %v248
    %v251 = vld [vmem:[#allocation8] sm:$0xff]
    %v252 = vld [vmem:[#allocation8 + $0x8] sm:$0xff]
    %v253 = vld [vmem:[#allocation8 + $0x10] sm:$0xff]
    %v254 = vld [vmem:[#allocation8 + $0x18] sm:$0xff]
    %v255 = vld [vmem:[#allocation8 + $0x20] sm:$0xff]
    %v256 = vld [vmem:[#allocation8 + $0x28] sm:$0xff]
    %v257 = vld [vmem:[#allocation8 + $0x30] sm:$0xff]
    %v258 = vld [vmem:[#allocation8 + $0x38] sm:$0xff]
    %v259 = vld [vmem:[#allocation8 + $0x40] sm:$0xff]
    %v260 = vld [vmem:[#allocation8 + $0x48] sm:$0xff]
    %v261 = vld [vmem:[#allocation8 + $0x50] sm:$0xff]
    %v262 = vld [vmem:[#allocation8 + $0x58] sm:$0xff]
    %v263 = vld [vmem:[#allocation8 + $0x60] sm:$0xff]
    %v264 = vld [vmem:[#allocation8 + $0x68] sm:$0xff]
    %v265 = vld [vmem:[#allocation8 + $0x70] sm:$0xff]
    %v266 = vld [vmem:[#allocation8 + $0x78] sm:$0xff]
    %v267 = vld [vmem:[%s6] sm:$0x1]
    %v269 = vperm.slane %v267, 0
    %271 = vmatpush.msra.mxu0 %v266
    %272 = vmatpush.msra.mxu0 %v265
    %273 = vmatpush.msra.mxu0 %v264
    %274 = vmatpush.msra.mxu0 %v263
    %275 = vmatpush.msra.mxu0 %v262
    %276 = vmatpush.msra.mxu0 %v261
    %277 = vmatpush.msra.mxu0 %v260
    %278 = vmatpush.msra.mxu0 %v259
    %279 = vmatpush.msra.mxu0 %v258
    %280 = vmatpush.msra.mxu0 %v257
    %281 = vmatpush.msra.mxu0 %v256
    %282 = vmatpush.msra.mxu0 %v255
    %283 = vmatpush.msra.mxu0 %v254
    %284 = vmatpush.msra.mxu0 %v253
    %285 = vmatpush.msra.mxu0 %v252
    %286 = vmatpush.msra.mxu0 %v251
    %287 = vmatmul.f32.gmra.mxu0 %v133
    %v288 = vpop.f32.mrf.mxu0
    %v289 = vadd.f32 %v269, %v288
    %290 = vmatmul.f32.gmra.mxu0 %v134
    %v291 = vpop.f32.mrf.mxu0
    %v292 = vadd.f32 %v269, %v291
    %293 = vdwg.mxu0
    %v294 = vmax.f32 %v289, 0.0
    %v295 = vmax.f32 %v292, 0.0
    %v296 = vld [vmem:[#allocation10] sm:$0xff]
    %v297 = vld [vmem:[#allocation10 + $0x8] sm:$0xff]
    %v298 = vld [vmem:[#allocation10 + $0x10] sm:$0xff]
    %v299 = vld [vmem:[#allocation10 + $0x18] sm:$0xff]
    %v300 = vld [vmem:[#allocation10 + $0x20] sm:$0xff]
    %v301 = vld [vmem:[#allocation10 + $0x28] sm:$0xff]
    %v302 = vld [vmem:[#allocation10 + $0x30] sm:$0xff]
    %v303 = vld [vmem:[#allocation10 + $0x38] sm:$0xff]
    %v304 = vld [vmem:[#allocation10 + $0x40] sm:$0xff]
    %v305 = vld [vmem:[#allocation10 + $0x48] sm:$0xff]
    %v306 = vld [vmem:[#allocation10 + $0x50] sm:$0xff]
    %v307 = vld [vmem:[#allocation10 + $0x58] sm:$0xff]
    %v308 = vld [vmem:[#allocation10 + $0x60] sm:$0xff]
    %v309 = vld [vmem:[#allocation10 + $0x68] sm:$0xff]
    %v310 = vld [vmem:[#allocation10 + $0x70] sm:$0xff]
    %v311 = vld [vmem:[#allocation10 + $0x78] sm:$0xff]
    %v312 = vld [vmem:[%s8] sm:$0x1]
    %v314 = vperm.slane %v312, 0
    %316 = vmatpush.msra.mxu0 %v311
    %317 = vmatpush.msra.mxu0 %v310
    %318 = vmatpush.msra.mxu0 %v309
    %319 = vmatpush.msra.mxu0 %v308
    %320 = vmatpush.msra.mxu0 %v307
    %321 = vmatpush.msra.mxu0 %v306
    %322 = vmatpush.msra.mxu0 %v305
    %323 = vmatpush.msra.mxu0 %v304
    %324 = vmatpush.msra.mxu0 %v303
    %325 = vmatpush.msra.mxu0 %v302
    %326 = vmatpush.msra.mxu0 %v301
    %327 = vmatpush.msra.mxu0 %v300
    %328 = vmatpush.msra.mxu0 %v299
    %329 = vmatpush.msra.mxu0 %v298
    %330 = vmatpush.msra.mxu0 %v297
    %331 = vmatpush.msra.mxu0 %v296
    %332 = vmatmul.f32.gmra.mxu0 %v294
    %v333 = vpop.f32.mrf.mxu0
    %v334 = vadd.f32 %v314, %v333
    %335 = vmatmul.f32.gmra.mxu0 %v295
    %v336 = vpop.f32.mrf.mxu0
    %v337 = vadd.f32 %v314, %v336
    %338 = vdwg.mxu0
    %v339 = vmax.f32 %v334, 0.0
    %v340 = vmax.f32 %v337, 0.0
    %v341 = vld [vmem:[#allocation11] sm:$0xff]
    %v342 = vld [vmem:[#allocation11 + $0x8] sm:$0xff]
    %v343 = vld [vmem:[#allocation11 + $0x10] sm:$0xff]
    %v344 = vld [vmem:[#allocation11 + $0x18] sm:$0xff]
    %v345 = vld [vmem:[#allocation11 + $0x20] sm:$0xff]
    %v346 = vld [vmem:[#allocation11 + $0x28] sm:$0xff]
    %v347 = vld [vmem:[#allocation11 + $0x30] sm:$0xff]
    %v348 = vld [vmem:[#allocation11 + $0x38] sm:$0xff]
    %v349 = vld [vmem:[#allocation11 + $0x40] sm:$0xff]
    %v350 = vld [vmem:[#allocation11 + $0x48] sm:$0xff]
    %v351 = vld [vmem:[#allocation11 + $0x50] sm:$0xff]
    %v352 = vld [vmem:[#allocation11 + $0x58] sm:$0xff]
    %v353 = vld [vmem:[#allocation11 + $0x60] sm:$0xff]
    %v354 = vld [vmem:[#allocation11 + $0x68] sm:$0xff]
    %v355 = vld [vmem:[#allocation11 + $0x70] sm:$0xff]
    %v356 = vld [vmem:[#allocation11 + $0x78] sm:$0xff]
    %v357 = vld [vmem:[%s10] sm:$0x1]
    %v359 = vperm.slane %v357, 0
    %361 = vmatpush.msra.mxu0 %v356
    %362 = vmatpush.msra.mxu0 %v355
    %363 = vmatpush.msra.mxu0 %v354
    %364 = vmatpush.msra.mxu0 %v353
    %365 = vmatpush.msra.mxu0 %v352
    %366 = vmatpush.msra.mxu0 %v351
    %367 = vmatpush.msra.mxu0 %v350
    %368 = vmatpush.msra.mxu0 %v349
    %369 = vmatpush.msra.mxu0 %v348
    %370 = vmatpush.msra.mxu0 %v347
    %371 = vmatpush.msra.mxu0 %v346
    %372 = vmatpush.msra.mxu0 %v345
    %373 = vmatpush.msra.mxu0 %v344
    %374 = vmatpush.msra.mxu0 %v343
    %375 = vmatpush.msra.mxu0 %v342
    %376 = vmatpush.msra.mxu0 %v341
    %377 = vmatmul.f32.gmra.mxu0 %v339
    %v378 = vpop.f32.mrf.mxu0
    %v379 = vadd.f32 %v359, %v378
    %380 = vmatmul.f32.gmra.mxu0 %v340
    %v381 = vpop.f32.mrf.mxu0
    %v382 = vadd.f32 %v359, %v381
    %383 = vdwg.mxu0
    %384 = vxpose.xlu0.b32.start [1/16] %v249, 128
    %385 = vxpose.xlu0.b32.cont [2/16] 0.0, 128
    %386 = vxpose.xlu0.b32.cont [3/16] 0.0, 128
    %387 = vxpose.xlu0.b32.cont [4/16] 0.0, 128
    %388 = vxpose.xlu0.b32.cont [5/16] 0.0, 128
    %389 = vxpose.xlu0.b32.cont [6/16] 0.0, 128
    %390 = vxpose.xlu0.b32.cont [7/16] 0.0, 128
    %391 = vxpose.xlu0.b32.cont [8/16] 0.0, 128
    %392 = vxpose.xlu0.b32.cont [9/16] 0.0, 128
    %393 = vxpose.xlu0.b32.cont [10/16] 0.0, 128
    %394 = vxpose.xlu0.b32.cont [11/16] 0.0, 128
    %395 = vxpose.xlu0.b32.cont [12/16] 0.0, 128
    %396 = vxpose.xlu0.b32.cont [13/16] 0.0, 128
    %397 = vxpose.xlu0.b32.cont [14/16] 0.0, 128
    %398 = vxpose.xlu0.b32.cont [15/16] 0.0, 128
    %399 = vxpose.xlu0.b32.end [16/16] 0.0, 128
    %v400 = vpop.trf.xlu0
    %v401 = vpop.trf.xlu0
    %v402 = vpop.trf.xlu0
    %v403 = vpop.trf.xlu0
    %v404 = vpop.trf.xlu0
    %v405 = vpop.trf.xlu0
    %v406 = vpop.trf.xlu0
    %v407 = vpop.trf.xlu0
    %v408 = vpop.trf.xlu0
    %v409 = vpop.trf.xlu0
    %v410 = vpop.trf.xlu0
    %v411 = vpop.trf.xlu0
    %v412 = vpop.trf.xlu0
    %v413 = vpop.trf.xlu0
    %v414 = vpop.trf.xlu0
    %v415 = vpop.trf.xlu0
    %vm416 = vcmask 64512
    %v418 = vsel %vm416, %v400, 0
    %v421 = vsel %vm416, %v401, 0
    %v424 = vsel %vm416, %v402, 0
    %v427 = vsel %vm416, %v403, 0
    %v430 = vsel %vm416, %v404, 0
    %v433 = vsel %vm416, %v405, 0
    %v436 = vsel %vm416, %v406, 0
    %v439 = vsel %vm416, %v407, 0
    %v442 = vsel %vm416, %v408, 0
    %v445 = vsel %vm416, %v409, 0
    %v448 = vsel %vm416, %v410, 0
    %v451 = vsel %vm416, %v411, 0
    %v454 = vsel %vm416, %v412, 0
    %v457 = vsel %vm416, %v413, 0
    %v460 = vsel %vm416, %v414, 0
    %v463 = vsel %vm416, %v415, 0
    %465 = vmatpush.msra.mxu0 0.0
    %466 = vmatpush.msra.mxu0 0.0
    %467 = vmatpush.msra.mxu0 0.0
    %468 = vmatpush.msra.mxu0 0.0
    %469 = vmatpush.msra.mxu0 0.0
    %470 = vmatpush.msra.mxu0 0.0
    %471 = vmatpush.msra.mxu0 0.0
    %472 = vmatpush.msra.mxu0 0.0
    %473 = vmatpush.msra.mxu0 0.0
    %474 = vmatpush.msra.mxu0 0.0
    %475 = vmatpush.msra.mxu0 0.0
    %476 = vmatpush.msra.mxu0 0.0
    %477 = vmatpush.msra.mxu0 0.0
    %478 = vmatpush.msra.mxu0 0.0
    %479 = vmatpush.msra.mxu0 0.0
    %480 = vmatpush.msra.mxu0 %v379
    %481 = vmatmul.f32.gmra.mxu0 %v418
    %v482 = vpop.f32.mrf.mxu0
    %v483 = vadd.f32 0.0, %v482
    %484 = vmatmul.f32.gmra.mxu0 %v421
    %v485 = vpop.f32.mrf.mxu0
    %v486 = vadd.f32 0.0, %v485
    %487 = vmatmul.f32.gmra.mxu0 %v424
    %v488 = vpop.f32.mrf.mxu0
    %v489 = vadd.f32 0.0, %v488
    %490 = vmatmul.f32.gmra.mxu0 %v427
    %v491 = vpop.f32.mrf.mxu0
    %v492 = vadd.f32 0.0, %v491
    %493 = vmatmul.f32.gmra.mxu0 %v430
    %v494 = vpop.f32.mrf.mxu0
    %v495 = vadd.f32 0.0, %v494
    %496 = vmatmul.f32.gmra.mxu0 %v433
    %v497 = vpop.f32.mrf.mxu0
    %v498 = vadd.f32 0.0, %v497
    %499 = vmatmul.f32.gmra.mxu0 %v436
    %v500 = vpop.f32.mrf.mxu0
    %v501 = vadd.f32 0.0, %v500
    %502 = vmatmul.f32.gmra.mxu0 %v439
    %v503 = vpop.f32.mrf.mxu0
    %v504 = vadd.f32 0.0, %v503
    %505 = vmatmul.f32.gmra.mxu0 %v442
    %v506 = vpop.f32.mrf.mxu0
    %v507 = vadd.f32 0.0, %v506
    %508 = vmatmul.f32.gmra.mxu0 %v445
    %v509 = vpop.f32.mrf.mxu0
    %v510 = vadd.f32 0.0, %v509
    %511 = vmatmul.f32.gmra.mxu0 %v448
    %v512 = vpop.f32.mrf.mxu0
    %v513 = vadd.f32 0.0, %v512
    %514 = vmatmul.f32.gmra.mxu0 %v451
    %v515 = vpop.f32.mrf.mxu0
    %v516 = vadd.f32 0.0, %v515
    %517 = vmatmul.f32.gmra.mxu0 %v454
    %v518 = vpop.f32.mrf.mxu0
    %v519 = vadd.f32 0.0, %v518
    %520 = vmatmul.f32.gmra.mxu0 %v457
    %v521 = vpop.f32.mrf.mxu0
    %v522 = vadd.f32 0.0, %v521
    %523 = vmatmul.f32.gmra.mxu0 %v460
    %v524 = vpop.f32.mrf.mxu0
    %v525 = vadd.f32 0.0, %v524
    %526 = vmatmul.f32.gmra.mxu0 %v463
    %v527 = vpop.f32.mrf.mxu0
    %v528 = vadd.f32 0.0, %v527
    %529 = vdwg.mxu0
    %530 = vxpose.xlu0.b32.start [1/16] %v250, 128
    %531 = vxpose.xlu0.b32.cont [2/16] 0.0, 128
    %532 = vxpose.xlu0.b32.cont [3/16] 0.0, 128
    %533 = vxpose.xlu0.b32.cont [4/16] 0.0, 128
    %534 = vxpose.xlu0.b32.cont [5/16] 0.0, 128
    %535 = vxpose.xlu0.b32.cont [6/16] 0.0, 128
    %536 = vxpose.xlu0.b32.cont [7/16] 0.0, 128
    %537 = vxpose.xlu0.b32.cont [8/16] 0.0, 128
    %538 = vxpose.xlu0.b32.cont [9/16] 0.0, 128
    %539 = vxpose.xlu0.b32.cont [10/16] 0.0, 128
    %540 = vxpose.xlu0.b32.cont [11/16] 0.0, 128
    %541 = vxpose.xlu0.b32.cont [12/16] 0.0, 128
    %542 = vxpose.xlu0.b32.cont [13/16] 0.0, 128
    %543 = vxpose.xlu0.b32.cont [14/16] 0.0, 128
    %544 = vxpose.xlu0.b32.cont [15/16] 0.0, 128
    %545 = vxpose.xlu0.b32.end [16/16] 0.0, 128
    %v546 = vpop.trf.xlu0
    %v547 = vpop.trf.xlu0
    %v548 = vpop.trf.xlu0
    %v549 = vpop.trf.xlu0
    %v550 = vpop.trf.xlu0
    %v551 = vpop.trf.xlu0
    %v552 = vpop.trf.xlu0
    %v553 = vpop.trf.xlu0
    %v554 = vpop.trf.xlu0
    %v555 = vpop.trf.xlu0
    %v556 = vpop.trf.xlu0
    %v557 = vpop.trf.xlu0
    %v558 = vpop.trf.xlu0
    %v559 = vpop.trf.xlu0
    %v560 = vpop.trf.xlu0
    %v561 = vpop.trf.xlu0
    %v563 = vsel %vm416, %v546, 0
    %v566 = vsel %vm416, %v547, 0
    %v569 = vsel %vm416, %v548, 0
    %v572 = vsel %vm416, %v549, 0
    %v575 = vsel %vm416, %v550, 0
    %v578 = vsel %vm416, %v551, 0
    %v581 = vsel %vm416, %v552, 0
    %v584 = vsel %vm416, %v553, 0
    %v587 = vsel %vm416, %v554, 0
    %v590 = vsel %vm416, %v555, 0
    %v593 = vsel %vm416, %v556, 0
    %v596 = vsel %vm416, %v557, 0
    %v599 = vsel %vm416, %v558, 0
    %v602 = vsel %vm416, %v559, 0
    %v605 = vsel %vm416, %v560, 0
    %v608 = vsel %vm416, %v561, 0
    %610 = vmatpush.msra.mxu0 0.0
    %611 = vmatpush.msra.mxu0 0.0
    %612 = vmatpush.msra.mxu0 0.0
    %613 = vmatpush.msra.mxu0 0.0
    %614 = vmatpush.msra.mxu0 0.0
    %615 = vmatpush.msra.mxu0 0.0
    %616 = vmatpush.msra.mxu0 0.0
    %617 = vmatpush.msra.mxu0 0.0
    %618 = vmatpush.msra.mxu0 0.0
    %619 = vmatpush.msra.mxu0 0.0
    %620 = vmatpush.msra.mxu0 0.0
    %621 = vmatpush.msra.mxu0 0.0
    %622 = vmatpush.msra.mxu0 0.0
    %623 = vmatpush.msra.mxu0 0.0
    %624 = vmatpush.msra.mxu0 0.0
    %625 = vmatpush.msra.mxu0 %v382
    %626 = vmatmul.f32.gmra.mxu0 %v563
    %v627 = vpop.f32.mrf.mxu0
    %v628 = vadd.f32 0.0, %v627
    %629 = vmatmul.f32.gmra.mxu0 %v566
    %v630 = vpop.f32.mrf.mxu0
    %v631 = vadd.f32 0.0, %v630
    %632 = vmatmul.f32.gmra.mxu0 %v569
    %v633 = vpop.f32.mrf.mxu0
    %v634 = vadd.f32 0.0, %v633
    %635 = vmatmul.f32.gmra.mxu0 %v572
    %v636 = vpop.f32.mrf.mxu0
    %v637 = vadd.f32 0.0, %v636
    %638 = vmatmul.f32.gmra.mxu0 %v575
    %v639 = vpop.f32.mrf.mxu0
    %v640 = vadd.f32 0.0, %v639
    %641 = vmatmul.f32.gmra.mxu0 %v578
    %v642 = vpop.f32.mrf.mxu0
    %v643 = vadd.f32 0.0, %v642
    %644 = vmatmul.f32.gmra.mxu0 %v581
    %v645 = vpop.f32.mrf.mxu0
    %v646 = vadd.f32 0.0, %v645
    %647 = vmatmul.f32.gmra.mxu0 %v584
    %v648 = vpop.f32.mrf.mxu0
    %v649 = vadd.f32 0.0, %v648
    %650 = vmatmul.f32.gmra.mxu0 %v587
    %v651 = vpop.f32.mrf.mxu0
    %v652 = vadd.f32 0.0, %v651
    %653 = vmatmul.f32.gmra.mxu0 %v590
    %v654 = vpop.f32.mrf.mxu0
    %v655 = vadd.f32 0.0, %v654
    %656 = vmatmul.f32.gmra.mxu0 %v593
    %v657 = vpop.f32.mrf.mxu0
    %v658 = vadd.f32 0.0, %v657
    %659 = vmatmul.f32.gmra.mxu0 %v596
    %v660 = vpop.f32.mrf.mxu0
    %v661 = vadd.f32 0.0, %v660
    %662 = vmatmul.f32.gmra.mxu0 %v599
    %v663 = vpop.f32.mrf.mxu0
    %v664 = vadd.f32 0.0, %v663
    %665 = vmatmul.f32.gmra.mxu0 %v602
    %v666 = vpop.f32.mrf.mxu0
    %v667 = vadd.f32 0.0, %v666
    %668 = vmatmul.f32.gmra.mxu0 %v605
    %v669 = vpop.f32.mrf.mxu0
    %v670 = vadd.f32 0.0, %v669
    %671 = vmatmul.f32.gmra.mxu0 %v608
    %v672 = vpop.f32.mrf.mxu0
    %v673 = vadd.f32 0.0, %v672
    %674 = vdwg.mxu0
    %v675 = vrot.slane %v379, 4
    %v676 = vadd.f32 %v379, %v675
    %v677 = vrot.slane %v676, 2
    %v678 = vadd.f32 %v676, %v677
    %v679 = vrot.slane %v678, 1
    %v680 = vadd.f32 %v678, %v679
    %v681 = vrot.slane %v382, 4
    %v682 = vadd.f32 %v382, %v681
    %v683 = vrot.slane %v682, 2
    %v684 = vadd.f32 %v682, %v683
    %v685 = vrot.slane %v684, 1
    %v686 = vadd.f32 %v684, %v685
    %v687 = vrcp.pop 8.0
    %v688 = vmul.f32 8.0, %v687
    %v689 = vsub.f32 1.0, %v688
    %v690 = vmul.f32 %v687, %v689
    %v691 = vadd.f32 %v687, %v690
    %vm692 = vweird.f32 %v687
    %v693 = vsel %vm692, %v687, %v691
    %v694 = vmul.f32 %v680, %v693
    %v695 = vmul.f32 %v686, %v693
    %696 = vmatpush.msra.mxu0 %v528
    %697 = vmatpush.msra.mxu0 %v525
    %698 = vmatpush.msra.mxu0 %v522
    %699 = vmatpush.msra.mxu0 %v519
    %700 = vmatpush.msra.mxu0 %v516
    %701 = vmatpush.msra.mxu0 %v513
    %702 = vmatpush.msra.mxu0 %v510
    %703 = vmatpush.msra.mxu0 %v507
    %704 = vmatpush.msra.mxu0 %v504
    %705 = vmatpush.msra.mxu0 %v501
    %706 = vmatpush.msra.mxu0 %v498
    %707 = vmatpush.msra.mxu0 %v495
    %708 = vmatpush.msra.mxu0 %v492
    %709 = vmatpush.msra.mxu0 %v489
    %710 = vmatpush.msra.mxu0 %v486
    %711 = vmatpush.msra.mxu0 %v483
    %712 = vmatmul.f32.gmra.mxu0 %v249
    %v713 = vpop.f32.mrf.mxu0
    %v714 = vadd.f32 %v694, %v713
    %715 = vdwg.mxu0
    %716 = vmatpush.msra.mxu0 %v673
    %717 = vmatpush.msra.mxu0 %v670
    %718 = vmatpush.msra.mxu0 %v667
    %719 = vmatpush.msra.mxu0 %v664
    %720 = vmatpush.msra.mxu0 %v661
    %721 = vmatpush.msra.mxu0 %v658
    %722 = vmatpush.msra.mxu0 %v655
    %723 = vmatpush.msra.mxu0 %v652
    %724 = vmatpush.msra.mxu0 %v649
    %725 = vmatpush.msra.mxu0 %v646
    %726 = vmatpush.msra.mxu0 %v643
    %727 = vmatpush.msra.mxu0 %v640
    %728 = vmatpush.msra.mxu0 %v637
    %729 = vmatpush.msra.mxu0 %v634
    %730 = vmatpush.msra.mxu0 %v631
    %731 = vmatpush.msra.mxu0 %v628
    %732 = vmatmul.f32.gmra.mxu0 %v250
    %v733 = vpop.f32.mrf.mxu0
    %v734 = vadd.f32 %v695, %v733
    %735 = vdwg.mxu0
    %736 = vst [vmem:[#allocation13] sm:$0xff] %v714
    %737 = vst [vmem:[#allocation13 + $0x8] sm:$0xff] %v734
    // Predicated region
    $region70: #{tpu_custom_call.1} parent=1 // pred_check
      _
    $region71: #{tpu_custom_call.1} parent=1 // pred_check_branch
      %739 = sbr.rel (0) target = $region73
    $region72: #{tpu_custom_call.1} parent=1 // pred_region
      %741 = vsyncadd [#allocation4], 0
      %s742 = sshll.u32 [#allocation13], 4
      %s743 = int_to_ptr.vmem [resolvable:$true] %s742
      %s744 = sshll.u32 %s11, 4
      %s745 = int_to_ptr.hbm [resolvable:$true] %s744
      %750 = dma.vmem_to_hbm [thread:$0]  %s743, 256, %s745, [#allocation4], 128, 128, 8
    $region73: #{tpu_custom_call.1} parent=1 // pred_fallthru
      _
    // Predicated region
    $region74: #{tpu_custom_call.1} parent=1 // pred_check
      _
    $region75: #{tpu_custom_call.1} parent=1 // pred_check_branch
      %752 = sbr.rel (0) target = $region77
    $region76: #{tpu_custom_call.1} parent=1 // pred_region
      %754 = dma.done [#allocation4], 256
    $region77: #{tpu_custom_call.1} parent=1 // pred_fallthru
      _
    %755 = vsyncpa [#allocation3], 1
    %756 = vsyncpa [#allocation6], 1
    %757 = vsyncpa [#allocation9], 1
    %758 = vsyncpa [#allocation12], 1
    %759 = vsyncpa [#allocation4], 1

// kernel: tpu_custom_call.1
$region0: #{tpu_custom_call.1}
  #allocation0 [shape = 'u32[]', space=smem, size = 0x4, offset = 0x4, fixed_abs, tag = 'smem constant byte address 0x4 - core index']
  #allocation1 [shape = 'u32[72,128]{1,0:T(1,128)}', space=vmem, size = 0x9000, scoped, tag = 'internal scratch']
  %s0 = inlined_call_operand.hbm [shape: f32[2,8,128], index: 0, kind: input, shape index: {}]
  %s1 = inlined_call_operand.hbm [shape: f32[128,128], index: 1, kind: input, shape index: {}]
  %s2 = inlined_call_operand.vmem [shape: f32[1,128], index: 2, kind: input, shape index: {}]
  %s3 = inlined_call_operand.hbm [shape: f32[128,128], index: 3, kind: input, shape index: {}]
  %s4 = inlined_call_operand.vmem [shape: f32[1,128], index: 4, kind: input, shape index: {}]
  %s5 = inlined_call_operand.hbm [shape: f32[128,128], index: 5, kind: input, shape index: {}]
  %s6 = inlined_call_operand.vmem [shape: f32[1,128], index: 6, kind: input, shape index: {}]
  %s7 = inlined_call_operand.hbm [shape: f32[128,128], index: 7, kind: input, shape index: {}]
  %s8 = inlined_call_operand.vmem [shape: f32[1,128], index: 8, kind: input, shape index: {}]
  %s9 = inlined_call_operand.hbm [shape: f32[128,128], index: 9, kind: input, shape index: {}]
  %s10 = inlined_call_operand.vmem [shape: f32[1,128], index: 10, kind: input, shape index: {}]
  %s11 = inlined_call_operand.hbm [shape: f32[2,8,128], index: 11, kind: output, shape index: {}]
  %s12 = sld [smem:[#allocation0]]
  $region78: #{tpu_custom_call.1} parent=0
    _
  %s14 = ssub.s32 1, %s12
  %s15 = scalar_select 0, %s14, %s12
  $region1: #{tpu_custom_call.1} parent=0
    #allocation2 [shape = 'u8[8192]{0}', space=vmem, size = 0x2000, scoped, tag = 'input window, operand 0, single buffered']
    #allocation3 [shape = 's32[1]{0}', space=sflag, size = 0x4, scoped, tag = 'scoped memory for tpu_custom_call.1']
    #allocation4 [shape = 's32[1]{0}', space=sflag, size = 0x4, scoped, tag = 'scoped memory for tpu_custom_call.1']
    #allocation5 [shape = 'u8[65536]{0}', space=vmem, size = 0x10000, scoped, tag = 'input window, operand 1, single buffered']
    #allocation6 [shape = 's32[1]{0}', space=sflag, size = 0x4, scoped, tag = 'scoped memory for tpu_custom_call.1']
    #allocation7 [shape = 'u8[65536]{0}', space=vmem, size = 0x10000, scoped, tag = 'input window, operand 3, single buffered']
    #allocation8 [shape = 'u8[65536]{0}', space=vmem, size = 0x10000, scoped, tag = 'input window, operand 5, single buffered']
    #allocation9 [shape = 's32[1]{0}', space=sflag, size = 0x4, scoped, tag = 'scoped memory for tpu_custom_call.1']
    #allocation10 [shape = 'u8[65536]{0}', space=vmem, size = 0x10000, scoped, tag = 'input window, operand 7, single buffered']
    #allocation11 [shape = 'u8[65536]{0}', space=vmem, size = 0x10000, scoped, tag = 'input window, operand 9, single buffered']
    #allocation12 [shape = 's32[1]{0}', space=sflag, size = 0x4, scoped, tag = 'scoped memory for tpu_custom_call.1']
    #allocation13 [shape = 'u8[8192]{0}', space=vmem, size = 0x2000, scoped, tag = 'output window, operand 0, single buffered']
    %16 = vsyncpa [#allocation3], 0
    %17 = vsyncpa [#allocation6], 0
    %18 = vsyncpa [#allocation9], 0
    %19 = vsyncpa [#allocation12], 0
    %20 = vsyncpa [#allocation4], 0
    // Predicated region
    $region2: #{tpu_custom_call.1} parent=1 // pred_check
      _
    $region3: #{tpu_custom_call.1} parent=1 // pred_check_branch
      %22 = sbr.rel (0) target = $region5
    $region4: #{tpu_custom_call.1} parent=1 // pred_region
      %24 = vsyncadd [#allocation3], 0
      %s25 = sshll.u32 %s0, 4
      %s26 = int_to_ptr.hbm [resolvable:$true] %s25
      %s27 = sshll.u32 [#allocation2], 4
      %s28 = int_to_ptr.vmem [resolvable:$true] %s27
      %33 = dma.hbm_to_vmem [thread:$0]  %s26, 256, %s28, [#allocation3], 128, 128, 8
    $region5: #{tpu_custom_call.1} parent=1 // pred_fallthru
      _
    // Predicated region
    $region6: #{tpu_custom_call.1} parent=1 // pred_check
      _
    $region7: #{tpu_custom_call.1} parent=1 // pred_check_branch
      %35 = sbr.rel (0) target = $region9
    $region8: #{tpu_custom_call.1} parent=1 // pred_region
      %37 = vsyncadd [#allocation6], 0
      %s38 = sshll.u32 %s1, 4
      %s39 = int_to_ptr.hbm [resolvable:$true] %s38
      %s40 = sshll.u32 [#allocation5], 4
      %s41 = int_to_ptr.vmem [resolvable:$true] %s40
      %46 = dma.hbm_to_vmem [thread:$0]  %s39, 2048, %s41, [#allocation6], 128, 128, 8
    $region9: #{tpu_custom_call.1} parent=1 // pred_fallthru
      _
    // Predicated region
    $region10: #{tpu_custom_call.1} parent=1 // pred_check
      _
    $region11: #{tpu_custom_call.1} parent=1 // pred_check_branch
      %48 = sbr.rel (0) target = $region13
    $region12: #{tpu_custom_call.1} parent=1 // pred_region
      _
    $region13: #{tpu_custom_call.1} parent=1 // pred_fallthru
      _
    // Predicated region
    $region14: #{tpu_custom_call.1} parent=1 // pred_check
      _
    $region15: #{tpu_custom_call.1} parent=1 // pred_check_branch
      %50 = sbr.rel (0) target = $region17
    $region16: #{tpu_custom_call.1} parent=1 // pred_region
      %52 = vsyncadd [#allocation6], 0
      %s53 = sshll.u32 %s3, 4
      %s54 = int_to_ptr.hbm [resolvable:$true] %s53
      %s55 = sshll.u32 [#allocation7], 4
      %s56 = int_to_ptr.vmem [resolvable:$true] %s55
      %61 = dma.hbm_to_vmem [thread:$0]  %s54, 2048, %s56, [#allocation6], 128, 128, 8
    $region17: #{tpu_custom_call.1} parent=1 // pred_fallthru
      _
    // Predicated region
    $region18: #{tpu_custom_call.1} parent=1 // pred_check
      _
    $region19: #{tpu_custom_call.1} parent=1 // pred_check_branch
      %63 = sbr.rel (0) target = $region21
    $region20: #{tpu_custom_call.1} parent=1 // pred_region
      _
    $region21: #{tpu_custom_call.1} parent=1 // pred_fallthru
      _
    // Predicated region
    $region22: #{tpu_custom_call.1} parent=1 // pred_check
      _
    $region23: #{tpu_custom_call.1} parent=1 // pred_check_branch
      %65 = sbr.rel (0) target = $region25
    $region24: #{tpu_custom_call.1} parent=1 // pred_region
      %67 = vsyncadd [#allocation9], 0
      %s68 = sshll.u32 %s5, 4
      %s69 = int_to_ptr.hbm [resolvable:$true] %s68
      %s70 = sshll.u32 [#allocation8], 4
      %s71 = int_to_ptr.vmem [resolvable:$true] %s70
      %76 = dma.hbm_to_vmem [thread:$0]  %s69, 2048, %s71, [#allocation9], 128, 128, 8
    $region25: #{tpu_custom_call.1} parent=1 // pred_fallthru
      _
    // Predicated region
    $region26: #{tpu_custom_call.1} parent=1 // pred_check
      _
    $region27: #{tpu_custom_call.1} parent=1 // pred_check_branch
      %78 = sbr.rel (0) target = $region29
    $region28: #{tpu_custom_call.1} parent=1 // pred_region
      _
    $region29: #{tpu_custom_call.1} parent=1 // pred_fallthru
      _
    // Predicated region
    $region30: #{tpu_custom_call.1} parent=1 // pred_check
      _
    $region31: #{tpu_custom_call.1} parent=1 // pred_check_branch
      %80 = sbr.rel (0) target = $region33
    $region32: #{tpu_custom_call.1} parent=1 // pred_region
      %82 = vsyncadd [#allocation9], 0
      %s83 = sshll.u32 %s7, 4
      %s84 = int_to_ptr.hbm [resolvable:$true] %s83
      %s85 = sshll.u32 [#allocation10], 4
      %s86 = int_to_ptr.vmem [resolvable:$true] %s85
      %91 = dma.hbm_to_vmem [thread:$0]  %s84, 2048, %s86, [#allocation9], 128, 128, 8
    $region33: #{tpu_custom_call.1} parent=1 // pred_fallthru
      _
    // Predicated region
    $region34: #{tpu_custom_call.1} parent=1 // pred_check
      _
    $region35: #{tpu_custom_call.1} parent=1 // pred_check_branch
      %93 = sbr.rel (0) target = $region37
    $region36: #{tpu_custom_call.1} parent=1 // pred_region
      _
    $region37: #{tpu_custom_call.1} parent=1 // pred_fallthru
      _
    // Predicated region
    $region38: #{tpu_custom_call.1} parent=1 // pred_check
      _
    $region39: #{tpu_custom_call.1} parent=1 // pred_check_branch
      %95 = sbr.rel (0) target = $region41
    $region40: #{tpu_custom_call.1} parent=1 // pred_region
      %97 = vsyncadd [#allocation12], 0
      %s98 = sshll.u32 %s9, 4
      %s99 = int_to_ptr.hbm [resolvable:$true] %s98
      %s100 = sshll.u32 [#allocation11], 4
      %s101 = int_to_ptr.vmem [resolvable:$true] %s100
      %106 = dma.hbm_to_vmem [thread:$0]  %s99, 2048, %s101, [#allocation12], 128, 128, 8
    $region41: #{tpu_custom_call.1} parent=1 // pred_fallthru
      _
    // Predicated region
    $region42: #{tpu_custom_call.1} parent=1 // pred_check
      _
    $region43: #{tpu_custom_call.1} parent=1 // pred_check_branch
      %108 = sbr.rel (0) target = $region45
    $region44: #{tpu_custom_call.1} parent=1 // pred_region
      _
    $region45: #{tpu_custom_call.1} parent=1 // pred_fallthru
      _
    // Predicated region
    $region46: #{tpu_custom_call.1} parent=1 // pred_check
      _
    $region47: #{tpu_custom_call.1} parent=1 // pred_check_branch
      %110 = sbr.rel (0) target = $region49
    $region48: #{tpu_custom_call.1} parent=1 // pred_region
      %112 = dma.done [#allocation3], 256
    $region49: #{tpu_custom_call.1} parent=1 // pred_fallthru
      _
    // Predicated region
    $region50: #{tpu_custom_call.1} parent=1 // pred_check
      _
    $region51: #{tpu_custom_call.1} parent=1 // pred_check_branch
      %114 = sbr.rel (0) target = $region53
    $region52: #{tpu_custom_call.1} parent=1 // pred_region
      %116 = dma.done [#allocation6], 2048
    $region53: #{tpu_custom_call.1} parent=1 // pred_fallthru
      _
    // Predicated region
    $region54: #{tpu_custom_call.1} parent=1 // pred_check
      _
    $region55: #{tpu_custom_call.1} parent=1 // pred_check_branch
      %118 = sbr.rel (0) target = $region57
    $region56: #{tpu_custom_call.1} parent=1 // pred_region
      %120 = dma.done [#allocation6], 2048
    $region57: #{tpu_custom_call.1} parent=1 // pred_fallthru
      _
    // Predicated region
    $region58: #{tpu_custom_call.1} parent=1 // pred_check
      _
    $region59: #{tpu_custom_call.1} parent=1 // pred_check_branch
      %122 = sbr.rel (0) target = $region61
    $region60: #{tpu_custom_call.1} parent=1 // pred_region
      %124 = dma.done [#allocation9], 2048
    $region61: #{tpu_custom_call.1} parent=1 // pred_fallthru
      _
    // Predicated region
    $region62: #{tpu_custom_call.1} parent=1 // pred_check
      _
    $region63: #{tpu_custom_call.1} parent=1 // pred_check_branch
      %126 = sbr.rel (0) target = $region65
    $region64: #{tpu_custom_call.1} parent=1 // pred_region
      %128 = dma.done [#allocation9], 2048
    $region65: #{tpu_custom_call.1} parent=1 // pred_fallthru
      _
    // Predicated region
    $region66: #{tpu_custom_call.1} parent=1 // pred_check
      _
    $region67: #{tpu_custom_call.1} parent=1 // pred_check_branch
      %130 = sbr.rel (0) target = $region69
    $region68: #{tpu_custom_call.1} parent=1 // pred_region
      %132 = dma.done [#allocation12], 2048
    $region69: #{tpu_custom_call.1} parent=1 // pred_fallthru
      _
    %v133 = vld [vmem:[#allocation2] sm:$0xff]
    %v134 = vld [vmem:[#allocation2 + $0x8] sm:$0xff]
    %v135 = vld [vmem:[#allocation5] sm:$0xff]
    %v136 = vld [vmem:[#allocation5 + $0x8] sm:$0xff]
    %v137 = vld [vmem:[#allocation5 + $0x10] sm:$0xff]
    %v138 = vld [vmem:[#allocation5 + $0x18] sm:$0xff]
    %v139 = vld [vmem:[#allocation5 + $0x20] sm:$0xff]
    %v140 = vld [vmem:[#allocation5 + $0x28] sm:$0xff]
    %v141 = vld [vmem:[#allocation5 + $0x30] sm:$0xff]
    %v142 = vld [vmem:[#allocation5 + $0x38] sm:$0xff]
    %v143 = vld [vmem:[#allocation5 + $0x40] sm:$0xff]
    %v144 = vld [vmem:[#allocation5 + $0x48] sm:$0xff]
    %v145 = vld [vmem:[#allocation5 + $0x50] sm:$0xff]
    %v146 = vld [vmem:[#allocation5 + $0x58] sm:$0xff]
    %v147 = vld [vmem:[#allocation5 + $0x60] sm:$0xff]
    %v148 = vld [vmem:[#allocation5 + $0x68] sm:$0xff]
    %v149 = vld [vmem:[#allocation5 + $0x70] sm:$0xff]
    %v150 = vld [vmem:[#allocation5 + $0x78] sm:$0xff]
    %v151 = vld [vmem:[%s2] sm:$0x1]
    %v153 = vperm.slane %v151, 0
    %155 = vmatpush.msra.mxu0 %v150
    %156 = vmatpush.msra.mxu0 %v149
    %157 = vmatpush.msra.mxu0 %v148
    %158 = vmatpush.msra.mxu0 %v147
    %159 = vmatpush.msra.mxu0 %v146
    %160 = vmatpush.msra.mxu0 %v145
    %161 = vmatpush.msra.mxu0 %v144
    %162 = vmatpush.msra.mxu0 %v143
    %163 = vmatpush.msra.mxu0 %v142
    %164 = vmatpush.msra.mxu0 %v141
    %165 = vmatpush.msra.mxu0 %v140
    %166 = vmatpush.msra.mxu0 %v139
    %167 = vmatpush.msra.mxu0 %v138
    %168 = vmatpush.msra.mxu0 %v137
    %169 = vmatpush.msra.mxu0 %v136
    %170 = vmatpush.msra.mxu0 %v135
    %171 = vmatmul.f32.gmra.mxu0 %v133
    %v172 = vpop.f32.mrf.mxu0
    %v173 = vadd.f32 %v153, %v172
    %174 = vmatmul.f32.gmra.mxu0 %v134
    %v175 = vpop.f32.mrf.mxu0
    %v176 = vadd.f32 %v153, %v175
    %177 = vdwg.mxu0
    %v178 = vmax.f32 %v173, 0.0
    %v179 = vmax.f32 %v176, 0.0
    %v180 = vld [vmem:[#allocation7] sm:$0xff]
    %v181 = vld [vmem:[#allocation7 + $0x8] sm:$0xff]
    %v182 = vld [vmem:[#allocation7 + $0x10] sm:$0xff]
    %v183 = vld [vmem:[#allocation7 + $0x18] sm:$0xff]
    %v184 = vld [vmem:[#allocation7 + $0x20] sm:$0xff]
    %v185 = vld [vmem:[#allocation7 + $0x28] sm:$0xff]
    %v186 = vld [vmem:[#allocation7 + $0x30] sm:$0xff]
    %v187 = vld [vmem:[#allocation7 + $0x38] sm:$0xff]
    %v188 = vld [vmem:[#allocation7 + $0x40] sm:$0xff]
    %v189 = vld [vmem:[#allocation7 + $0x48] sm:$0xff]
    %v190 = vld [vmem:[#allocation7 + $0x50] sm:$0xff]
    %v191 = vld [vmem:[#allocation7 + $0x58] sm:$0xff]
    %v192 = vld [vmem:[#allocation7 + $0x60] sm:$0xff]
    %v193 = vld [vmem:[#allocation7 + $0x68] sm:$0xff]
    %v194 = vld [vmem:[#allocation7 + $0x70] sm:$0xff]
    %v195 = vld [vmem:[#allocation7 + $0x78] sm:$0xff]
    %v196 = vld [vmem:[%s4] sm:$0x1]
    %v198 = vperm.slane %v196, 0
    %200 = vmatpush.msra.mxu0 %v195
    %201 = vmatpush.msra.mxu0 %v194
    %202 = vmatpush.msra.mxu0 %v193
    %203 = vmatpush.msra.mxu0 %v192
    %204 = vmatpush.msra.mxu0 %v191
    %205 = vmatpush.msra.mxu0 %v190
    %206 = vmatpush.msra.mxu0 %v189
    %207 = vmatpush.msra.mxu0 %v188
    %208 = vmatpush.msra.mxu0 %v187
    %209 = vmatpush.msra.mxu0 %v186
    %210 = vmatpush.msra.mxu0 %v185
    %211 = vmatpush.msra.mxu0 %v184
    %212 = vmatpush.msra.mxu0 %v183
    %213 = vmatpush.msra.mxu0 %v182
    %214 = vmatpush.msra.mxu0 %v181
    %215 = vmatpush.msra.mxu0 %v180
    %216 = vmatmul.f32.gmra.mxu0 %v178
    %v217 = vpop.f32.mrf.mxu0
    %v218 = vadd.f32 %v198, %v217
    %219 = vmatmul.f32.gmra.mxu0 %v179
    %v220 = vpop.f32.mrf.mxu0
    %v221 = vadd.f32 %v198, %v220
    %222 = vdwg.mxu0
    %v223 = vmul.f32 %v218, %v218
    %v224 = vmul.f32 %v221, %v221
    %225 = vadd.xlane.f32.xlu0 %v223
    %v226 = vpop.xlane.xlu0 %225
    %227 = vadd.xlane.f32.xlu0 %v224
    %v228 = vpop.xlane.xlu0 %227
    %v229 = vrsqrt.pop %v226
    %v230 = vmul.f32 %v229, %v226
    %v231 = vmul.f32 %v230, %v229
    %v232 = vmul.f32 0.5, %v231
    %v233 = vsub.f32 1.5, %v232
    %v234 = vmul.f32 %v229, %v233
    %vm235 = vweird.f32 %v226
    %vm236 = vweird.f32 %v229
    %vm237 = vmor %vm235, %vm236
    %v238 = vsel %vm237, %v229, %v234
    %v239 = vrsqrt.pop %v228
    %v240 = vmul.f32 %v239, %v228
    %v241 = vmul.f32 %v240, %v239
    %v242 = vmul.f32 0.5, %v241
    %v243 = vsub.f32 1.5, %v242
    %v244 = vmul.f32 %v239, %v243
    %vm245 = vweird.f32 %v228
    %vm246 = vweird.f32 %v239
    %vm247 = vmor %vm245, %vm246
    %v248 = vsel %vm247, %v239, %v244
    %v249 = vmul.f32 %v218, %v238
    %v250 = vmul.f32 %v221, %v248
    %v251 = vld [vmem:[#allocation8] sm:$0xff]
    %v252 = vld [vmem:[#allocation8 + $0x8] sm:$0xff]
    %v253 = vld [vmem:[#allocation8 + $0x10] sm:$0xff]
    %v254 = vld [vmem:[#allocation8 + $0x18] sm:$0xff]
    %v255 = vld [vmem:[#allocation8 + $0x20] sm:$0xff]
    %v256 = vld [vmem:[#allocation8 + $0x28] sm:$0xff]
    %v257 = vld [vmem:[#allocation8 + $0x30] sm:$0xff]
    %v258 = vld [vmem:[#allocation8 + $0x38] sm:$0xff]
    %v259 = vld [vmem:[#allocation8 + $0x40] sm:$0xff]
    %v260 = vld [vmem:[#allocation8 + $0x48] sm:$0xff]
    %v261 = vld [vmem:[#allocation8 + $0x50] sm:$0xff]
    %v262 = vld [vmem:[#allocation8 + $0x58] sm:$0xff]
    %v263 = vld [vmem:[#allocation8 + $0x60] sm:$0xff]
    %v264 = vld [vmem:[#allocation8 + $0x68] sm:$0xff]
    %v265 = vld [vmem:[#allocation8 + $0x70] sm:$0xff]
    %v266 = vld [vmem:[#allocation8 + $0x78] sm:$0xff]
    %v267 = vld [vmem:[%s6] sm:$0x1]
    %v269 = vperm.slane %v267, 0
    %271 = vmatpush.msra.mxu0 %v266
    %272 = vmatpush.msra.mxu0 %v265
    %273 = vmatpush.msra.mxu0 %v264
    %274 = vmatpush.msra.mxu0 %v263
    %275 = vmatpush.msra.mxu0 %v262
    %276 = vmatpush.msra.mxu0 %v261
    %277 = vmatpush.msra.mxu0 %v260
    %278 = vmatpush.msra.mxu0 %v259
    %279 = vmatpush.msra.mxu0 %v258
    %280 = vmatpush.msra.mxu0 %v257
    %281 = vmatpush.msra.mxu0 %v256
    %282 = vmatpush.msra.mxu0 %v255
    %283 = vmatpush.msra.mxu0 %v254
    %284 = vmatpush.msra.mxu0 %v253
    %285 = vmatpush.msra.mxu0 %v252
    %286 = vmatpush.msra.mxu0 %v251
    %287 = vmatmul.f32.gmra.mxu0 %v133
    %v288 = vpop.f32.mrf.mxu0
    %v289 = vadd.f32 %v269, %v288
    %290 = vmatmul.f32.gmra.mxu0 %v134
    %v291 = vpop.f32.mrf.mxu0
    %v292 = vadd.f32 %v269, %v291
    %293 = vdwg.mxu0
    %v294 = vmax.f32 %v289, 0.0
    %v295 = vmax.f32 %v292, 0.0
    %v296 = vld [vmem:[#allocation10] sm:$0xff]
    %v297 = vld [vmem:[#allocation10 + $0x8] sm:$0xff]
    %v298 = vld [vmem:[#allocation10 + $0x10] sm:$0xff]
    %v299 = vld [vmem:[#allocation10 + $0x18] sm:$0xff]
    %v300 = vld [vmem:[#allocation10 + $0x20] sm:$0xff]
    %v301 = vld [vmem:[#allocation10 + $0x28] sm:$0xff]
    %v302 = vld [vmem:[#allocation10 + $0x30] sm:$0xff]
    %v303 = vld [vmem:[#allocation10 + $0x38] sm:$0xff]
    %v304 = vld [vmem:[#allocation10 + $0x40] sm:$0xff]
    %v305 = vld [vmem:[#allocation10 + $0x48] sm:$0xff]
    %v306 = vld [vmem:[#allocation10 + $0x50] sm:$0xff]
    %v307 = vld [vmem:[#allocation10 + $0x58] sm:$0xff]
    %v308 = vld [vmem:[#allocation10 + $0x60] sm:$0xff]
    %v309 = vld [vmem:[#allocation10 + $0x68] sm:$0xff]
    %v310 = vld [vmem:[#allocation10 + $0x70] sm:$0xff]
    %v311 = vld [vmem:[#allocation10 + $0x78] sm:$0xff]
    %v312 = vld [vmem:[%s8] sm:$0x1]
    %v314 = vperm.slane %v312, 0
    %316 = vmatpush.msra.mxu0 %v311
    %317 = vmatpush.msra.mxu0 %v310
    %318 = vmatpush.msra.mxu0 %v309
    %319 = vmatpush.msra.mxu0 %v308
    %320 = vmatpush.msra.mxu0 %v307
    %321 = vmatpush.msra.mxu0 %v306
    %322 = vmatpush.msra.mxu0 %v305
    %323 = vmatpush.msra.mxu0 %v304
    %324 = vmatpush.msra.mxu0 %v303
    %325 = vmatpush.msra.mxu0 %v302
    %326 = vmatpush.msra.mxu0 %v301
    %327 = vmatpush.msra.mxu0 %v300
    %328 = vmatpush.msra.mxu0 %v299
    %329 = vmatpush.msra.mxu0 %v298
    %330 = vmatpush.msra.mxu0 %v297
    %331 = vmatpush.msra.mxu0 %v296
    %332 = vmatmul.f32.gmra.mxu0 %v294
    %v333 = vpop.f32.mrf.mxu0
    %v334 = vadd.f32 %v314, %v333
    %335 = vmatmul.f32.gmra.mxu0 %v295
    %v336 = vpop.f32.mrf.mxu0
    %v337 = vadd.f32 %v314, %v336
    %338 = vdwg.mxu0
    %v339 = vmax.f32 %v334, 0.0
    %v340 = vmax.f32 %v337, 0.0
    %v341 = vld [vmem:[#allocation11] sm:$0xff]
    %v342 = vld [vmem:[#allocation11 + $0x8] sm:$0xff]
    %v343 = vld [vmem:[#allocation11 + $0x10] sm:$0xff]
    %v344 = vld [vmem:[#allocation11 + $0x18] sm:$0xff]
    %v345 = vld [vmem:[#allocation11 + $0x20] sm:$0xff]
    %v346 = vld [vmem:[#allocation11 + $0x28] sm:$0xff]
    %v347 = vld [vmem:[#allocation11 + $0x30] sm:$0xff]
    %v348 = vld [vmem:[#allocation11 + $0x38] sm:$0xff]
    %v349 = vld [vmem:[#allocation11 + $0x40] sm:$0xff]
    %v350 = vld [vmem:[#allocation11 + $0x48] sm:$0xff]
    %v351 = vld [vmem:[#allocation11 + $0x50] sm:$0xff]
    %v352 = vld [vmem:[#allocation11 + $0x58] sm:$0xff]
    %v353 = vld [vmem:[#allocation11 + $0x60] sm:$0xff]
    %v354 = vld [vmem:[#allocation11 + $0x68] sm:$0xff]
    %v355 = vld [vmem:[#allocation11 + $0x70] sm:$0xff]
    %v356 = vld [vmem:[#allocation11 + $0x78] sm:$0xff]
    %v357 = vld [vmem:[%s10] sm:$0x1]
    %v359 = vperm.slane %v357, 0
    %361 = vmatpush.msra.mxu0 %v356
    %362 = vmatpush.msra.mxu0 %v355
    %363 = vmatpush.msra.mxu0 %v354
    %364 = vmatpush.msra.mxu0 %v353
    %365 = vmatpush.msra.mxu0 %v352
    %366 = vmatpush.msra.mxu0 %v351
    %367 = vmatpush.msra.mxu0 %v350
    %368 = vmatpush.msra.mxu0 %v349
    %369 = vmatpush.msra.mxu0 %v348
    %370 = vmatpush.msra.mxu0 %v347
    %371 = vmatpush.msra.mxu0 %v346
    %372 = vmatpush.msra.mxu0 %v345
    %373 = vmatpush.msra.mxu0 %v344
    %374 = vmatpush.msra.mxu0 %v343
    %375 = vmatpush.msra.mxu0 %v342
    %376 = vmatpush.msra.mxu0 %v341
    %377 = vmatmul.f32.gmra.mxu0 %v339
    %v378 = vpop.f32.mrf.mxu0
    %v379 = vadd.f32 %v359, %v378
    %380 = vmatmul.f32.gmra.mxu0 %v340
    %v381 = vpop.f32.mrf.mxu0
    %v382 = vadd.f32 %v359, %v381
    %383 = vdwg.mxu0
    %384 = vxpose.xlu0.b32.start [1/16] %v249, 128
    %385 = vxpose.xlu0.b32.cont [2/16] 0.0, 128
    %386 = vxpose.xlu0.b32.cont [3/16] 0.0, 128
    %387 = vxpose.xlu0.b32.cont [4/16] 0.0, 128
    %388 = vxpose.xlu0.b32.cont [5/16] 0.0, 128
    %389 = vxpose.xlu0.b32.cont [6/16] 0.0, 128
    %390 = vxpose.xlu0.b32.cont [7/16] 0.0, 128
    %391 = vxpose.xlu0.b32.cont [8/16] 0.0, 128
    %392 = vxpose.xlu0.b32.cont [9/16] 0.0, 128
    %393 = vxpose.xlu0.b32.cont [10/16] 0.0, 128
    %394 = vxpose.xlu0.b32.cont [11/16] 0.0, 128
    %395 = vxpose.xlu0.b32.cont [12/16] 0.0, 128
    %396 = vxpose.xlu0.b32.cont [13/16] 0.0, 128
    %397 = vxpose.xlu0.b32.cont [14/16] 0.0, 128
    %398 = vxpose.xlu0.b32.cont [15/16] 0.0, 128
    %399 = vxpose.xlu0.b32.end [16/16] 0.0, 128
    %v400 = vpop.trf.xlu0
    %v401 = vpop.trf.xlu0
    %v402 = vpop.trf.xlu0
    %v403 = vpop.trf.xlu0
    %v404 = vpop.trf.xlu0
    %v405 = vpop.trf.xlu0
    %v406 = vpop.trf.xlu0
    %v407 = vpop.trf.xlu0
    %v408 = vpop.trf.xlu0
    %v409 = vpop.trf.xlu0
    %v410 = vpop.trf.xlu0
    %v411 = vpop.trf.xlu0
    %v412 = vpop.trf.xlu0
    %v413 = vpop.trf.xlu0
    %v414 = vpop.trf.xlu0
    %v415 = vpop.trf.xlu0
    %vm416 = vcmask 64512
    %v418 = vsel %vm416, %v400, 0
    %v421 = vsel %vm416, %v401, 0
    %v424 = vsel %vm416, %v402, 0
    %v427 = vsel %vm416, %v403, 0
    %v430 = vsel %vm416, %v404, 0
    %v433 = vsel %vm416, %v405, 0
    %v436 = vsel %vm416, %v406, 0
    %v439 = vsel %vm416, %v407, 0
    %v442 = vsel %vm416, %v408, 0
    %v445 = vsel %vm416, %v409, 0
    %v448 = vsel %vm416, %v410, 0
    %v451 = vsel %vm416, %v411, 0
    %v454 = vsel %vm416, %v412, 0
    %v457 = vsel %vm416, %v413, 0
    %v460 = vsel %vm416, %v414, 0
    %v463 = vsel %vm416, %v415, 0
    %465 = vmatpush.msra.mxu0 0.0
    %466 = vmatpush.msra.mxu0 0.0
    %467 = vmatpush.msra.mxu0 0.0
    %468 = vmatpush.msra.mxu0 0.0
    %469 = vmatpush.msra.mxu0 0.0
    %470 = vmatpush.msra.mxu0 0.0
    %471 = vmatpush.msra.mxu0 0.0
    %472 = vmatpush.msra.mxu0 0.0
    %473 = vmatpush.msra.mxu0 0.0
    %474 = vmatpush.msra.mxu0 0.0
    %475 = vmatpush.msra.mxu0 0.0
    %476 = vmatpush.msra.mxu0 0.0
    %477 = vmatpush.msra.mxu0 0.0
    %478 = vmatpush.msra.mxu0 0.0
    %479 = vmatpush.msra.mxu0 0.0
    %480 = vmatpush.msra.mxu0 %v379
    %481 = vmatmul.f32.gmra.mxu0 %v418
    %v482 = vpop.f32.mrf.mxu0
    %v483 = vadd.f32 0.0, %v482
    %484 = vmatmul.f32.gmra.mxu0 %v421
    %v485 = vpop.f32.mrf.mxu0
    %v486 = vadd.f32 0.0, %v485
    %487 = vmatmul.f32.gmra.mxu0 %v424
    %v488 = vpop.f32.mrf.mxu0
    %v489 = vadd.f32 0.0, %v488
    %490 = vmatmul.f32.gmra.mxu0 %v427
    %v491 = vpop.f32.mrf.mxu0
    %v492 = vadd.f32 0.0, %v491
    %493 = vmatmul.f32.gmra.mxu0 %v430
    %v494 = vpop.f32.mrf.mxu0
    %v495 = vadd.f32 0.0, %v494
    %496 = vmatmul.f32.gmra.mxu0 %v433
    %v497 = vpop.f32.mrf.mxu0
    %v498 = vadd.f32 0.0, %v497
    %499 = vmatmul.f32.gmra.mxu0 %v436
    %v500 = vpop.f32.mrf.mxu0
    %v501 = vadd.f32 0.0, %v500
    %502 = vmatmul.f32.gmra.mxu0 %v439
    %v503 = vpop.f32.mrf.mxu0
    %v504 = vadd.f32 0.0, %v503
    %505 = vmatmul.f32.gmra.mxu0 %v442
    %v506 = vpop.f32.mrf.mxu0
    %v507 = vadd.f32 0.0, %v506
    %508 = vmatmul.f32.gmra.mxu0 %v445
    %v509 = vpop.f32.mrf.mxu0
    %v510 = vadd.f32 0.0, %v509
    %511 = vmatmul.f32.gmra.mxu0 %v448
    %v512 = vpop.f32.mrf.mxu0
    %v513 = vadd.f32 0.0, %v512
    %514 = vmatmul.f32.gmra.mxu0 %v451
    %v515 = vpop.f32.mrf.mxu0
    %v516 = vadd.f32 0.0, %v515
    %517 = vmatmul.f32.gmra.mxu0 %v454
    %v518 = vpop.f32.mrf.mxu0
    %v519 = vadd.f32 0.0, %v518
    %520 = vmatmul.f32.gmra.mxu0 %v457
    %v521 = vpop.f32.mrf.mxu0
    %v522 = vadd.f32 0.0, %v521
    %523 = vmatmul.f32.gmra.mxu0 %v460
    %v524 = vpop.f32.mrf.mxu0
    %v525 = vadd.f32 0.0, %v524
    %526 = vmatmul.f32.gmra.mxu0 %v463
    %v527 = vpop.f32.mrf.mxu0
    %v528 = vadd.f32 0.0, %v527
    %529 = vdwg.mxu0
    %530 = vxpose.xlu0.b32.start [1/16] %v250, 128
    %531 = vxpose.xlu0.b32.cont [2/16] 0.0, 128
    %532 = vxpose.xlu0.b32.cont [3/16] 0.0, 128
    %533 = vxpose.xlu0.b32.cont [4/16] 0.0, 128
    %534 = vxpose.xlu0.b32.cont [5/16] 0.0, 128
    %535 = vxpose.xlu0.b32.cont [6/16] 0.0, 128
    %536 = vxpose.xlu0.b32.cont [7/16] 0.0, 128
    %537 = vxpose.xlu0.b32.cont [8/16] 0.0, 128
    %538 = vxpose.xlu0.b32.cont [9/16] 0.0, 128
    %539 = vxpose.xlu0.b32.cont [10/16] 0.0, 128
    %540 = vxpose.xlu0.b32.cont [11/16] 0.0, 128
    %541 = vxpose.xlu0.b32.cont [12/16] 0.0, 128
    %542 = vxpose.xlu0.b32.cont [13/16] 0.0, 128
    %543 = vxpose.xlu0.b32.cont [14/16] 0.0, 128
    %544 = vxpose.xlu0.b32.cont [15/16] 0.0, 128
    %545 = vxpose.xlu0.b32.end [16/16] 0.0, 128
    %v546 = vpop.trf.xlu0
    %v547 = vpop.trf.xlu0
    %v548 = vpop.trf.xlu0
    %v549 = vpop.trf.xlu0
    %v550 = vpop.trf.xlu0
    %v551 = vpop.trf.xlu0
    %v552 = vpop.trf.xlu0
    %v553 = vpop.trf.xlu0
    %v554 = vpop.trf.xlu0
    %v555 = vpop.trf.xlu0
    %v556 = vpop.trf.xlu0
    %v557 = vpop.trf.xlu0
    %v558 = vpop.trf.xlu0
    %v559 = vpop.trf.xlu0
    %v560 = vpop.trf.xlu0
    %v561 = vpop.trf.xlu0
    %v563 = vsel %vm416, %v546, 0
    %v566 = vsel %vm416, %v547, 0
    %v569 = vsel %vm416, %v548, 0
    %v572 = vsel %vm416, %v549, 0
    %v575 = vsel %vm416, %v550, 0
    %v578 = vsel %vm416, %v551, 0
    %v581 = vsel %vm416, %v552, 0
    %v584 = vsel %vm416, %v553, 0
    %v587 = vsel %vm416, %v554, 0
    %v590 = vsel %vm416, %v555, 0
    %v593 = vsel %vm416, %v556, 0
    %v596 = vsel %vm416, %v557, 0
    %v599 = vsel %vm416, %v558, 0
    %v602 = vsel %vm416, %v559, 0
    %v605 = vsel %vm416, %v560, 0
    %v608 = vsel %vm416, %v561, 0
    %610 = vmatpush.msra.mxu0 0.0
    %611 = vmatpush.msra.mxu0 0.0
    %612 = vmatpush.msra.mxu0 0.0
    %613 = vmatpush.msra.mxu0 0.0
    %614 = vmatpush.msra.mxu0 0.0
    %615 = vmatpush.msra.mxu0 0.0
    %616 = vmatpush.msra.mxu0 0.0
    %617 = vmatpush.msra.mxu0 0.0
    %618 = vmatpush.msra.mxu0 0.0
    %619 = vmatpush.msra.mxu0 0.0
    %620 = vmatpush.msra.mxu0 0.0
    %621 = vmatpush.msra.mxu0 0.0
    %622 = vmatpush.msra.mxu0 0.0
    %623 = vmatpush.msra.mxu0 0.0
    %624 = vmatpush.msra.mxu0 0.0
    %625 = vmatpush.msra.mxu0 %v382
    %626 = vmatmul.f32.gmra.mxu0 %v563
    %v627 = vpop.f32.mrf.mxu0
    %v628 = vadd.f32 0.0, %v627
    %629 = vmatmul.f32.gmra.mxu0 %v566
    %v630 = vpop.f32.mrf.mxu0
    %v631 = vadd.f32 0.0, %v630
    %632 = vmatmul.f32.gmra.mxu0 %v569
    %v633 = vpop.f32.mrf.mxu0
    %v634 = vadd.f32 0.0, %v633
    %635 = vmatmul.f32.gmra.mxu0 %v572
    %v636 = vpop.f32.mrf.mxu0
    %v637 = vadd.f32 0.0, %v636
    %638 = vmatmul.f32.gmra.mxu0 %v575
    %v639 = vpop.f32.mrf.mxu0
    %v640 = vadd.f32 0.0, %v639
    %641 = vmatmul.f32.gmra.mxu0 %v578
    %v642 = vpop.f32.mrf.mxu0
    %v643 = vadd.f32 0.0, %v642
    %644 = vmatmul.f32.gmra.mxu0 %v581
    %v645 = vpop.f32.mrf.mxu0
    %v646 = vadd.f32 0.0, %v645
    %647 = vmatmul.f32.gmra.mxu0 %v584
    %v648 = vpop.f32.mrf.mxu0
    %v649 = vadd.f32 0.0, %v648
    %650 = vmatmul.f32.gmra.mxu0 %v587
    %v651 = vpop.f32.mrf.mxu0
    %v652 = vadd.f32 0.0, %v651
    %653 = vmatmul.f32.gmra.mxu0 %v590
    %v654 = vpop.f32.mrf.mxu0
    %v655 = vadd.f32 0.0, %v654
    %656 = vmatmul.f32.gmra.mxu0 %v593
    %v657 = vpop.f32.mrf.mxu0
    %v658 = vadd.f32 0.0, %v657
    %659 = vmatmul.f32.gmra.mxu0 %v596
    %v660 = vpop.f32.mrf.mxu0
    %v661 = vadd.f32 0.0, %v660
    %662 = vmatmul.f32.gmra.mxu0 %v599
    %v663 = vpop.f32.mrf.mxu0
    %v664 = vadd.f32 0.0, %v663
    %665 = vmatmul.f32.gmra.mxu0 %v602
    %v666 = vpop.f32.mrf.mxu0
    %v667 = vadd.f32 0.0, %v666
    %668 = vmatmul.f32.gmra.mxu0 %v605
    %v669 = vpop.f32.mrf.mxu0
    %v670 = vadd.f32 0.0, %v669
    %671 = vmatmul.f32.gmra.mxu0 %v608
    %v672 = vpop.f32.mrf.mxu0
    %v673 = vadd.f32 0.0, %v672
    %674 = vdwg.mxu0
    %v675 = vrot.slane %v379, 4
    %v676 = vadd.f32 %v379, %v675
    %v677 = vrot.slane %v676, 2
    %v678 = vadd.f32 %v676, %v677
    %v679 = vrot.slane %v678, 1
    %v680 = vadd.f32 %v678, %v679
    %v681 = vrot.slane %v382, 4
    %v682 = vadd.f32 %v382, %v681
    %v683 = vrot.slane %v682, 2
    %v684 = vadd.f32 %v682, %v683
    %v685 = vrot.slane %v684, 1
    %v686 = vadd.f32 %v684, %v685
    %v687 = vrcp.pop 8.0
    %v688 = vmul.f32 8.0, %v687
    %v689 = vsub.f32 1.0, %v688
    %v690 = vmul.f32 %v687, %v689
    %v691 = vadd.f32 %v687, %v690
    %vm692 = vweird.f32 %v687
    %v693 = vsel %vm692, %v687, %v691
    %v694 = vmul.f32 %v680, %v693
    %v695 = vmul.f32 %v686, %v693
    %696 = vmatpush.msra.mxu0 %v528
    %697 = vmatpush.msra.mxu0 %v525
    %698 = vmatpush.msra.mxu0 %v522
    %699 = vmatpush.msra.mxu0 %v519
    %700 = vmatpush.msra.mxu0 %v516
    %701 = vmatpush.msra.mxu0 %v513
    %702 = vmatpush.msra.mxu0 %v510
    %703 = vmatpush.msra.mxu0 %v507
    %704 = vmatpush.msra.mxu0 %v504
    %705 = vmatpush.msra.mxu0 %v501
    %706 = vmatpush.msra.mxu0 %v498
    %707 = vmatpush.msra.mxu0 %v495
    %708 = vmatpush.msra.mxu0 %v492
    %709 = vmatpush.msra.mxu0 %v489
    %710 = vmatpush.msra.mxu0 %v486
    %711 = vmatpush.msra.mxu0 %v483
    %712 = vmatmul.f32.gmra.mxu0 %v249
    %v713 = vpop.f32.mrf.mxu0
    %v714 = vadd.f32 %v694, %v713
    %715 = vdwg.mxu0
    %716 = vmatpush.msra.mxu0 %v673
    %717 = vmatpush.msra.mxu0 %v670
    %718 = vmatpush.msra.mxu0 %v667
    %719 = vmatpush.msra.mxu0 %v664
    %720 = vmatpush.msra.mxu0 %v661
    %721 = vmatpush.msra.mxu0 %v658
    %722 = vmatpush.msra.mxu0 %v655
    %723 = vmatpush.msra.mxu0 %v652
    %724 = vmatpush.msra.mxu0 %v649
    %725 = vmatpush.msra.mxu0 %v646
    %726 = vmatpush.msra.mxu0 %v643
    %727 = vmatpush.msra.mxu0 %v640
    %728 = vmatpush.msra.mxu0 %v637
    %729 = vmatpush.msra.mxu0 %v634
    %730 = vmatpush.msra.mxu0 %v631
    %731 = vmatpush.msra.mxu0 %v628
    %732 = vmatmul.f32.gmra.mxu0 %v250
    %v733 = vpop.f32.mrf.mxu0
    %v734 = vadd.f32 %v695, %v733
    %735 = vdwg.mxu0
    %736 = vst [vmem:[#allocation13] sm:$0xff] %v714
    %737 = vst [vmem:[#allocation13 + $0x8] sm:$0xff] %v734
    // Predicated region
    $region70: #{tpu_custom_call.1} parent=1 // pred_check
      _
    $region71: #{tpu_custom_call.1} parent=1 // pred_check_branch
      %739 = sbr.rel (0) target = $region73
    $region72: #{tpu_custom_call.1} parent=1 // pred_region
      %741 = vsyncadd [#allocation4], 0
      %s742 = sshll.u32 [#allocation13], 4
      %s743 = int_to_ptr.vmem [resolvable:$true] %s742
      %s744 = sshll.u32 %s11, 4
      %s745 = int_to_ptr.hbm [resolvable:$true] %s744
      %750 = dma.vmem_to_hbm [thread:$0]  %s743, 256, %s745, [#allocation4], 128, 128, 8
    $region73: #{tpu_custom_call.1} parent=1 // pred_fallthru
      _
    // Predicated region
    $region74: #{tpu_custom_call.1} parent=1 // pred_check
      _
    $region75: #{tpu_custom_call.1} parent=1 // pred_check_branch
      %752 = sbr.rel (0) target = $region77
    $region76: #{tpu_custom_call.1} parent=1 // pred_region
      %754 = dma.done [#allocation4], 256
    $region77: #{tpu_custom_call.1} parent=1 // pred_fallthru
      _
    %755 = vsyncpa [#allocation3], 1
    %756 = vsyncpa [#allocation6], 1
    %757 = vsyncpa [#allocation9], 1
    %758 = vsyncpa [#allocation12], 1
    %759 = vsyncpa [#allocation4], 1

// kernel: tpu_custom_call.1
$region0: #{tpu_custom_call.1}
  #allocation0 [shape = 'u32[]', space=smem, size = 0x4, offset = 0x4, fixed_abs, tag = 'smem constant byte address 0x4 - core index']
  #allocation1 [shape = 'u32[72,128]{1,0:T(1,128)}', space=vmem, size = 0x9000, scoped, tag = 'internal scratch']
  %s0 = inlined_call_operand.hbm [shape: f32[2,8,128], index: 0, kind: input, shape index: {}]
  %s1 = inlined_call_operand.hbm [shape: f32[128,128], index: 1, kind: input, shape index: {}]
  %s2 = inlined_call_operand.vmem [shape: f32[1,128], index: 2, kind: input, shape index: {}]
  %s3 = inlined_call_operand.hbm [shape: f32[128,128], index: 3, kind: input, shape index: {}]
  %s4 = inlined_call_operand.vmem [shape: f32[1,128], index: 4, kind: input, shape index: {}]
  %s5 = inlined_call_operand.hbm [shape: f32[128,128], index: 5, kind: input, shape index: {}]
  %s6 = inlined_call_operand.vmem [shape: f32[1,128], index: 6, kind: input, shape index: {}]
  %s7 = inlined_call_operand.hbm [shape: f32[128,128], index: 7, kind: input, shape index: {}]
  %s8 = inlined_call_operand.vmem [shape: f32[1,128], index: 8, kind: input, shape index: {}]
  %s9 = inlined_call_operand.hbm [shape: f32[128,128], index: 9, kind: input, shape index: {}]
  %s10 = inlined_call_operand.vmem [shape: f32[1,128], index: 10, kind: input, shape index: {}]
  %s11 = inlined_call_operand.hbm [shape: f32[2,8,128], index: 11, kind: output, shape index: {}]
  %s12 = sld [smem:[#allocation0]]
  $region78: #{tpu_custom_call.1} parent=0
    _
  %s14 = ssub.s32 1, %s12
  %s15 = scalar_select 0, %s14, %s12
  $region1: #{tpu_custom_call.1} parent=0
    #allocation2 [shape = 'u8[8192]{0}', space=vmem, size = 0x2000, scoped, tag = 'input window, operand 0, single buffered']
    #allocation3 [shape = 's32[1]{0}', space=sflag, size = 0x4, scoped, tag = 'scoped memory for tpu_custom_call.1']
    #allocation4 [shape = 's32[1]{0}', space=sflag, size = 0x4, scoped, tag = 'scoped memory for tpu_custom_call.1']
    #allocation5 [shape = 'u8[65536]{0}', space=vmem, size = 0x10000, scoped, tag = 'input window, operand 1, single buffered']
    #allocation6 [shape = 's32[1]{0}', space=sflag, size = 0x4, scoped, tag = 'scoped memory for tpu_custom_call.1']
    #allocation7 [shape = 'u8[65536]{0}', space=vmem, size = 0x10000, scoped, tag = 'input window, operand 3, single buffered']
    #allocation8 [shape = 'u8[65536]{0}', space=vmem, size = 0x10000, scoped, tag = 'input window, operand 5, single buffered']
    #allocation9 [shape = 's32[1]{0}', space=sflag, size = 0x4, scoped, tag = 'scoped memory for tpu_custom_call.1']
    #allocation10 [shape = 'u8[65536]{0}', space=vmem, size = 0x10000, scoped, tag = 'input window, operand 7, single buffered']
    #allocation11 [shape = 'u8[65536]{0}', space=vmem, size = 0x10000, scoped, tag = 'input window, operand 9, single buffered']
    #allocation12 [shape = 's32[1]{0}', space=sflag, size = 0x4, scoped, tag = 'scoped memory for tpu_custom_call.1']
    #allocation13 [shape = 'u8[8192]{0}', space=vmem, size = 0x2000, scoped, tag = 'output window, operand 0, single buffered']
    %16 = vsyncpa [#allocation3], 0
    %17 = vsyncpa [#allocation6], 0
    %18 = vsyncpa [#allocation9], 0
    %19 = vsyncpa [#allocation12], 0
    %20 = vsyncpa [#allocation4], 0
    // Predicated region
    $region2: #{tpu_custom_call.1} parent=1 // pred_check
      _
    $region3: #{tpu_custom_call.1} parent=1 // pred_check_branch
      %22 = sbr.rel (0) target = $region5
    $region4: #{tpu_custom_call.1} parent=1 // pred_region
      %24 = vsyncadd [#allocation3], 0
      %s25 = sshll.u32 %s0, 4
      %s26 = int_to_ptr.hbm [resolvable:$true] %s25
      %s27 = sshll.u32 [#allocation2], 4
      %s28 = int_to_ptr.vmem [resolvable:$true] %s27
      %33 = dma.hbm_to_vmem [thread:$0]  %s26, 256, %s28, [#allocation3], 128, 128, 8
    $region5: #{tpu_custom_call.1} parent=1 // pred_fallthru
      _
    // Predicated region
    $region6: #{tpu_custom_call.1} parent=1 // pred_check
      _
    $region7: #{tpu_custom_call.1} parent=1 // pred_check_branch
      %35 = sbr.rel (0) target = $region9
    $region8: #{tpu_custom_call.1} parent=1 // pred_region
      %37 = vsyncadd [#allocation6], 0
      %s38 = sshll.u32 %s1, 4
      %s39 = int_to_ptr.hbm [resolvable:$true] %s38
      %s40 = sshll.u32 [#allocation5], 4
      %s41 = int_to_ptr.vmem [resolvable:$true] %s40
      %46 = dma.hbm_to_vmem [thread:$0]  %s39, 2048, %s41, [#allocation6], 128, 128, 8
    $region9: #{tpu_custom_call.1} parent=1 // pred_fallthru
      _
    // Predicated region
    $region10: #{tpu_custom_call.1} parent=1 // pred_check
      _
    $region11: #{tpu_custom_call.1} parent=1 // pred_check_branch
      %48 = sbr.rel (0) target = $region13
    $region12: #{tpu_custom_call.1} parent=1 // pred_region
      _
    $region13: #{tpu_custom_call.1} parent=1 // pred_fallthru
      _
    // Predicated region
    $region14: #{tpu_custom_call.1} parent=1 // pred_check
      _
    $region15: #{tpu_custom_call.1} parent=1 // pred_check_branch
      %50 = sbr.rel (0) target = $region17
    $region16: #{tpu_custom_call.1} parent=1 // pred_region
      %52 = vsyncadd [#allocation6], 0
      %s53 = sshll.u32 %s3, 4
      %s54 = int_to_ptr.hbm [resolvable:$true] %s53
      %s55 = sshll.u32 [#allocation7], 4
      %s56 = int_to_ptr.vmem [resolvable:$true] %s55
      %61 = dma.hbm_to_vmem [thread:$0]  %s54, 2048, %s56, [#allocation6], 128, 128, 8
    $region17: #{tpu_custom_call.1} parent=1 // pred_fallthru
      _
    // Predicated region
    $region18: #{tpu_custom_call.1} parent=1 // pred_check
      _
    $region19: #{tpu_custom_call.1} parent=1 // pred_check_branch
      %63 = sbr.rel (0) target = $region21
    $region20: #{tpu_custom_call.1} parent=1 // pred_region
      _
    $region21: #{tpu_custom_call.1} parent=1 // pred_fallthru
      _
    // Predicated region
    $region22: #{tpu_custom_call.1} parent=1 // pred_check
      _
    $region23: #{tpu_custom_call.1} parent=1 // pred_check_branch
      %65 = sbr.rel (0) target = $region25
    $region24: #{tpu_custom_call.1} parent=1 // pred_region
      %67 = vsyncadd [#allocation9], 0
      %s68 = sshll.u32 %s5, 4
      %s69 = int_to_ptr.hbm [resolvable:$true] %s68
      %s70 = sshll.u32 [#allocation8], 4
      %s71 = int_to_ptr.vmem [resolvable:$true] %s70
      %76 = dma.hbm_to_vmem [thread:$0]  %s69, 2048, %s71, [#allocation9], 128, 128, 8
    $region25: #{tpu_custom_call.1} parent=1 // pred_fallthru
      _
    // Predicated region
    $region26: #{tpu_custom_call.1} parent=1 // pred_check
      _
    $region27: #{tpu_custom_call.1} parent=1 // pred_check_branch
      %78 = sbr.rel (0) target = $region29
    $region28: #{tpu_custom_call.1} parent=1 // pred_region
      _
    $region29: #{tpu_custom_call.1} parent=1 // pred_fallthru
      _
    // Predicated region
    $region30: #{tpu_custom_call.1} parent=1 // pred_check
      _
    $region31: #{tpu_custom_call.1} parent=1 // pred_check_branch
      %80 = sbr.rel (0) target = $region33
    $region32: #{tpu_custom_call.1} parent=1 // pred_region
      %82 = vsyncadd [#allocation9], 0
      %s83 = sshll.u32 %s7, 4
      %s84 = int_to_ptr.hbm [resolvable:$true] %s83
      %s85 = sshll.u32 [#allocation10], 4
      %s86 = int_to_ptr.vmem [resolvable:$true] %s85
      %91 = dma.hbm_to_vmem [thread:$0]  %s84, 2048, %s86, [#allocation9], 128, 128, 8
    $region33: #{tpu_custom_call.1} parent=1 // pred_fallthru
      _
    // Predicated region
    $region34: #{tpu_custom_call.1} parent=1 // pred_check
      _
    $region35: #{tpu_custom_call.1} parent=1 // pred_check_branch
      %93 = sbr.rel (0) target = $region37
    $region36: #{tpu_custom_call.1} parent=1 // pred_region
      _
    $region37: #{tpu_custom_call.1} parent=1 // pred_fallthru
      _
    // Predicated region
    $region38: #{tpu_custom_call.1} parent=1 // pred_check
      _
    $region39: #{tpu_custom_call.1} parent=1 // pred_check_branch
      %95 = sbr.rel (0) target = $region41
    $region40: #{tpu_custom_call.1} parent=1 // pred_region
      %97 = vsyncadd [#allocation12], 0
      %s98 = sshll.u32 %s9, 4
      %s99 = int_to_ptr.hbm [resolvable:$true] %s98
      %s100 = sshll.u32 [#allocation11], 4
      %s101 = int_to_ptr.vmem [resolvable:$true] %s100
      %106 = dma.hbm_to_vmem [thread:$0]  %s99, 2048, %s101, [#allocation12], 128, 128, 8
    $region41: #{tpu_custom_call.1} parent=1 // pred_fallthru
      _
    // Predicated region
    $region42: #{tpu_custom_call.1} parent=1 // pred_check
      _
    $region43: #{tpu_custom_call.1} parent=1 // pred_check_branch
      %108 = sbr.rel (0) target = $region45
    $region44: #{tpu_custom_call.1} parent=1 // pred_region
      _
    $region45: #{tpu_custom_call.1} parent=1 // pred_fallthru
      _
    // Predicated region
    $region46: #{tpu_custom_call.1} parent=1 // pred_check
      _
    $region47: #{tpu_custom_call.1} parent=1 // pred_check_branch
      %110 = sbr.rel (0) target = $region49
    $region48: #{tpu_custom_call.1} parent=1 // pred_region
      %112 = dma.done [#allocation3], 256
    $region49: #{tpu_custom_call.1} parent=1 // pred_fallthru
      _
    // Predicated region
    $region50: #{tpu_custom_call.1} parent=1 // pred_check
      _
    $region51: #{tpu_custom_call.1} parent=1 // pred_check_branch
      %114 = sbr.rel (0) target = $region53
    $region52: #{tpu_custom_call.1} parent=1 // pred_region
      %116 = dma.done [#allocation6], 2048
    $region53: #{tpu_custom_call.1} parent=1 // pred_fallthru
      _
    // Predicated region
    $region54: #{tpu_custom_call.1} parent=1 // pred_check
      _
    $region55: #{tpu_custom_call.1} parent=1 // pred_check_branch
      %118 = sbr.rel (0) target = $region57
    $region56: #{tpu_custom_call.1} parent=1 // pred_region
      %120 = dma.done [#allocation6], 2048
    $region57: #{tpu_custom_call.1} parent=1 // pred_fallthru
      _
    // Predicated region
    $region58: #{tpu_custom_call.1} parent=1 // pred_check
      _
    $region59: #{tpu_custom_call.1} parent=1 // pred_check_branch
      %122 = sbr.rel (0) target = $region61
    $region60: #{tpu_custom_call.1} parent=1 // pred_region
      %124 = dma.done [#allocation9], 2048
    $region61: #{tpu_custom_call.1} parent=1 // pred_fallthru
      _
    // Predicated region
    $region62: #{tpu_custom_call.1} parent=1 // pred_check
      _
    $region63: #{tpu_custom_call.1} parent=1 // pred_check_branch
      %126 = sbr.rel (0) target = $region65
    $region64: #{tpu_custom_call.1} parent=1 // pred_region
      %128 = dma.done [#allocation9], 2048
    $region65: #{tpu_custom_call.1} parent=1 // pred_fallthru
      _
    // Predicated region
    $region66: #{tpu_custom_call.1} parent=1 // pred_check
      _
    $region67: #{tpu_custom_call.1} parent=1 // pred_check_branch
      %130 = sbr.rel (0) target = $region69
    $region68: #{tpu_custom_call.1} parent=1 // pred_region
      %132 = dma.done [#allocation12], 2048
    $region69: #{tpu_custom_call.1} parent=1 // pred_fallthru
      _
    %v133 = vld [vmem:[#allocation2] sm:$0xff]
    %v134 = vld [vmem:[#allocation2 + $0x8] sm:$0xff]
    %v135 = vld [vmem:[#allocation5] sm:$0xff]
    %v136 = vld [vmem:[#allocation5 + $0x8] sm:$0xff]
    %v137 = vld [vmem:[#allocation5 + $0x10] sm:$0xff]
    %v138 = vld [vmem:[#allocation5 + $0x18] sm:$0xff]
    %v139 = vld [vmem:[#allocation5 + $0x20] sm:$0xff]
    %v140 = vld [vmem:[#allocation5 + $0x28] sm:$0xff]
    %v141 = vld [vmem:[#allocation5 + $0x30] sm:$0xff]
    %v142 = vld [vmem:[#allocation5 + $0x38] sm:$0xff]
    %v143 = vld [vmem:[#allocation5 + $0x40] sm:$0xff]
    %v144 = vld [vmem:[#allocation5 + $0x48] sm:$0xff]
    %v145 = vld [vmem:[#allocation5 + $0x50] sm:$0xff]
    %v146 = vld [vmem:[#allocation5 + $0x58] sm:$0xff]
    %v147 = vld [vmem:[#allocation5 + $0x60] sm:$0xff]
    %v148 = vld [vmem:[#allocation5 + $0x68] sm:$0xff]
    %v149 = vld [vmem:[#allocation5 + $0x70] sm:$0xff]
    %v150 = vld [vmem:[#allocation5 + $0x78] sm:$0xff]
    %v151 = vld [vmem:[%s2] sm:$0x1]
    %v153 = vperm.slane %v151, 0
    %155 = vmatpush.msra.mxu0 %v150
    %156 = vmatpush.msra.mxu0 %v149
    %157 = vmatpush.msra.mxu0 %v148
    %158 = vmatpush.msra.mxu0 %v147
    %159 = vmatpush.msra.mxu0 %v146
    %160 = vmatpush.msra.mxu0 %v145
    %161 = vmatpush.msra.mxu0 %v144
    %162 = vmatpush.msra.mxu0 %v143
    %163 = vmatpush.msra.mxu0 %v142
    %164 = vmatpush.msra.mxu0 %v141
    %165 = vmatpush.msra.mxu0 %v140
    %166 = vmatpush.msra.mxu0 %v139
    %167 = vmatpush.msra.mxu0 %v138
    %168 = vmatpush.msra.mxu0 %v137
    %169 = vmatpush.msra.mxu0 %v136
    %170 = vmatpush.msra.mxu0 %v135
    %171 = vmatmul.f32.gmra.mxu0 %v133
    %v172 = vpop.f32.mrf.mxu0
    %v173 = vadd.f32 %v153, %v172
    %174 = vmatmul.f32.gmra.mxu0 %v134
    %v175 = vpop.f32.mrf.mxu0
    %v176 = vadd.f32 %v153, %v175
    %177 = vdwg.mxu0
    %v178 = vmax.f32 %v173, 0.0
    %v179 = vmax.f32 %v176, 0.0
    %v180 = vld [vmem:[#allocation7] sm:$0xff]
    %v181 = vld [vmem:[#allocation7 + $0x8] sm:$0xff]
    %v182 = vld [vmem:[#allocation7 + $0x10] sm:$0xff]
    %v183 = vld [vmem:[#allocation7 + $0x18] sm:$0xff]
    %v184 = vld [vmem:[#allocation7 + $0x20] sm:$0xff]
    %v185 = vld [vmem:[#allocation7 + $0x28] sm:$0xff]
    %v186 = vld [vmem:[#allocation7 + $0x30] sm:$0xff]
    %v187 = vld [vmem:[#allocation7 + $0x38] sm:$0xff]
    %v188 = vld [vmem:[#allocation7 + $0x40] sm:$0xff]
    %v189 = vld [vmem:[#allocation7 + $0x48] sm:$0xff]
    %v190 = vld [vmem:[#allocation7 + $0x50] sm:$0xff]
    %v191 = vld [vmem:[#allocation7 + $0x58] sm:$0xff]
    %v192 = vld [vmem:[#allocation7 + $0x60] sm:$0xff]
    %v193 = vld [vmem:[#allocation7 + $0x68] sm:$0xff]
    %v194 = vld [vmem:[#allocation7 + $0x70] sm:$0xff]
    %v195 = vld [vmem:[#allocation7 + $0x78] sm:$0xff]
    %v196 = vld [vmem:[%s4] sm:$0x1]
    %v198 = vperm.slane %v196, 0
    %200 = vmatpush.msra.mxu0 %v195
    %201 = vmatpush.msra.mxu0 %v194
    %202 = vmatpush.msra.mxu0 %v193
    %203 = vmatpush.msra.mxu0 %v192
    %204 = vmatpush.msra.mxu0 %v191
    %205 = vmatpush.msra.mxu0 %v190
    %206 = vmatpush.msra.mxu0 %v189
    %207 = vmatpush.msra.mxu0 %v188
    %208 = vmatpush.msra.mxu0 %v187
    %209 = vmatpush.msra.mxu0 %v186
    %210 = vmatpush.msra.mxu0 %v185
    %211 = vmatpush.msra.mxu0 %v184
    %212 = vmatpush.msra.mxu0 %v183
    %213 = vmatpush.msra.mxu0 %v182
    %214 = vmatpush.msra.mxu0 %v181
    %215 = vmatpush.msra.mxu0 %v180
    %216 = vmatmul.f32.gmra.mxu0 %v178
    %v217 = vpop.f32.mrf.mxu0
    %v218 = vadd.f32 %v198, %v217
    %219 = vmatmul.f32.gmra.mxu0 %v179
    %v220 = vpop.f32.mrf.mxu0
    %v221 = vadd.f32 %v198, %v220
    %222 = vdwg.mxu0
    %v223 = vmul.f32 %v218, %v218
    %v224 = vmul.f32 %v221, %v221
    %225 = vadd.xlane.f32.xlu0 %v223
    %v226 = vpop.xlane.xlu0 %225
    %227 = vadd.xlane.f32.xlu0 %v224
    %v228 = vpop.xlane.xlu0 %227
    %v229 = vrsqrt.pop %v226
    %v230 = vmul.f32 %v229, %v226
    %v231 = vmul.f32 %v230, %v229
    %v232 = vmul.f32 0.5, %v231
    %v233 = vsub.f32 1.5, %v232
    %v234 = vmul.f32 %v229, %v233
    %vm235 = vweird.f32 %v226
    %vm236 = vweird.f32 %v229
    %vm237 = vmor %vm235, %vm236
    %v238 = vsel %vm237, %v229, %v234
    %v239 = vrsqrt.pop %v228
    %v240 = vmul.f32 %v239, %v228
    %v241 = vmul.f32 %v240, %v239
    %v242 = vmul.f32 0.5, %v241
    %v243 = vsub.f32 1.5, %v242
    %v244 = vmul.f32 %v239, %v243
    %vm245 = vweird.f32 %v228
    %vm246 = vweird.f32 %v239
    %vm247 = vmor %vm245, %vm246
    %v248 = vsel %vm247, %v239, %v244
    %v249 = vmul.f32 %v218, %v238
    %v250 = vmul.f32 %v221, %v248
    %v251 = vld [vmem:[#allocation8] sm:$0xff]
    %v252 = vld [vmem:[#allocation8 + $0x8] sm:$0xff]
    %v253 = vld [vmem:[#allocation8 + $0x10] sm:$0xff]
    %v254 = vld [vmem:[#allocation8 + $0x18] sm:$0xff]
    %v255 = vld [vmem:[#allocation8 + $0x20] sm:$0xff]
    %v256 = vld [vmem:[#allocation8 + $0x28] sm:$0xff]
    %v257 = vld [vmem:[#allocation8 + $0x30] sm:$0xff]
    %v258 = vld [vmem:[#allocation8 + $0x38] sm:$0xff]
    %v259 = vld [vmem:[#allocation8 + $0x40] sm:$0xff]
    %v260 = vld [vmem:[#allocation8 + $0x48] sm:$0xff]
    %v261 = vld [vmem:[#allocation8 + $0x50] sm:$0xff]
    %v262 = vld [vmem:[#allocation8 + $0x58] sm:$0xff]
    %v263 = vld [vmem:[#allocation8 + $0x60] sm:$0xff]
    %v264 = vld [vmem:[#allocation8 + $0x68] sm:$0xff]
    %v265 = vld [vmem:[#allocation8 + $0x70] sm:$0xff]
    %v266 = vld [vmem:[#allocation8 + $0x78] sm:$0xff]
    %v267 = vld [vmem:[%s6] sm:$0x1]
    %v269 = vperm.slane %v267, 0
    %271 = vmatpush.msra.mxu0 %v266
    %272 = vmatpush.msra.mxu0 %v265
    %273 = vmatpush.msra.mxu0 %v264
    %274 = vmatpush.msra.mxu0 %v263
    %275 = vmatpush.msra.mxu0 %v262
    %276 = vmatpush.msra.mxu0 %v261
    %277 = vmatpush.msra.mxu0 %v260
    %278 = vmatpush.msra.mxu0 %v259
    %279 = vmatpush.msra.mxu0 %v258
    %280 = vmatpush.msra.mxu0 %v257
    %281 = vmatpush.msra.mxu0 %v256
    %282 = vmatpush.msra.mxu0 %v255
    %283 = vmatpush.msra.mxu0 %v254
    %284 = vmatpush.msra.mxu0 %v253
    %285 = vmatpush.msra.mxu0 %v252
    %286 = vmatpush.msra.mxu0 %v251
    %287 = vmatmul.f32.gmra.mxu0 %v133
    %v288 = vpop.f32.mrf.mxu0
    %v289 = vadd.f32 %v269, %v288
    %290 = vmatmul.f32.gmra.mxu0 %v134
    %v291 = vpop.f32.mrf.mxu0
    %v292 = vadd.f32 %v269, %v291
    %293 = vdwg.mxu0
    %v294 = vmax.f32 %v289, 0.0
    %v295 = vmax.f32 %v292, 0.0
    %v296 = vld [vmem:[#allocation10] sm:$0xff]
    %v297 = vld [vmem:[#allocation10 + $0x8] sm:$0xff]
    %v298 = vld [vmem:[#allocation10 + $0x10] sm:$0xff]
    %v299 = vld [vmem:[#allocation10 + $0x18] sm:$0xff]
    %v300 = vld [vmem:[#allocation10 + $0x20] sm:$0xff]
    %v301 = vld [vmem:[#allocation10 + $0x28] sm:$0xff]
    %v302 = vld [vmem:[#allocation10 + $0x30] sm:$0xff]
    %v303 = vld [vmem:[#allocation10 + $0x38] sm:$0xff]
    %v304 = vld [vmem:[#allocation10 + $0x40] sm:$0xff]
    %v305 = vld [vmem:[#allocation10 + $0x48] sm:$0xff]
    %v306 = vld [vmem:[#allocation10 + $0x50] sm:$0xff]
    %v307 = vld [vmem:[#allocation10 + $0x58] sm:$0xff]
    %v308 = vld [vmem:[#allocation10 + $0x60] sm:$0xff]
    %v309 = vld [vmem:[#allocation10 + $0x68] sm:$0xff]
    %v310 = vld [vmem:[#allocation10 + $0x70] sm:$0xff]
    %v311 = vld [vmem:[#allocation10 + $0x78] sm:$0xff]
    %v312 = vld [vmem:[%s8] sm:$0x1]
    %v314 = vperm.slane %v312, 0
    %316 = vmatpush.msra.mxu0 %v311
    %317 = vmatpush.msra.mxu0 %v310
    %318 = vmatpush.msra.mxu0 %v309
    %319 = vmatpush.msra.mxu0 %v308
    %320 = vmatpush.msra.mxu0 %v307
    %321 = vmatpush.msra.mxu0 %v306
    %322 = vmatpush.msra.mxu0 %v305
    %323 = vmatpush.msra.mxu0 %v304
    %324 = vmatpush.msra.mxu0 %v303
    %325 = vmatpush.msra.mxu0 %v302
    %326 = vmatpush.msra.mxu0 %v301
    %327 = vmatpush.msra.mxu0 %v300
    %328 = vmatpush.msra.mxu0 %v299
    %329 = vmatpush.msra.mxu0 %v298
    %330 = vmatpush.msra.mxu0 %v297
    %331 = vmatpush.msra.mxu0 %v296
    %332 = vmatmul.f32.gmra.mxu0 %v294
    %v333 = vpop.f32.mrf.mxu0
    %v334 = vadd.f32 %v314, %v333
    %335 = vmatmul.f32.gmra.mxu0 %v295
    %v336 = vpop.f32.mrf.mxu0
    %v337 = vadd.f32 %v314, %v336
    %338 = vdwg.mxu0
    %v339 = vmax.f32 %v334, 0.0
    %v340 = vmax.f32 %v337, 0.0
    %v341 = vld [vmem:[#allocation11] sm:$0xff]
    %v342 = vld [vmem:[#allocation11 + $0x8] sm:$0xff]
    %v343 = vld [vmem:[#allocation11 + $0x10] sm:$0xff]
    %v344 = vld [vmem:[#allocation11 + $0x18] sm:$0xff]
    %v345 = vld [vmem:[#allocation11 + $0x20] sm:$0xff]
    %v346 = vld [vmem:[#allocation11 + $0x28] sm:$0xff]
    %v347 = vld [vmem:[#allocation11 + $0x30] sm:$0xff]
    %v348 = vld [vmem:[#allocation11 + $0x38] sm:$0xff]
    %v349 = vld [vmem:[#allocation11 + $0x40] sm:$0xff]
    %v350 = vld [vmem:[#allocation11 + $0x48] sm:$0xff]
    %v351 = vld [vmem:[#allocation11 + $0x50] sm:$0xff]
    %v352 = vld [vmem:[#allocation11 + $0x58] sm:$0xff]
    %v353 = vld [vmem:[#allocation11 + $0x60] sm:$0xff]
    %v354 = vld [vmem:[#allocation11 + $0x68] sm:$0xff]
    %v355 = vld [vmem:[#allocation11 + $0x70] sm:$0xff]
    %v356 = vld [vmem:[#allocation11 + $0x78] sm:$0xff]
    %v357 = vld [vmem:[%s10] sm:$0x1]
    %v359 = vperm.slane %v357, 0
    %361 = vmatpush.msra.mxu0 %v356
    %362 = vmatpush.msra.mxu0 %v355
    %363 = vmatpush.msra.mxu0 %v354
    %364 = vmatpush.msra.mxu0 %v353
    %365 = vmatpush.msra.mxu0 %v352
    %366 = vmatpush.msra.mxu0 %v351
    %367 = vmatpush.msra.mxu0 %v350
    %368 = vmatpush.msra.mxu0 %v349
    %369 = vmatpush.msra.mxu0 %v348
    %370 = vmatpush.msra.mxu0 %v347
    %371 = vmatpush.msra.mxu0 %v346
    %372 = vmatpush.msra.mxu0 %v345
    %373 = vmatpush.msra.mxu0 %v344
    %374 = vmatpush.msra.mxu0 %v343
    %375 = vmatpush.msra.mxu0 %v342
    %376 = vmatpush.msra.mxu0 %v341
    %377 = vmatmul.f32.gmra.mxu0 %v339
    %v378 = vpop.f32.mrf.mxu0
    %v379 = vadd.f32 %v359, %v378
    %380 = vmatmul.f32.gmra.mxu0 %v340
    %v381 = vpop.f32.mrf.mxu0
    %v382 = vadd.f32 %v359, %v381
    %383 = vdwg.mxu0
    %384 = vmatpush.xpose.msra.mxu0 0.0
    %385 = vmatpush.xpose.msra.mxu0 0.0
    %386 = vmatpush.xpose.msra.mxu0 0.0
    %387 = vmatpush.xpose.msra.mxu0 0.0
    %388 = vmatpush.xpose.msra.mxu0 0.0
    %389 = vmatpush.xpose.msra.mxu0 0.0
    %390 = vmatpush.xpose.msra.mxu0 0.0
    %391 = vmatpush.xpose.msra.mxu0 0.0
    %392 = vmatpush.xpose.msra.mxu0 0.0
    %393 = vmatpush.xpose.msra.mxu0 0.0
    %394 = vmatpush.xpose.msra.mxu0 0.0
    %395 = vmatpush.xpose.msra.mxu0 0.0
    %396 = vmatpush.xpose.msra.mxu0 0.0
    %397 = vmatpush.xpose.msra.mxu0 0.0
    %398 = vmatpush.xpose.msra.mxu0 0.0
    %399 = vmatpush.xpose.msra.mxu0 %v249
    %400 = vmatmul.f32.gmra.mxu0 %v249
    %v401 = vpop.f32.mrf.mxu0
    %v402 = vadd.f32 0.125, %v401
    %403 = vdwg.mxu0
    %404 = vmatpush.xpose.msra.mxu0 0.0
    %405 = vmatpush.xpose.msra.mxu0 0.0
    %406 = vmatpush.xpose.msra.mxu0 0.0
    %407 = vmatpush.xpose.msra.mxu0 0.0
    %408 = vmatpush.xpose.msra.mxu0 0.0
    %409 = vmatpush.xpose.msra.mxu0 0.0
    %410 = vmatpush.xpose.msra.mxu0 0.0
    %411 = vmatpush.xpose.msra.mxu0 0.0
    %412 = vmatpush.xpose.msra.mxu0 0.0
    %413 = vmatpush.xpose.msra.mxu0 0.0
    %414 = vmatpush.xpose.msra.mxu0 0.0
    %415 = vmatpush.xpose.msra.mxu0 0.0
    %416 = vmatpush.xpose.msra.mxu0 0.0
    %417 = vmatpush.xpose.msra.mxu0 0.0
    %418 = vmatpush.xpose.msra.mxu0 0.0
    %419 = vmatpush.xpose.msra.mxu0 %v250
    %420 = vmatmul.f32.gmra.mxu0 %v250
    %v421 = vpop.f32.mrf.mxu0
    %v422 = vadd.f32 0.125, %v421
    %423 = vdwg.mxu0
    %vm424 = vcmask 64512
    %v426 = vsel %vm424, %v402, 0
    %428 = vmatpush.msra.mxu0 0.0
    %429 = vmatpush.msra.mxu0 0.0
    %430 = vmatpush.msra.mxu0 0.0
    %431 = vmatpush.msra.mxu0 0.0
    %432 = vmatpush.msra.mxu0 0.0
    %433 = vmatpush.msra.mxu0 0.0
    %434 = vmatpush.msra.mxu0 0.0
    %435 = vmatpush.msra.mxu0 0.0
    %436 = vmatpush.msra.mxu0 0.0
    %437 = vmatpush.msra.mxu0 0.0
    %438 = vmatpush.msra.mxu0 0.0
    %439 = vmatpush.msra.mxu0 0.0
    %440 = vmatpush.msra.mxu0 0.0
    %441 = vmatpush.msra.mxu0 0.0
    %442 = vmatpush.msra.mxu0 0.0
    %443 = vmatpush.msra.mxu0 %v379
    %444 = vmatmul.f32.gmra.mxu0 %v426
    %v445 = vpop.f32.mrf.mxu0
    %v446 = vadd.f32 0.0, %v445
    %447 = vdwg.mxu0
    %v449 = vsel %vm424, %v422, 0
    %451 = vmatpush.msra.mxu0 0.0
    %452 = vmatpush.msra.mxu0 0.0
    %453 = vmatpush.msra.mxu0 0.0
    %454 = vmatpush.msra.mxu0 0.0
    %455 = vmatpush.msra.mxu0 0.0
    %456 = vmatpush.msra.mxu0 0.0
    %457 = vmatpush.msra.mxu0 0.0
    %458 = vmatpush.msra.mxu0 0.0
    %459 = vmatpush.msra.mxu0 0.0
    %460 = vmatpush.msra.mxu0 0.0
    %461 = vmatpush.msra.mxu0 0.0
    %462 = vmatpush.msra.mxu0 0.0
    %463 = vmatpush.msra.mxu0 0.0
    %464 = vmatpush.msra.mxu0 0.0
    %465 = vmatpush.msra.mxu0 0.0
    %466 = vmatpush.msra.mxu0 %v382
    %467 = vmatmul.f32.gmra.mxu0 %v449
    %v468 = vpop.f32.mrf.mxu0
    %v469 = vadd.f32 0.0, %v468
    %470 = vdwg.mxu0
    %471 = vst [vmem:[#allocation13] sm:$0xff] %v446
    %472 = vst [vmem:[#allocation13 + $0x8] sm:$0xff] %v469
    // Predicated region
    $region70: #{tpu_custom_call.1} parent=1 // pred_check
      _
    $region71: #{tpu_custom_call.1} parent=1 // pred_check_branch
      %474 = sbr.rel (0) target = $region73
    $region72: #{tpu_custom_call.1} parent=1 // pred_region
      %476 = vsyncadd [#allocation4], 0
      %s477 = sshll.u32 [#allocation13], 4
      %s478 = int_to_ptr.vmem [resolvable:$true] %s477
      %s479 = sshll.u32 %s11, 4
      %s480 = int_to_ptr.hbm [resolvable:$true] %s479
      %485 = dma.vmem_to_hbm [thread:$0]  %s478, 256, %s480, [#allocation4], 128, 128, 8
    $region73: #{tpu_custom_call.1} parent=1 // pred_fallthru
      _
    // Predicated region
    $region74: #{tpu_custom_call.1} parent=1 // pred_check
      _
    $region75: #{tpu_custom_call.1} parent=1 // pred_check_branch
      %487 = sbr.rel (0) target = $region77
    $region76: #{tpu_custom_call.1} parent=1 // pred_region
      %489 = dma.done [#allocation4], 256
    $region77: #{tpu_custom_call.1} parent=1 // pred_fallthru
      _
    %490 = vsyncpa [#allocation3], 1
    %491 = vsyncpa [#allocation6], 1
    %492 = vsyncpa [#allocation9], 1
    %493 = vsyncpa [#allocation12], 1
    %494 = vsyncpa [#allocation4], 1

// kernel: tpu_custom_call.1
$region0: #{tpu_custom_call.1}
  #allocation0 [shape = 'u32[]', space=smem, size = 0x4, offset = 0x4, fixed_abs, tag = 'smem constant byte address 0x4 - core index']
  #allocation1 [shape = 'u32[72,128]{1,0:T(1,128)}', space=vmem, size = 0x9000, scoped, tag = 'internal scratch']
  %s0 = inlined_call_operand.hbm [shape: f32[2,8,128], index: 0, kind: input, shape index: {}]
  %s1 = inlined_call_operand.hbm [shape: f32[128,128], index: 1, kind: input, shape index: {}]
  %s2 = inlined_call_operand.vmem [shape: f32[1,128], index: 2, kind: input, shape index: {}]
  %s3 = inlined_call_operand.hbm [shape: f32[128,128], index: 3, kind: input, shape index: {}]
  %s4 = inlined_call_operand.vmem [shape: f32[1,128], index: 4, kind: input, shape index: {}]
  %s5 = inlined_call_operand.hbm [shape: f32[128,128], index: 5, kind: input, shape index: {}]
  %s6 = inlined_call_operand.vmem [shape: f32[1,128], index: 6, kind: input, shape index: {}]
  %s7 = inlined_call_operand.hbm [shape: f32[128,128], index: 7, kind: input, shape index: {}]
  %s8 = inlined_call_operand.vmem [shape: f32[1,128], index: 8, kind: input, shape index: {}]
  %s9 = inlined_call_operand.hbm [shape: f32[128,128], index: 9, kind: input, shape index: {}]
  %s10 = inlined_call_operand.vmem [shape: f32[1,128], index: 10, kind: input, shape index: {}]
  %s11 = inlined_call_operand.hbm [shape: f32[2,8,128], index: 11, kind: output, shape index: {}]
  %s12 = sld [smem:[#allocation0]]
  $region78: #{tpu_custom_call.1} parent=0
    _
  %s14 = ssub.s32 1, %s12
  %s15 = scalar_select 0, %s14, %s12
  $region1: #{tpu_custom_call.1} parent=0
    #allocation2 [shape = 'u8[8192]{0}', space=vmem, size = 0x2000, scoped, tag = 'input window, operand 0, single buffered']
    #allocation3 [shape = 's32[1]{0}', space=sflag, size = 0x4, scoped, tag = 'scoped memory for tpu_custom_call.1']
    #allocation4 [shape = 's32[1]{0}', space=sflag, size = 0x4, scoped, tag = 'scoped memory for tpu_custom_call.1']
    #allocation5 [shape = 'u8[65536]{0}', space=vmem, size = 0x10000, scoped, tag = 'input window, operand 1, single buffered']
    #allocation6 [shape = 's32[1]{0}', space=sflag, size = 0x4, scoped, tag = 'scoped memory for tpu_custom_call.1']
    #allocation7 [shape = 'u8[65536]{0}', space=vmem, size = 0x10000, scoped, tag = 'input window, operand 3, single buffered']
    #allocation8 [shape = 'u8[65536]{0}', space=vmem, size = 0x10000, scoped, tag = 'input window, operand 5, single buffered']
    #allocation9 [shape = 's32[1]{0}', space=sflag, size = 0x4, scoped, tag = 'scoped memory for tpu_custom_call.1']
    #allocation10 [shape = 'u8[65536]{0}', space=vmem, size = 0x10000, scoped, tag = 'input window, operand 7, single buffered']
    #allocation11 [shape = 'u8[65536]{0}', space=vmem, size = 0x10000, scoped, tag = 'input window, operand 9, single buffered']
    #allocation12 [shape = 's32[1]{0}', space=sflag, size = 0x4, scoped, tag = 'scoped memory for tpu_custom_call.1']
    #allocation13 [shape = 'u8[8192]{0}', space=vmem, size = 0x2000, scoped, tag = 'output window, operand 0, single buffered']
    %16 = vsyncpa [#allocation3], 0
    %17 = vsyncpa [#allocation6], 0
    %18 = vsyncpa [#allocation9], 0
    %19 = vsyncpa [#allocation12], 0
    %20 = vsyncpa [#allocation4], 0
    // Predicated region
    $region2: #{tpu_custom_call.1} parent=1 // pred_check
      _
    $region3: #{tpu_custom_call.1} parent=1 // pred_check_branch
      %22 = sbr.rel (0) target = $region5
    $region4: #{tpu_custom_call.1} parent=1 // pred_region
      %24 = vsyncadd [#allocation3], 0
      %s25 = sshll.u32 %s0, 4
      %s26 = int_to_ptr.hbm [resolvable:$true] %s25
      %s27 = sshll.u32 [#allocation2], 4
      %s28 = int_to_ptr.vmem [resolvable:$true] %s27
      %33 = dma.hbm_to_vmem [thread:$0]  %s26, 256, %s28, [#allocation3], 128, 128, 8
    $region5: #{tpu_custom_call.1} parent=1 // pred_fallthru
      _
    // Predicated region
    $region6: #{tpu_custom_call.1} parent=1 // pred_check
      _
    $region7: #{tpu_custom_call.1} parent=1 // pred_check_branch
      %35 = sbr.rel (0) target = $region9
    $region8: #{tpu_custom_call.1} parent=1 // pred_region
      %37 = vsyncadd [#allocation6], 0
      %s38 = sshll.u32 %s1, 4
      %s39 = int_to_ptr.hbm [resolvable:$true] %s38
      %s40 = sshll.u32 [#allocation5], 4
      %s41 = int_to_ptr.vmem [resolvable:$true] %s40
      %46 = dma.hbm_to_vmem [thread:$0]  %s39, 2048, %s41, [#allocation6], 128, 128, 8
    $region9: #{tpu_custom_call.1} parent=1 // pred_fallthru
      _
    // Predicated region
    $region10: #{tpu_custom_call.1} parent=1 // pred_check
      _
    $region11: #{tpu_custom_call.1} parent=1 // pred_check_branch
      %48 = sbr.rel (0) target = $region13
    $region12: #{tpu_custom_call.1} parent=1 // pred_region
      _
    $region13: #{tpu_custom_call.1} parent=1 // pred_fallthru
      _
    // Predicated region
    $region14: #{tpu_custom_call.1} parent=1 // pred_check
      _
    $region15: #{tpu_custom_call.1} parent=1 // pred_check_branch
      %50 = sbr.rel (0) target = $region17
    $region16: #{tpu_custom_call.1} parent=1 // pred_region
      %52 = vsyncadd [#allocation6], 0
      %s53 = sshll.u32 %s3, 4
      %s54 = int_to_ptr.hbm [resolvable:$true] %s53
      %s55 = sshll.u32 [#allocation7], 4
      %s56 = int_to_ptr.vmem [resolvable:$true] %s55
      %61 = dma.hbm_to_vmem [thread:$0]  %s54, 2048, %s56, [#allocation6], 128, 128, 8
    $region17: #{tpu_custom_call.1} parent=1 // pred_fallthru
      _
    // Predicated region
    $region18: #{tpu_custom_call.1} parent=1 // pred_check
      _
    $region19: #{tpu_custom_call.1} parent=1 // pred_check_branch
      %63 = sbr.rel (0) target = $region21
    $region20: #{tpu_custom_call.1} parent=1 // pred_region
      _
    $region21: #{tpu_custom_call.1} parent=1 // pred_fallthru
      _
    // Predicated region
    $region22: #{tpu_custom_call.1} parent=1 // pred_check
      _
    $region23: #{tpu_custom_call.1} parent=1 // pred_check_branch
      %65 = sbr.rel (0) target = $region25
    $region24: #{tpu_custom_call.1} parent=1 // pred_region
      %67 = vsyncadd [#allocation9], 0
      %s68 = sshll.u32 %s5, 4
      %s69 = int_to_ptr.hbm [resolvable:$true] %s68
      %s70 = sshll.u32 [#allocation8], 4
      %s71 = int_to_ptr.vmem [resolvable:$true] %s70
      %76 = dma.hbm_to_vmem [thread:$0]  %s69, 2048, %s71, [#allocation9], 128, 128, 8
    $region25: #{tpu_custom_call.1} parent=1 // pred_fallthru
      _
    // Predicated region
    $region26: #{tpu_custom_call.1} parent=1 // pred_check
      _
    $region27: #{tpu_custom_call.1} parent=1 // pred_check_branch
      %78 = sbr.rel (0) target = $region29
    $region28: #{tpu_custom_call.1} parent=1 // pred_region
      _
    $region29: #{tpu_custom_call.1} parent=1 // pred_fallthru
      _
    // Predicated region
    $region30: #{tpu_custom_call.1} parent=1 // pred_check
      _
    $region31: #{tpu_custom_call.1} parent=1 // pred_check_branch
      %80 = sbr.rel (0) target = $region33
    $region32: #{tpu_custom_call.1} parent=1 // pred_region
      %82 = vsyncadd [#allocation9], 0
      %s83 = sshll.u32 %s7, 4
      %s84 = int_to_ptr.hbm [resolvable:$true] %s83
      %s85 = sshll.u32 [#allocation10], 4
      %s86 = int_to_ptr.vmem [resolvable:$true] %s85
      %91 = dma.hbm_to_vmem [thread:$0]  %s84, 2048, %s86, [#allocation9], 128, 128, 8
    $region33: #{tpu_custom_call.1} parent=1 // pred_fallthru
      _
    // Predicated region
    $region34: #{tpu_custom_call.1} parent=1 // pred_check
      _
    $region35: #{tpu_custom_call.1} parent=1 // pred_check_branch
      %93 = sbr.rel (0) target = $region37
    $region36: #{tpu_custom_call.1} parent=1 // pred_region
      _
    $region37: #{tpu_custom_call.1} parent=1 // pred_fallthru
      _
    // Predicated region
    $region38: #{tpu_custom_call.1} parent=1 // pred_check
      _
    $region39: #{tpu_custom_call.1} parent=1 // pred_check_branch
      %95 = sbr.rel (0) target = $region41
    $region40: #{tpu_custom_call.1} parent=1 // pred_region
      %97 = vsyncadd [#allocation12], 0
      %s98 = sshll.u32 %s9, 4
      %s99 = int_to_ptr.hbm [resolvable:$true] %s98
      %s100 = sshll.u32 [#allocation11], 4
      %s101 = int_to_ptr.vmem [resolvable:$true] %s100
      %106 = dma.hbm_to_vmem [thread:$0]  %s99, 2048, %s101, [#allocation12], 128, 128, 8
    $region41: #{tpu_custom_call.1} parent=1 // pred_fallthru
      _
    // Predicated region
    $region42: #{tpu_custom_call.1} parent=1 // pred_check
      _
    $region43: #{tpu_custom_call.1} parent=1 // pred_check_branch
      %108 = sbr.rel (0) target = $region45
    $region44: #{tpu_custom_call.1} parent=1 // pred_region
      _
    $region45: #{tpu_custom_call.1} parent=1 // pred_fallthru
      _
    // Predicated region
    $region46: #{tpu_custom_call.1} parent=1 // pred_check
      _
    $region47: #{tpu_custom_call.1} parent=1 // pred_check_branch
      %110 = sbr.rel (0) target = $region49
    $region48: #{tpu_custom_call.1} parent=1 // pred_region
      %112 = dma.done [#allocation3], 256
    $region49: #{tpu_custom_call.1} parent=1 // pred_fallthru
      _
    // Predicated region
    $region50: #{tpu_custom_call.1} parent=1 // pred_check
      _
    $region51: #{tpu_custom_call.1} parent=1 // pred_check_branch
      %114 = sbr.rel (0) target = $region53
    $region52: #{tpu_custom_call.1} parent=1 // pred_region
      %116 = dma.done [#allocation6], 2048
    $region53: #{tpu_custom_call.1} parent=1 // pred_fallthru
      _
    // Predicated region
    $region54: #{tpu_custom_call.1} parent=1 // pred_check
      _
    $region55: #{tpu_custom_call.1} parent=1 // pred_check_branch
      %118 = sbr.rel (0) target = $region57
    $region56: #{tpu_custom_call.1} parent=1 // pred_region
      %120 = dma.done [#allocation6], 2048
    $region57: #{tpu_custom_call.1} parent=1 // pred_fallthru
      _
    // Predicated region
    $region58: #{tpu_custom_call.1} parent=1 // pred_check
      _
    $region59: #{tpu_custom_call.1} parent=1 // pred_check_branch
      %122 = sbr.rel (0) target = $region61
    $region60: #{tpu_custom_call.1} parent=1 // pred_region
      %124 = dma.done [#allocation9], 2048
    $region61: #{tpu_custom_call.1} parent=1 // pred_fallthru
      _
    // Predicated region
    $region62: #{tpu_custom_call.1} parent=1 // pred_check
      _
    $region63: #{tpu_custom_call.1} parent=1 // pred_check_branch
      %126 = sbr.rel (0) target = $region65
    $region64: #{tpu_custom_call.1} parent=1 // pred_region
      %128 = dma.done [#allocation9], 2048
    $region65: #{tpu_custom_call.1} parent=1 // pred_fallthru
      _
    // Predicated region
    $region66: #{tpu_custom_call.1} parent=1 // pred_check
      _
    $region67: #{tpu_custom_call.1} parent=1 // pred_check_branch
      %130 = sbr.rel (0) target = $region69
    $region68: #{tpu_custom_call.1} parent=1 // pred_region
      %132 = dma.done [#allocation12], 2048
    $region69: #{tpu_custom_call.1} parent=1 // pred_fallthru
      _
    %v133 = vld [vmem:[#allocation2] sm:$0xff]
    %v134 = vld [vmem:[#allocation2 + $0x8] sm:$0xff]
    %v135 = vld [vmem:[#allocation5] sm:$0xff]
    %v136 = vld [vmem:[#allocation5 + $0x8] sm:$0xff]
    %v137 = vld [vmem:[#allocation5 + $0x10] sm:$0xff]
    %v138 = vld [vmem:[#allocation5 + $0x18] sm:$0xff]
    %v139 = vld [vmem:[#allocation5 + $0x20] sm:$0xff]
    %v140 = vld [vmem:[#allocation5 + $0x28] sm:$0xff]
    %v141 = vld [vmem:[#allocation5 + $0x30] sm:$0xff]
    %v142 = vld [vmem:[#allocation5 + $0x38] sm:$0xff]
    %v143 = vld [vmem:[#allocation5 + $0x40] sm:$0xff]
    %v144 = vld [vmem:[#allocation5 + $0x48] sm:$0xff]
    %v145 = vld [vmem:[#allocation5 + $0x50] sm:$0xff]
    %v146 = vld [vmem:[#allocation5 + $0x58] sm:$0xff]
    %v147 = vld [vmem:[#allocation5 + $0x60] sm:$0xff]
    %v148 = vld [vmem:[#allocation5 + $0x68] sm:$0xff]
    %v149 = vld [vmem:[#allocation5 + $0x70] sm:$0xff]
    %v150 = vld [vmem:[#allocation5 + $0x78] sm:$0xff]
    %v151 = vld [vmem:[%s2] sm:$0x1]
    %v153 = vperm.slane %v151, 0
    %155 = vmatpush.msra.mxu0 %v150
    %156 = vmatpush.msra.mxu0 %v149
    %157 = vmatpush.msra.mxu0 %v148
    %158 = vmatpush.msra.mxu0 %v147
    %159 = vmatpush.msra.mxu0 %v146
    %160 = vmatpush.msra.mxu0 %v145
    %161 = vmatpush.msra.mxu0 %v144
    %162 = vmatpush.msra.mxu0 %v143
    %163 = vmatpush.msra.mxu0 %v142
    %164 = vmatpush.msra.mxu0 %v141
    %165 = vmatpush.msra.mxu0 %v140
    %166 = vmatpush.msra.mxu0 %v139
    %167 = vmatpush.msra.mxu0 %v138
    %168 = vmatpush.msra.mxu0 %v137
    %169 = vmatpush.msra.mxu0 %v136
    %170 = vmatpush.msra.mxu0 %v135
    %171 = vmatmul.f32.gmra.mxu0 %v133
    %v172 = vpop.f32.mrf.mxu0
    %v173 = vadd.f32 %v153, %v172
    %174 = vmatmul.f32.gmra.mxu0 %v134
    %v175 = vpop.f32.mrf.mxu0
    %v176 = vadd.f32 %v153, %v175
    %177 = vdwg.mxu0
    %v178 = vmax.f32 %v173, 0.0
    %v179 = vmax.f32 %v176, 0.0
    %v180 = vld [vmem:[#allocation7] sm:$0xff]
    %v181 = vld [vmem:[#allocation7 + $0x8] sm:$0xff]
    %v182 = vld [vmem:[#allocation7 + $0x10] sm:$0xff]
    %v183 = vld [vmem:[#allocation7 + $0x18] sm:$0xff]
    %v184 = vld [vmem:[#allocation7 + $0x20] sm:$0xff]
    %v185 = vld [vmem:[#allocation7 + $0x28] sm:$0xff]
    %v186 = vld [vmem:[#allocation7 + $0x30] sm:$0xff]
    %v187 = vld [vmem:[#allocation7 + $0x38] sm:$0xff]
    %v188 = vld [vmem:[#allocation7 + $0x40] sm:$0xff]
    %v189 = vld [vmem:[#allocation7 + $0x48] sm:$0xff]
    %v190 = vld [vmem:[#allocation7 + $0x50] sm:$0xff]
    %v191 = vld [vmem:[#allocation7 + $0x58] sm:$0xff]
    %v192 = vld [vmem:[#allocation7 + $0x60] sm:$0xff]
    %v193 = vld [vmem:[#allocation7 + $0x68] sm:$0xff]
    %v194 = vld [vmem:[#allocation7 + $0x70] sm:$0xff]
    %v195 = vld [vmem:[#allocation7 + $0x78] sm:$0xff]
    %v196 = vld [vmem:[%s4] sm:$0x1]
    %v198 = vperm.slane %v196, 0
    %200 = vmatpush.msra.mxu0 %v195
    %201 = vmatpush.msra.mxu0 %v194
    %202 = vmatpush.msra.mxu0 %v193
    %203 = vmatpush.msra.mxu0 %v192
    %204 = vmatpush.msra.mxu0 %v191
    %205 = vmatpush.msra.mxu0 %v190
    %206 = vmatpush.msra.mxu0 %v189
    %207 = vmatpush.msra.mxu0 %v188
    %208 = vmatpush.msra.mxu0 %v187
    %209 = vmatpush.msra.mxu0 %v186
    %210 = vmatpush.msra.mxu0 %v185
    %211 = vmatpush.msra.mxu0 %v184
    %212 = vmatpush.msra.mxu0 %v183
    %213 = vmatpush.msra.mxu0 %v182
    %214 = vmatpush.msra.mxu0 %v181
    %215 = vmatpush.msra.mxu0 %v180
    %216 = vmatmul.f32.gmra.mxu0 %v178
    %v217 = vpop.f32.mrf.mxu0
    %v218 = vadd.f32 %v198, %v217
    %219 = vmatmul.f32.gmra.mxu0 %v179
    %v220 = vpop.f32.mrf.mxu0
    %v221 = vadd.f32 %v198, %v220
    %222 = vdwg.mxu0
    %v223 = vmul.f32 %v218, %v218
    %v224 = vmul.f32 %v221, %v221
    %225 = vadd.xlane.f32.xlu0 %v223
    %v226 = vpop.xlane.xlu0 %225
    %227 = vadd.xlane.f32.xlu0 %v224
    %v228 = vpop.xlane.xlu0 %227
    %v229 = vrsqrt.pop %v226
    %v230 = vmul.f32 %v229, %v226
    %v231 = vmul.f32 %v230, %v229
    %v232 = vmul.f32 0.5, %v231
    %v233 = vsub.f32 1.5, %v232
    %v234 = vmul.f32 %v229, %v233
    %vm235 = vweird.f32 %v226
    %vm236 = vweird.f32 %v229
    %vm237 = vmor %vm235, %vm236
    %v238 = vsel %vm237, %v229, %v234
    %v239 = vrsqrt.pop %v228
    %v240 = vmul.f32 %v239, %v228
    %v241 = vmul.f32 %v240, %v239
    %v242 = vmul.f32 0.5, %v241
    %v243 = vsub.f32 1.5, %v242
    %v244 = vmul.f32 %v239, %v243
    %vm245 = vweird.f32 %v228
    %vm246 = vweird.f32 %v239
    %vm247 = vmor %vm245, %vm246
    %v248 = vsel %vm247, %v239, %v244
    %v249 = vmul.f32 %v218, %v238
    %v250 = vmul.f32 %v221, %v248
    %v251 = vld [vmem:[#allocation8] sm:$0xff]
    %v252 = vld [vmem:[#allocation8 + $0x8] sm:$0xff]
    %v253 = vld [vmem:[#allocation8 + $0x10] sm:$0xff]
    %v254 = vld [vmem:[#allocation8 + $0x18] sm:$0xff]
    %v255 = vld [vmem:[#allocation8 + $0x20] sm:$0xff]
    %v256 = vld [vmem:[#allocation8 + $0x28] sm:$0xff]
    %v257 = vld [vmem:[#allocation8 + $0x30] sm:$0xff]
    %v258 = vld [vmem:[#allocation8 + $0x38] sm:$0xff]
    %v259 = vld [vmem:[#allocation8 + $0x40] sm:$0xff]
    %v260 = vld [vmem:[#allocation8 + $0x48] sm:$0xff]
    %v261 = vld [vmem:[#allocation8 + $0x50] sm:$0xff]
    %v262 = vld [vmem:[#allocation8 + $0x58] sm:$0xff]
    %v263 = vld [vmem:[#allocation8 + $0x60] sm:$0xff]
    %v264 = vld [vmem:[#allocation8 + $0x68] sm:$0xff]
    %v265 = vld [vmem:[#allocation8 + $0x70] sm:$0xff]
    %v266 = vld [vmem:[#allocation8 + $0x78] sm:$0xff]
    %v267 = vld [vmem:[%s6] sm:$0x1]
    %v269 = vperm.slane %v267, 0
    %271 = vmatpush.msra.mxu0 %v266
    %272 = vmatpush.msra.mxu0 %v265
    %273 = vmatpush.msra.mxu0 %v264
    %274 = vmatpush.msra.mxu0 %v263
    %275 = vmatpush.msra.mxu0 %v262
    %276 = vmatpush.msra.mxu0 %v261
    %277 = vmatpush.msra.mxu0 %v260
    %278 = vmatpush.msra.mxu0 %v259
    %279 = vmatpush.msra.mxu0 %v258
    %280 = vmatpush.msra.mxu0 %v257
    %281 = vmatpush.msra.mxu0 %v256
    %282 = vmatpush.msra.mxu0 %v255
    %283 = vmatpush.msra.mxu0 %v254
    %284 = vmatpush.msra.mxu0 %v253
    %285 = vmatpush.msra.mxu0 %v252
    %286 = vmatpush.msra.mxu0 %v251
    %287 = vmatmul.f32.gmra.mxu0 %v133
    %v288 = vpop.f32.mrf.mxu0
    %v289 = vadd.f32 %v269, %v288
    %290 = vmatmul.f32.gmra.mxu0 %v134
    %v291 = vpop.f32.mrf.mxu0
    %v292 = vadd.f32 %v269, %v291
    %293 = vdwg.mxu0
    %v294 = vmax.f32 %v289, 0.0
    %v295 = vmax.f32 %v292, 0.0
    %v296 = vld [vmem:[#allocation10] sm:$0xff]
    %v297 = vld [vmem:[#allocation10 + $0x8] sm:$0xff]
    %v298 = vld [vmem:[#allocation10 + $0x10] sm:$0xff]
    %v299 = vld [vmem:[#allocation10 + $0x18] sm:$0xff]
    %v300 = vld [vmem:[#allocation10 + $0x20] sm:$0xff]
    %v301 = vld [vmem:[#allocation10 + $0x28] sm:$0xff]
    %v302 = vld [vmem:[#allocation10 + $0x30] sm:$0xff]
    %v303 = vld [vmem:[#allocation10 + $0x38] sm:$0xff]
    %v304 = vld [vmem:[#allocation10 + $0x40] sm:$0xff]
    %v305 = vld [vmem:[#allocation10 + $0x48] sm:$0xff]
    %v306 = vld [vmem:[#allocation10 + $0x50] sm:$0xff]
    %v307 = vld [vmem:[#allocation10 + $0x58] sm:$0xff]
    %v308 = vld [vmem:[#allocation10 + $0x60] sm:$0xff]
    %v309 = vld [vmem:[#allocation10 + $0x68] sm:$0xff]
    %v310 = vld [vmem:[#allocation10 + $0x70] sm:$0xff]
    %v311 = vld [vmem:[#allocation10 + $0x78] sm:$0xff]
    %v312 = vld [vmem:[%s8] sm:$0x1]
    %v314 = vperm.slane %v312, 0
    %316 = vmatpush.msra.mxu0 %v311
    %317 = vmatpush.msra.mxu0 %v310
    %318 = vmatpush.msra.mxu0 %v309
    %319 = vmatpush.msra.mxu0 %v308
    %320 = vmatpush.msra.mxu0 %v307
    %321 = vmatpush.msra.mxu0 %v306
    %322 = vmatpush.msra.mxu0 %v305
    %323 = vmatpush.msra.mxu0 %v304
    %324 = vmatpush.msra.mxu0 %v303
    %325 = vmatpush.msra.mxu0 %v302
    %326 = vmatpush.msra.mxu0 %v301
    %327 = vmatpush.msra.mxu0 %v300
    %328 = vmatpush.msra.mxu0 %v299
    %329 = vmatpush.msra.mxu0 %v298
    %330 = vmatpush.msra.mxu0 %v297
    %331 = vmatpush.msra.mxu0 %v296
    %332 = vmatmul.f32.gmra.mxu0 %v294
    %v333 = vpop.f32.mrf.mxu0
    %v334 = vadd.f32 %v314, %v333
    %335 = vmatmul.f32.gmra.mxu0 %v295
    %v336 = vpop.f32.mrf.mxu0
    %v337 = vadd.f32 %v314, %v336
    %338 = vdwg.mxu0
    %v339 = vmax.f32 %v334, 0.0
    %v340 = vmax.f32 %v337, 0.0
    %v341 = vld [vmem:[#allocation11] sm:$0xff]
    %v342 = vld [vmem:[#allocation11 + $0x8] sm:$0xff]
    %v343 = vld [vmem:[#allocation11 + $0x10] sm:$0xff]
    %v344 = vld [vmem:[#allocation11 + $0x18] sm:$0xff]
    %v345 = vld [vmem:[#allocation11 + $0x20] sm:$0xff]
    %v346 = vld [vmem:[#allocation11 + $0x28] sm:$0xff]
    %v347 = vld [vmem:[#allocation11 + $0x30] sm:$0xff]
    %v348 = vld [vmem:[#allocation11 + $0x38] sm:$0xff]
    %v349 = vld [vmem:[#allocation11 + $0x40] sm:$0xff]
    %v350 = vld [vmem:[#allocation11 + $0x48] sm:$0xff]
    %v351 = vld [vmem:[#allocation11 + $0x50] sm:$0xff]
    %v352 = vld [vmem:[#allocation11 + $0x58] sm:$0xff]
    %v353 = vld [vmem:[#allocation11 + $0x60] sm:$0xff]
    %v354 = vld [vmem:[#allocation11 + $0x68] sm:$0xff]
    %v355 = vld [vmem:[#allocation11 + $0x70] sm:$0xff]
    %v356 = vld [vmem:[#allocation11 + $0x78] sm:$0xff]
    %v357 = vld [vmem:[%s10] sm:$0x1]
    %v359 = vperm.slane %v357, 0
    %361 = vmatpush.msra.mxu0 %v356
    %362 = vmatpush.msra.mxu0 %v355
    %363 = vmatpush.msra.mxu0 %v354
    %364 = vmatpush.msra.mxu0 %v353
    %365 = vmatpush.msra.mxu0 %v352
    %366 = vmatpush.msra.mxu0 %v351
    %367 = vmatpush.msra.mxu0 %v350
    %368 = vmatpush.msra.mxu0 %v349
    %369 = vmatpush.msra.mxu0 %v348
    %370 = vmatpush.msra.mxu0 %v347
    %371 = vmatpush.msra.mxu0 %v346
    %372 = vmatpush.msra.mxu0 %v345
    %373 = vmatpush.msra.mxu0 %v344
    %374 = vmatpush.msra.mxu0 %v343
    %375 = vmatpush.msra.mxu0 %v342
    %376 = vmatpush.msra.mxu0 %v341
    %377 = vmatmul.f32.gmra.mxu0 %v339
    %v378 = vpop.f32.mrf.mxu0
    %v379 = vadd.f32 %v359, %v378
    %380 = vmatmul.f32.gmra.mxu0 %v340
    %v381 = vpop.f32.mrf.mxu0
    %v382 = vadd.f32 %v359, %v381
    %383 = vdwg.mxu0
    %384 = vmatpush.xpose.msra.mxu0 0.0
    %385 = vmatpush.xpose.msra.mxu0 0.0
    %386 = vmatpush.xpose.msra.mxu0 0.0
    %387 = vmatpush.xpose.msra.mxu0 0.0
    %388 = vmatpush.xpose.msra.mxu0 0.0
    %389 = vmatpush.xpose.msra.mxu0 0.0
    %390 = vmatpush.xpose.msra.mxu0 0.0
    %391 = vmatpush.xpose.msra.mxu0 0.0
    %392 = vmatpush.xpose.msra.mxu0 0.0
    %393 = vmatpush.xpose.msra.mxu0 0.0
    %394 = vmatpush.xpose.msra.mxu0 0.0
    %395 = vmatpush.xpose.msra.mxu0 0.0
    %396 = vmatpush.xpose.msra.mxu0 0.0
    %397 = vmatpush.xpose.msra.mxu0 0.0
    %398 = vmatpush.xpose.msra.mxu0 0.0
    %399 = vmatpush.xpose.msra.mxu0 %v249
    %400 = vmatmul.f32.gmra.mxu0 %v249
    %v401 = vpop.f32.mrf.mxu0
    %v402 = vadd.f32 0.125, %v401
    %403 = vdwg.mxu0
    %404 = vmatpush.xpose.msra.mxu0 0.0
    %405 = vmatpush.xpose.msra.mxu0 0.0
    %406 = vmatpush.xpose.msra.mxu0 0.0
    %407 = vmatpush.xpose.msra.mxu0 0.0
    %408 = vmatpush.xpose.msra.mxu0 0.0
    %409 = vmatpush.xpose.msra.mxu0 0.0
    %410 = vmatpush.xpose.msra.mxu0 0.0
    %411 = vmatpush.xpose.msra.mxu0 0.0
    %412 = vmatpush.xpose.msra.mxu0 0.0
    %413 = vmatpush.xpose.msra.mxu0 0.0
    %414 = vmatpush.xpose.msra.mxu0 0.0
    %415 = vmatpush.xpose.msra.mxu0 0.0
    %416 = vmatpush.xpose.msra.mxu0 0.0
    %417 = vmatpush.xpose.msra.mxu0 0.0
    %418 = vmatpush.xpose.msra.mxu0 0.0
    %419 = vmatpush.xpose.msra.mxu0 %v250
    %420 = vmatmul.f32.gmra.mxu0 %v250
    %v421 = vpop.f32.mrf.mxu0
    %v422 = vadd.f32 0.125, %v421
    %423 = vdwg.mxu0
    %vm424 = vcmask 64512
    %v426 = vsel %vm424, %v402, 0
    %428 = vmatpush.msra.mxu0 0.0
    %429 = vmatpush.msra.mxu0 0.0
    %430 = vmatpush.msra.mxu0 0.0
    %431 = vmatpush.msra.mxu0 0.0
    %432 = vmatpush.msra.mxu0 0.0
    %433 = vmatpush.msra.mxu0 0.0
    %434 = vmatpush.msra.mxu0 0.0
    %435 = vmatpush.msra.mxu0 0.0
    %436 = vmatpush.msra.mxu0 0.0
    %437 = vmatpush.msra.mxu0 0.0
    %438 = vmatpush.msra.mxu0 0.0
    %439 = vmatpush.msra.mxu0 0.0
    %440 = vmatpush.msra.mxu0 0.0
    %441 = vmatpush.msra.mxu0 0.0
    %442 = vmatpush.msra.mxu0 0.0
    %443 = vmatpush.msra.mxu0 %v379
    %444 = vmatmul.f32.gmra.mxu0 %v426
    %v445 = vpop.f32.mrf.mxu0
    %v446 = vadd.f32 0.0, %v445
    %447 = vdwg.mxu0
    %v449 = vsel %vm424, %v422, 0
    %451 = vmatpush.msra.mxu0 0.0
    %452 = vmatpush.msra.mxu0 0.0
    %453 = vmatpush.msra.mxu0 0.0
    %454 = vmatpush.msra.mxu0 0.0
    %455 = vmatpush.msra.mxu0 0.0
    %456 = vmatpush.msra.mxu0 0.0
    %457 = vmatpush.msra.mxu0 0.0
    %458 = vmatpush.msra.mxu0 0.0
    %459 = vmatpush.msra.mxu0 0.0
    %460 = vmatpush.msra.mxu0 0.0
    %461 = vmatpush.msra.mxu0 0.0
    %462 = vmatpush.msra.mxu0 0.0
    %463 = vmatpush.msra.mxu0 0.0
    %464 = vmatpush.msra.mxu0 0.0
    %465 = vmatpush.msra.mxu0 0.0
    %466 = vmatpush.msra.mxu0 %v382
    %467 = vmatmul.f32.gmra.mxu0 %v449
    %v468 = vpop.f32.mrf.mxu0
    %v469 = vadd.f32 0.0, %v468
    %470 = vdwg.mxu0
    %471 = vst [vmem:[#allocation13] sm:$0xff] %v446
    %472 = vst [vmem:[#allocation13 + $0x8] sm:$0xff] %v469
    // Predicated region
    $region70: #{tpu_custom_call.1} parent=1 // pred_check
      _
    $region71: #{tpu_custom_call.1} parent=1 // pred_check_branch
      %474 = sbr.rel (0) target = $region73
    $region72: #{tpu_custom_call.1} parent=1 // pred_region
      %476 = vsyncadd [#allocation4], 0
      %s477 = sshll.u32 [#allocation13], 4
      %s478 = int_to_ptr.vmem [resolvable:$true] %s477
      %s479 = sshll.u32 %s11, 4
      %s480 = int_to_ptr.hbm [resolvable:$true] %s479
      %485 = dma.vmem_to_hbm [thread:$0]  %s478, 256, %s480, [#allocation4], 128, 128, 8
    $region73: #{tpu_custom_call.1} parent=1 // pred_fallthru
      _
    // Predicated region
    $region74: #{tpu_custom_call.1} parent=1 // pred_check
      _
    $region75: #{tpu_custom_call.1} parent=1 // pred_check_branch
      %487 = sbr.rel (0) target = $region77
    $region76: #{tpu_custom_call.1} parent=1 // pred_region
      %489 = dma.done [#allocation4], 256
    $region77: #{tpu_custom_call.1} parent=1 // pred_fallthru
      _
    %490 = vsyncpa [#allocation3], 1
    %491 = vsyncpa [#allocation6], 1
    %492 = vsyncpa [#allocation9], 1
    %493 = vsyncpa [#allocation12], 1
    %494 = vsyncpa [#allocation4], 1

</llo_original>
